<compile_context>
chip_gen: v7x
topology: tpu7x:2x2x1
jax: 0.10.0
libtpu: 0.0.40
codegen_flags: <defaults>
</compile_context>

<pallas_src>
import functools

import jax
import jax.numpy as jnp
from jax.experimental import pallas as pl
from jax.experimental.pallas import tpu as pltpu

F_IN = 2         # wine features used by the model
F_OUT = 3        # classes
F_OUT_PAD = 128  # lane-dense padded output width


def _round_up(n, m):
    return ((n + m - 1) // m) * m


def winenet_kernel(x_ref, w1_ref, b1_ref, w2_ref, b2_ref, w3_ref, b3_ref, o_ref):
    x = x_ref[...]                                    # (tile, 2) f32

    def sigmoid(v):
        # Single EUP tanh instead of exp + f32 VALU divide.
        return 0.5 * jnp.tanh(0.5 * v) + 0.5

    # fc1 + sigmoid.  K=2 -> VPU broadcast FMAs (exact f32); MXU would be idle.
    h = (x[:, 0:1] * w1_ref[0:1, :]
         + x[:, 1:2] * w1_ref[1:2, :]
         + b1_ref[...])
    h = sigmoid(h)                                    # (tile, H) f32

    # fc2 + sigmoid: full-precision f32 MXU matmul (parity with f32 PyTorch).
    h2 = jnp.dot(h, w2_ref[...],
                 precision=jax.lax.Precision.HIGHEST,
                 preferred_element_type=jnp.float32)
    h2 = sigmoid(h2 + b2_ref[...])                    # (tile, H) f32

    # fc3 logits (WineNet.forward applies no softmax).  Output padded to 128
    # lanes so the store is a full unmasked vst.
    out = jnp.dot(h2, w3_ref[...],
                  precision=jax.lax.Precision.HIGHEST,
                  preferred_element_type=jnp.float32)
    o_ref[...] = (out + b3_ref[...]).astype(o_ref.dtype)


@functools.partial(jax.jit, static_argnames=("batch_tile",))
def winenet_forward(x, params, batch_tile=None):
    """x: (B, 2) float32. Returns (B, 3) float32 logits."""
    B, f_in = x.shape
    assert f_in == F_IN
    H = params["w1"].shape[1]

    if batch_tile is None:
        # Single grid step: v5e/v6e have one TensorCore, so extra grid steps are
        # serial overhead (~0.35us each) for this tiny MLP.  Only tile the batch
        # (explicit batch_tile of 1024-4096) when B is large enough that each
        # tile's compute dwarfs the per-step overhead.
        batch_tile = max(_round_up(B, 8), 8)
    else:
        batch_tile = _round_up(batch_tile, 8)

    n_blocks = pl.cdiv(B, batch_tile)
    B_pad = n_blocks * batch_tile
    if B_pad != B:
        # Padded rows (zeros) just flow through both sigmoids and are sliced off
        # below.  Nothing in the kernel reduces over the batch, so they're inert
        # (keep it that way if the kernel ever gains a batch reduction).
        x = jnp.pad(x, ((0, B_pad - B), (0, 0)))

    out_padded = pl.pallas_call(
        winenet_kernel,
        out_shape=jax.ShapeDtypeStruct((B_pad, F_OUT_PAD), jnp.float32),
        grid_spec=pl.GridSpec(
            grid=(n_blocks,),
            in_specs=[
                # x: tiled over the batch
                pl.BlockSpec((batch_tile, F_IN), lambda i: (i, 0)),
                # parameters: constant block index -> Pallas keeps them resident
                # across grid steps (no re-DMA when grid > 1)
                pl.BlockSpec((F_IN, H), lambda i: (0, 0)),        # w1
                pl.BlockSpec((1, H), lambda i: (0, 0)),           # b1
                pl.BlockSpec((H, H), lambda i: (0, 0)),           # w2
                pl.BlockSpec((1, H), lambda i: (0, 0)),           # b2
                pl.BlockSpec((H, F_OUT_PAD), lambda i: (0, 0)),   # w3 (lane-padded)
                pl.BlockSpec((1, F_OUT_PAD), lambda i: (0, 0)),   # b3 (lane-padded)
            ],
            out_specs=pl.BlockSpec((batch_tile, F_OUT_PAD), lambda i: (i, 0)),
        ),
        compiler_params=pltpu.CompilerParams(
            # Grid steps are independent over the batch, but plain "parallel"
            # doesn't change codegen; use pltpu.CORE_PARALLEL here only for large
            # batches on v7x (>= a few hundred rows per TensorCore).
            dimension_semantics=("arbitrary",),
        ),
    )(
        x,
        params["w1"], params["b1"],
        params["w2"], params["b2"],
        params["w3"], params["b3"],
    )
    return out_padded[:B, :F_OUT]


def init_winenet_params(key, n_hidden_neurons):
    """Init mirroring torch.nn.Linear default U(-1/sqrt(fan_in), 1/sqrt(fan_in)).

    Weights are stored as (in_features, out_features) f32 so the kernel computes
    x @ W directly.  w3/b3 are zero-padded from 3 to 128 output lanes so the
    output store is lane-dense and unmasked.
    """
    H = n_hidden_neurons
    k1, k2, k3, k4, k5, k6 = jax.random.split(key, 6)

    def uniform(k, shape, fan_in):
        bound = 1.0 / (fan_in ** 0.5)
        return jax.random.uniform(k, shape, jnp.float32, -bound, bound)

    w3 = uniform(k5, (H, F_OUT), H)
    b3 = uniform(k6, (1, F_OUT), H)
    w3_pad = jnp.zeros((H, F_OUT_PAD), jnp.float32).at[:, :F_OUT].set(w3)
    b3_pad = jnp.zeros((1, F_OUT_PAD), jnp.float32).at[:, :F_OUT].set(b3)

    return {
        "w1": uniform(k1, (F_IN, H), F_IN),
        "b1": uniform(k2, (1, H), F_IN),
        "w2": uniform(k3, (H, H), H),
        "b2": uniform(k4, (1, H), H),
        "w3": w3_pad,
        "b3": b3_pad,
    }


def winenet_reference(x, params):
    """Pure-JAX f32 reference with PyTorch WineNet.forward semantics."""
    hp = jax.lax.Precision.HIGHEST
    h = jax.nn.sigmoid(jnp.dot(x, params["w1"], precision=hp) + params["b1"])
    h = jax.nn.sigmoid(jnp.dot(h, params["w2"], precision=hp) + params["b2"])
    out = jnp.dot(h, params["w3"], precision=hp) + params["b3"]
    return out[:, :F_OUT]


if __name__ == "__main__":
    key = jax.random.PRNGKey(0)
    k_param, k_x = jax.random.split(key)

    n_hidden = 32
    batch = 178   # actual wine-dataset size

    params = init_winenet_params(k_param, n_hidden)
    x = jax.random.normal(k_x, (batch, F_IN), jnp.float32)

    # Default batch_tile=None -> tile = 184 (178 rounded to a sublane multiple),
    # i.e. a single grid step: no per-step pipeline overhead on v5e/v6e.
    out = winenet_forward(x, params)
    out = jax.block_until_ready(out)

    ref = winenet_reference(x, params)
    assert out.shape == (batch, F_OUT)
    assert jnp.allclose(out, ref, atol=2e-3, rtol=2e-3), "mismatch vs reference"

    print("KERNEL_OK")
</pallas_src>

<mosaic_0001>
module attributes {stable_mosaic.version = 11 : i64} {
  func.func @winenet_kernel(%arg0: i32, %arg1: memref<184x2xf32, #tpu.memory_space<vmem>>, %arg2: memref<2x32xf32, #tpu.memory_space<vmem>>, %arg3: memref<1x32xf32, #tpu.memory_space<vmem>>, %arg4: memref<32x32xf32, #tpu.memory_space<vmem>>, %arg5: memref<1x32xf32, #tpu.memory_space<vmem>>, %arg6: memref<32x128xf32, #tpu.memory_space<vmem>>, %arg7: memref<1x128xf32, #tpu.memory_space<vmem>>, %arg8: memref<184x128xf32, #tpu.memory_space<vmem>>) attributes {dimension_semantics = [#tpu.dimension_semantics<arbitrary>], iteration_bounds = array<i64: 1>, scalar_prefetch = 0 : i64, scratch_operands = 0 : i64, tpu.core_type = #tpu.core_type<tc>, window_params = [{transform_indices = @transform_0, window_bounds = array<i64: 184, 2>}, {pipeline_mode = #tpu.pipeline_mode<synchronous>, transform_indices = @transform_1, window_bounds = array<i64: 2, 32>}, {pipeline_mode = #tpu.pipeline_mode<synchronous>, transform_indices = @transform_2, window_bounds = array<i64: 1, 32>}, {pipeline_mode = #tpu.pipeline_mode<synchronous>, transform_indices = @transform_3, window_bounds = array<i64: 32, 32>}, {pipeline_mode = #tpu.pipeline_mode<synchronous>, transform_indices = @transform_4, window_bounds = array<i64: 1, 32>}, {pipeline_mode = #tpu.pipeline_mode<synchronous>, transform_indices = @transform_5, window_bounds = array<i64: 32, 128>}, {pipeline_mode = #tpu.pipeline_mode<synchronous>, transform_indices = @transform_6, window_bounds = array<i64: 1, 128>}, {transform_indices = @transform_7, window_bounds = array<i64: 184, 128>}]} {
    %c0 = arith.constant 0 : index
    %c0_0 = arith.constant 0 : index
    %0 = vector.load %arg1[%c0, %c0_0] : memref<184x2xf32, #tpu.memory_space<vmem>>, vector<184x2xf32>
    %1 = vector.extract_strided_slice %0 {offsets = [0, 0], sizes = [184, 1], strides = [1, 1]} : vector<184x2xf32> to vector<184x1xf32>
    %c0_1 = arith.constant 0 : index
    %c0_2 = arith.constant 0 : index
    %2 = vector.load %arg2[%c0_1, %c0_2] : memref<2x32xf32, #tpu.memory_space<vmem>>, vector<1x32xf32>
    %3 = vector.broadcast %1 : vector<184x1xf32> to vector<184x32xf32>
    %4 = vector.broadcast %2 : vector<1x32xf32> to vector<184x32xf32>
    %5 = arith.mulf %3, %4 : vector<184x32xf32>
    %6 = vector.extract_strided_slice %0 {offsets = [0, 1], sizes = [184, 1], strides = [1, 1]} : vector<184x2xf32> to vector<184x1xf32>
    %c1 = arith.constant 1 : index
    %c0_3 = arith.constant 0 : index
    %7 = vector.load %arg2[%c1, %c0_3] : memref<2x32xf32, #tpu.memory_space<vmem>>, vector<1x32xf32>
    %8 = vector.broadcast %6 : vector<184x1xf32> to vector<184x32xf32>
    %9 = vector.broadcast %7 : vector<1x32xf32> to vector<184x32xf32>
    %10 = arith.mulf %8, %9 : vector<184x32xf32>
    %11 = arith.addf %5, %10 : vector<184x32xf32>
    %c0_4 = arith.constant 0 : index
    %c0_5 = arith.constant 0 : index
    %12 = vector.load %arg3[%c0_4, %c0_5] : memref<1x32xf32, #tpu.memory_space<vmem>>, vector<1x32xf32>
    %13 = vector.broadcast %12 : vector<1x32xf32> to vector<184x32xf32>
    %14 = arith.addf %11, %13 : vector<184x32xf32>
    %cst = arith.constant 5.000000e-01 : f32
    %15 = vector.broadcast %cst : f32 to vector<184x32xf32>
    %16 = arith.mulf %15, %14 : vector<184x32xf32>
    %17 = math.tanh %16 : vector<184x32xf32>
    %cst_6 = arith.constant 5.000000e-01 : f32
    %18 = vector.broadcast %cst_6 : f32 to vector<184x32xf32>
    %19 = arith.mulf %18, %17 : vector<184x32xf32>
    %cst_7 = arith.constant 5.000000e-01 : f32
    %20 = vector.broadcast %cst_7 : f32 to vector<184x32xf32>
    %21 = arith.addf %19, %20 : vector<184x32xf32>
    %c0_8 = arith.constant 0 : index
    %c0_9 = arith.constant 0 : index
    %22 = vector.load %arg4[%c0_8, %c0_9] : memref<32x32xf32, #tpu.memory_space<vmem>>, vector<32x32xf32>
    %cst_10 = arith.constant dense<0.000000e+00> : vector<184x32xf32>
    %23 = tpu.matmul %21, %22, %cst_10 {dimension_numbers = #tpu.dot_dimension_numbers<[1], [0], [0], [1], [0, 0, 1, 1], [], []>, precision = #tpu.contract_precision<fp32>} : vector<184x32xf32>, vector<32x32xf32>, vector<184x32xf32> -> vector<184x32xf32>
    %c0_11 = arith.constant 0 : index
    %c0_12 = arith.constant 0 : index
    %24 = vector.load %arg5[%c0_11, %c0_12] : memref<1x32xf32, #tpu.memory_space<vmem>>, vector<1x32xf32>
    %25 = vector.broadcast %24 : vector<1x32xf32> to vector<184x32xf32>
    %26 = arith.addf %23, %25 : vector<184x32xf32>
    %cst_13 = arith.constant 5.000000e-01 : f32
    %27 = vector.broadcast %cst_13 : f32 to vector<184x32xf32>
    %28 = arith.mulf %27, %26 : vector<184x32xf32>
    %29 = math.tanh %28 : vector<184x32xf32>
    %cst_14 = arith.constant 5.000000e-01 : f32
    %30 = vector.broadcast %cst_14 : f32 to vector<184x32xf32>
    %31 = arith.mulf %30, %29 : vector<184x32xf32>
    %cst_15 = arith.constant 5.000000e-01 : f32
    %32 = vector.broadcast %cst_15 : f32 to vector<184x32xf32>
    %33 = arith.addf %31, %32 : vector<184x32xf32>
    %c0_16 = arith.constant 0 : index
    %c0_17 = arith.constant 0 : index
    %34 = vector.load %arg6[%c0_16, %c0_17] : memref<32x128xf32, #tpu.memory_space<vmem>>, vector<32x128xf32>
    %cst_18 = arith.constant dense<0.000000e+00> : vector<184x128xf32>
    %35 = tpu.matmul %33, %34, %cst_18 {dimension_numbers = #tpu.dot_dimension_numbers<[1], [0], [0], [1], [0, 0, 1, 1], [], []>, precision = #tpu.contract_precision<fp32>} : vector<184x32xf32>, vector<32x128xf32>, vector<184x128xf32> -> vector<184x128xf32>
    %c0_19 = arith.constant 0 : index
    %c0_20 = arith.constant 0 : index
    %36 = vector.load %arg7[%c0_19, %c0_20] : memref<1x128xf32, #tpu.memory_space<vmem>>, vector<1x128xf32>
    %37 = vector.broadcast %36 : vector<1x128xf32> to vector<184x128xf32>
    %38 = arith.addf %35, %37 : vector<184x128xf32>
    %c0_21 = arith.constant 0 : index
    %c0_22 = arith.constant 0 : index
    %39 = vector.load %arg8[%c0_21, %c0_22] : memref<184x128xf32, #tpu.memory_space<vmem>>, vector<184x128xf32>
    tpu.vector_store %arg8[%c0_21, %c0_22], %38 {strides = array<i32>} : memref<184x128xf32, #tpu.memory_space<vmem>>, vector<184x128xf32>,
    return
  }
  func.func @transform_0(%arg0: i32) -> (i32, i32) {
    %c0_i32 = arith.constant 0 : i32
    %c0_i32_0 = arith.constant 0 : i32
    return %arg0, %c0_i32 : i32, i32
  }
  func.func @transform_1(%arg0: i32) -> (i32, i32) {
    %c0_i32 = arith.constant 0 : i32
    %c0_i32_0 = arith.constant 0 : i32
    %c0_i32_1 = arith.constant 0 : i32
    return %c0_i32, %c0_i32_0 : i32, i32
  }
  func.func @transform_2(%arg0: i32) -> (i32, i32) {
    %c0_i32 = arith.constant 0 : i32
    %c0_i32_0 = arith.constant 0 : i32
    %c0_i32_1 = arith.constant 0 : i32
    return %c0_i32, %c0_i32_0 : i32, i32
  }
  func.func @transform_3(%arg0: i32) -> (i32, i32) {
    %c0_i32 = arith.constant 0 : i32
    %c0_i32_0 = arith.constant 0 : i32
    %c0_i32_1 = arith.constant 0 : i32
    return %c0_i32, %c0_i32_0 : i32, i32
  }
  func.func @transform_4(%arg0: i32) -> (i32, i32) {
    %c0_i32 = arith.constant 0 : i32
    %c0_i32_0 = arith.constant 0 : i32
    %c0_i32_1 = arith.constant 0 : i32
    return %c0_i32, %c0_i32_0 : i32, i32
  }
  func.func @transform_5(%arg0: i32) -> (i32, i32) {
    %c0_i32 = arith.constant 0 : i32
    %c0_i32_0 = arith.constant 0 : i32
    %c0_i32_1 = arith.constant 0 : i32
    return %c0_i32, %c0_i32_0 : i32, i32
  }
  func.func @transform_6(%arg0: i32) -> (i32, i32) {
    %c0_i32 = arith.constant 0 : i32
    %c0_i32_0 = arith.constant 0 : i32
    %c0_i32_1 = arith.constant 0 : i32
    return %c0_i32, %c0_i32_0 : i32, i32
  }
  func.func @transform_7(%arg0: i32) -> (i32, i32) {
    %c0_i32 = arith.constant 0 : i32
    %c0_i32_0 = arith.constant 0 : i32
    return %arg0, %c0_i32 : i32, i32
  }
}

</mosaic_0001>

<llo_original>
// kernel: winenet_forward.1
$region0: #{winenet_forward.1}
  #allocation0 [shape = 'u32[]', space=smem, size = 0x4, offset = 0x4, fixed_abs, tag = 'smem constant byte address 0x4 - core index']
  #allocation1 [shape = 'u32[144,128]{1,0:T(1,128)}', space=vmem, size = 0x12000, scoped, tag = 'internal scratch']
  %s0 = inlined_call_operand.vmem [shape: f32[184,2], index: 0, kind: input, shape index: {}]
  %s1 = inlined_call_operand.vmem [shape: f32[2,32], index: 1, kind: input, shape index: {}]
  %s2 = inlined_call_operand.vmem [shape: f32[1,32], index: 2, kind: input, shape index: {}]
  %s3 = inlined_call_operand.vmem [shape: f32[32,32], index: 3, kind: input, shape index: {}]
  %s4 = inlined_call_operand.vmem [shape: f32[1,32], index: 4, kind: input, shape index: {}]
  %s5 = inlined_call_operand.vmem [shape: f32[32,128], index: 5, kind: input, shape index: {}]
  %s6 = inlined_call_operand.vmem [shape: f32[1,128], index: 6, kind: input, shape index: {}]
  %s7 = inlined_call_operand.vmem [shape: f32[184,128], index: 7, kind: output, shape index: {}]
  %s8 = sld [smem:[#allocation0]]
  $region38: #{winenet_forward.1} parent=0
    _
  %s10 = ssub.s32 1, %s8
  %s11 = scalar_select 0, %s10, %s8
  // Predicated region
  $region2: #{winenet_forward.1} parent=0 // pred_check
    _
  $region3: #{winenet_forward.1} parent=0 // pred_check_branch
    %13 = sbr.rel (0) target = $region5
  $region4: #{winenet_forward.1} parent=0 // pred_region
    _
  $region5: #{winenet_forward.1} parent=0 // pred_fallthru
    _
  // Predicated region
  $region6: #{winenet_forward.1} parent=0 // pred_check
    _
  $region7: #{winenet_forward.1} parent=0 // pred_check_branch
    %15 = sbr.rel (0) target = $region9
  $region8: #{winenet_forward.1} parent=0 // pred_region
    _
  $region9: #{winenet_forward.1} parent=0 // pred_fallthru
    _
  // Predicated region
  $region10: #{winenet_forward.1} parent=0 // pred_check
    _
  $region11: #{winenet_forward.1} parent=0 // pred_check_branch
    %17 = sbr.rel (0) target = $region13
  $region12: #{winenet_forward.1} parent=0 // pred_region
    _
  $region13: #{winenet_forward.1} parent=0 // pred_fallthru
    _
  // Predicated region
  $region14: #{winenet_forward.1} parent=0 // pred_check
    _
  $region15: #{winenet_forward.1} parent=0 // pred_check_branch
    %19 = sbr.rel (0) target = $region17
  $region16: #{winenet_forward.1} parent=0 // pred_region
    _
  $region17: #{winenet_forward.1} parent=0 // pred_fallthru
    _
  // Predicated region
  $region18: #{winenet_forward.1} parent=0 // pred_check
    _
  $region19: #{winenet_forward.1} parent=0 // pred_check_branch
    %21 = sbr.rel (0) target = $region21
  $region20: #{winenet_forward.1} parent=0 // pred_region
    _
  $region21: #{winenet_forward.1} parent=0 // pred_fallthru
    _
  // Predicated region
  $region22: #{winenet_forward.1} parent=0 // pred_check
    _
  $region23: #{winenet_forward.1} parent=0 // pred_check_branch
    %23 = sbr.rel (0) target = $region25
  $region24: #{winenet_forward.1} parent=0 // pred_region
    _
  $region25: #{winenet_forward.1} parent=0 // pred_fallthru
    _
  // Predicated region
  $region26: #{winenet_forward.1} parent=0 // pred_check
    _
  $region27: #{winenet_forward.1} parent=0 // pred_check_branch
    %25 = sbr.rel (0) target = $region29
  $region28: #{winenet_forward.1} parent=0 // pred_region
    _
  $region29: #{winenet_forward.1} parent=0 // pred_fallthru
    _
  %v26 = vld [vmem:[%s0] sm:$0xff]
  %v27 = vld [vmem:[%s0 + $0x8] sm:$0xff]
  %v28 = vld [vmem:[%s0 + $0x10] sm:$0xff]
  %v29 = vld [vmem:[%s0 + $0x18] sm:$0xff]
  %v30 = vld [vmem:[%s0 + $0x20] sm:$0xff]
  %v31 = vld [vmem:[%s0 + $0x28] sm:$0xff]
  %v32 = vld [vmem:[%s0 + $0x30] sm:$0xff]
  %v33 = vld [vmem:[%s0 + $0x38] sm:$0xff]
  %v34 = vld [vmem:[%s0 + $0x40] sm:$0xff]
  %v35 = vld [vmem:[%s0 + $0x48] sm:$0xff]
  %v36 = vld [vmem:[%s0 + $0x50] sm:$0xff]
  %v37 = vld [vmem:[%s0 + $0x58] sm:$0xff]
  %v38 = vld [vmem:[%s0 + $0x60] sm:$0xff]
  %v39 = vld [vmem:[%s0 + $0x68] sm:$0xff]
  %v40 = vld [vmem:[%s0 + $0x70] sm:$0xff]
  %v41 = vld [vmem:[%s0 + $0x78] sm:$0xff]
  %v42 = vld [vmem:[%s0 + $0x80] sm:$0xff]
  %v43 = vld [vmem:[%s0 + $0x88] sm:$0xff]
  %v44 = vld [vmem:[%s0 + $0x90] sm:$0xff]
  %v45 = vld [vmem:[%s0 + $0x98] sm:$0xff]
  %v46 = vld [vmem:[%s0 + $0xa0] sm:$0xff]
  %v47 = vld [vmem:[%s0 + $0xa8] sm:$0xff]
  %v48 = vld [vmem:[%s0 + $0xb0] sm:$0xff]
  %v49 = vld [vmem:[%s1] sm:$0x1]
  %51 = vset.pattern.permute.xlu0 0
  %52 = vperm.xlu0 %51, %v26
  %v53 = vpop.permute.xlu0 %52
  %56 = vset.pattern.permute.xlu0 0
  %57 = vperm.xlu0 %56, %v27
  %v58 = vpop.permute.xlu0 %57
  %61 = vset.pattern.permute.xlu0 0
  %62 = vperm.xlu0 %61, %v28
  %v63 = vpop.permute.xlu0 %62
  %66 = vset.pattern.permute.xlu0 0
  %67 = vperm.xlu0 %66, %v29
  %v68 = vpop.permute.xlu0 %67
  %71 = vset.pattern.permute.xlu0 0
  %72 = vperm.xlu0 %71, %v30
  %v73 = vpop.permute.xlu0 %72
  %76 = vset.pattern.permute.xlu0 0
  %77 = vperm.xlu0 %76, %v31
  %v78 = vpop.permute.xlu0 %77
  %81 = vset.pattern.permute.xlu0 0
  %82 = vperm.xlu0 %81, %v32
  %v83 = vpop.permute.xlu0 %82
  %86 = vset.pattern.permute.xlu0 0
  %87 = vperm.xlu0 %86, %v33
  %v88 = vpop.permute.xlu0 %87
  %91 = vset.pattern.permute.xlu0 0
  %92 = vperm.xlu0 %91, %v34
  %v93 = vpop.permute.xlu0 %92
  %96 = vset.pattern.permute.xlu0 0
  %97 = vperm.xlu0 %96, %v35
  %v98 = vpop.permute.xlu0 %97
  %101 = vset.pattern.permute.xlu0 0
  %102 = vperm.xlu0 %101, %v36
  %v103 = vpop.permute.xlu0 %102
  %106 = vset.pattern.permute.xlu0 0
  %107 = vperm.xlu0 %106, %v37
  %v108 = vpop.permute.xlu0 %107
  %111 = vset.pattern.permute.xlu0 0
  %112 = vperm.xlu0 %111, %v38
  %v113 = vpop.permute.xlu0 %112
  %116 = vset.pattern.permute.xlu0 0
  %117 = vperm.xlu0 %116, %v39
  %v118 = vpop.permute.xlu0 %117
  %121 = vset.pattern.permute.xlu0 0
  %122 = vperm.xlu0 %121, %v40
  %v123 = vpop.permute.xlu0 %122
  %126 = vset.pattern.permute.xlu0 0
  %127 = vperm.xlu0 %126, %v41
  %v128 = vpop.permute.xlu0 %127
  %131 = vset.pattern.permute.xlu0 0
  %132 = vperm.xlu0 %131, %v42
  %v133 = vpop.permute.xlu0 %132
  %136 = vset.pattern.permute.xlu0 0
  %137 = vperm.xlu0 %136, %v43
  %v138 = vpop.permute.xlu0 %137
  %141 = vset.pattern.permute.xlu0 0
  %142 = vperm.xlu0 %141, %v44
  %v143 = vpop.permute.xlu0 %142
  %146 = vset.pattern.permute.xlu0 0
  %147 = vperm.xlu0 %146, %v45
  %v148 = vpop.permute.xlu0 %147
  %151 = vset.pattern.permute.xlu0 0
  %152 = vperm.xlu0 %151, %v46
  %v153 = vpop.permute.xlu0 %152
  %156 = vset.pattern.permute.xlu0 0
  %157 = vperm.xlu0 %156, %v47
  %v158 = vpop.permute.xlu0 %157
  %161 = vset.pattern.permute.xlu0 0
  %162 = vperm.xlu0 %161, %v48
  %v163 = vpop.permute.xlu0 %162
  %v165 = vlaneseq
  %v166 = vshrl.u32 %v165, 7
  %v167 = vsub.s32 0, %v166
  %v168 = vrot.slane %v49, %v167
  %v169 = vmul.f32 %v53, %v168
  %v170 = vmul.f32 %v58, %v168
  %v171 = vmul.f32 %v63, %v168
  %v172 = vmul.f32 %v68, %v168
  %v173 = vmul.f32 %v73, %v168
  %v174 = vmul.f32 %v78, %v168
  %v175 = vmul.f32 %v83, %v168
  %v176 = vmul.f32 %v88, %v168
  %v177 = vmul.f32 %v93, %v168
  %v178 = vmul.f32 %v98, %v168
  %v179 = vmul.f32 %v103, %v168
  %v180 = vmul.f32 %v108, %v168
  %v181 = vmul.f32 %v113, %v168
  %v182 = vmul.f32 %v118, %v168
  %v183 = vmul.f32 %v123, %v168
  %v184 = vmul.f32 %v128, %v168
  %v185 = vmul.f32 %v133, %v168
  %v186 = vmul.f32 %v138, %v168
  %v187 = vmul.f32 %v143, %v168
  %v188 = vmul.f32 %v148, %v168
  %v189 = vmul.f32 %v153, %v168
  %v190 = vmul.f32 %v158, %v168
  %v191 = vmul.f32 %v163, %v168
  %v192 = vld [vmem:[%s1 + $0x1] sm:$0x1]
  %193 = vset.pattern.permute.xlu0 1
  %194 = vperm.xlu0 %193, %v26
  %v195 = vpop.permute.xlu0 %194
  %197 = vset.pattern.permute.xlu0 1
  %198 = vperm.xlu0 %197, %v27
  %v199 = vpop.permute.xlu0 %198
  %201 = vset.pattern.permute.xlu0 1
  %202 = vperm.xlu0 %201, %v28
  %v203 = vpop.permute.xlu0 %202
  %205 = vset.pattern.permute.xlu0 1
  %206 = vperm.xlu0 %205, %v29
  %v207 = vpop.permute.xlu0 %206
  %209 = vset.pattern.permute.xlu0 1
  %210 = vperm.xlu0 %209, %v30
  %v211 = vpop.permute.xlu0 %210
  %213 = vset.pattern.permute.xlu0 1
  %214 = vperm.xlu0 %213, %v31
  %v215 = vpop.permute.xlu0 %214
  %217 = vset.pattern.permute.xlu0 1
  %218 = vperm.xlu0 %217, %v32
  %v219 = vpop.permute.xlu0 %218
  %221 = vset.pattern.permute.xlu0 1
  %222 = vperm.xlu0 %221, %v33
  %v223 = vpop.permute.xlu0 %222
  %225 = vset.pattern.permute.xlu0 1
  %226 = vperm.xlu0 %225, %v34
  %v227 = vpop.permute.xlu0 %226
  %229 = vset.pattern.permute.xlu0 1
  %230 = vperm.xlu0 %229, %v35
  %v231 = vpop.permute.xlu0 %230
  %233 = vset.pattern.permute.xlu0 1
  %234 = vperm.xlu0 %233, %v36
  %v235 = vpop.permute.xlu0 %234
  %237 = vset.pattern.permute.xlu0 1
  %238 = vperm.xlu0 %237, %v37
  %v239 = vpop.permute.xlu0 %238
  %241 = vset.pattern.permute.xlu0 1
  %242 = vperm.xlu0 %241, %v38
  %v243 = vpop.permute.xlu0 %242
  %245 = vset.pattern.permute.xlu0 1
  %246 = vperm.xlu0 %245, %v39
  %v247 = vpop.permute.xlu0 %246
  %249 = vset.pattern.permute.xlu0 1
  %250 = vperm.xlu0 %249, %v40
  %v251 = vpop.permute.xlu0 %250
  %253 = vset.pattern.permute.xlu0 1
  %254 = vperm.xlu0 %253, %v41
  %v255 = vpop.permute.xlu0 %254
  %257 = vset.pattern.permute.xlu0 1
  %258 = vperm.xlu0 %257, %v42
  %v259 = vpop.permute.xlu0 %258
  %261 = vset.pattern.permute.xlu0 1
  %262 = vperm.xlu0 %261, %v43
  %v263 = vpop.permute.xlu0 %262
  %265 = vset.pattern.permute.xlu0 1
  %266 = vperm.xlu0 %265, %v44
  %v267 = vpop.permute.xlu0 %266
  %269 = vset.pattern.permute.xlu0 1
  %270 = vperm.xlu0 %269, %v45
  %v271 = vpop.permute.xlu0 %270
  %273 = vset.pattern.permute.xlu0 1
  %274 = vperm.xlu0 %273, %v46
  %v275 = vpop.permute.xlu0 %274
  %277 = vset.pattern.permute.xlu0 1
  %278 = vperm.xlu0 %277, %v47
  %v279 = vpop.permute.xlu0 %278
  %281 = vset.pattern.permute.xlu0 1
  %282 = vperm.xlu0 %281, %v48
  %v283 = vpop.permute.xlu0 %282
  %v285 = vlaneseq
  %v286 = vshrl.u32 %v285, 7
  %v287 = vsub.s32 0, %v286
  %v288 = vrot.slane %v192, %v287
  %v289 = vmul.f32 %v195, %v288
  %v290 = vmul.f32 %v199, %v288
  %v291 = vmul.f32 %v203, %v288
  %v292 = vmul.f32 %v207, %v288
  %v293 = vmul.f32 %v211, %v288
  %v294 = vmul.f32 %v215, %v288
  %v295 = vmul.f32 %v219, %v288
  %v296 = vmul.f32 %v223, %v288
  %v297 = vmul.f32 %v227, %v288
  %v298 = vmul.f32 %v231, %v288
  %v299 = vmul.f32 %v235, %v288
  %v300 = vmul.f32 %v239, %v288
  %v301 = vmul.f32 %v243, %v288
  %v302 = vmul.f32 %v247, %v288
  %v303 = vmul.f32 %v251, %v288
  %v304 = vmul.f32 %v255, %v288
  %v305 = vmul.f32 %v259, %v288
  %v306 = vmul.f32 %v263, %v288
  %v307 = vmul.f32 %v267, %v288
  %v308 = vmul.f32 %v271, %v288
  %v309 = vmul.f32 %v275, %v288
  %v310 = vmul.f32 %v279, %v288
  %v311 = vmul.f32 %v283, %v288
  %v312 = vadd.f32 %v169, %v289
  %v313 = vadd.f32 %v170, %v290
  %v314 = vadd.f32 %v171, %v291
  %v315 = vadd.f32 %v172, %v292
  %v316 = vadd.f32 %v173, %v293
  %v317 = vadd.f32 %v174, %v294
  %v318 = vadd.f32 %v175, %v295
  %v319 = vadd.f32 %v176, %v296
  %v320 = vadd.f32 %v177, %v297
  %v321 = vadd.f32 %v178, %v298
  %v322 = vadd.f32 %v179, %v299
  %v323 = vadd.f32 %v180, %v300
  %v324 = vadd.f32 %v181, %v301
  %v325 = vadd.f32 %v182, %v302
  %v326 = vadd.f32 %v183, %v303
  %v327 = vadd.f32 %v184, %v304
  %v328 = vadd.f32 %v185, %v305
  %v329 = vadd.f32 %v186, %v306
  %v330 = vadd.f32 %v187, %v307
  %v331 = vadd.f32 %v188, %v308
  %v332 = vadd.f32 %v189, %v309
  %v333 = vadd.f32 %v190, %v310
  %v334 = vadd.f32 %v191, %v311
  %v335 = vld [vmem:[%s2] sm:$0x1]
  %v337 = vlaneseq
  %v338 = vshrl.u32 %v337, 7
  %v339 = vsub.s32 0, %v338
  %v340 = vrot.slane %v335, %v339
  %v342 = vadd.f32 %v312, %v340
  %v343 = vadd.f32 %v313, %v340
  %v344 = vadd.f32 %v314, %v340
  %v345 = vadd.f32 %v315, %v340
  %v346 = vadd.f32 %v316, %v340
  %v347 = vadd.f32 %v317, %v340
  %v348 = vadd.f32 %v318, %v340
  %v349 = vadd.f32 %v319, %v340
  %v350 = vadd.f32 %v320, %v340
  %v351 = vadd.f32 %v321, %v340
  %v352 = vadd.f32 %v322, %v340
  %v353 = vadd.f32 %v323, %v340
  %v354 = vadd.f32 %v324, %v340
  %v355 = vadd.f32 %v325, %v340
  %v356 = vadd.f32 %v326, %v340
  %v357 = vadd.f32 %v327, %v340
  %v358 = vadd.f32 %v328, %v340
  %v359 = vadd.f32 %v329, %v340
  %v360 = vadd.f32 %v330, %v340
  %v361 = vadd.f32 %v331, %v340
  %v362 = vadd.f32 %v332, %v340
  %v363 = vadd.f32 %v333, %v340
  %v364 = vadd.f32 %v334, %v340
  %v365 = vmul.f32 %v342, 0.5
  %v366 = vmul.f32 %v343, 0.5
  %v367 = vmul.f32 %v344, 0.5
  %v368 = vmul.f32 %v345, 0.5
  %v369 = vmul.f32 %v346, 0.5
  %v370 = vmul.f32 %v347, 0.5
  %v371 = vmul.f32 %v348, 0.5
  %v372 = vmul.f32 %v349, 0.5
  %v373 = vmul.f32 %v350, 0.5
  %v374 = vmul.f32 %v351, 0.5
  %v375 = vmul.f32 %v352, 0.5
  %v376 = vmul.f32 %v353, 0.5
  %v377 = vmul.f32 %v354, 0.5
  %v378 = vmul.f32 %v355, 0.5
  %v379 = vmul.f32 %v356, 0.5
  %v380 = vmul.f32 %v357, 0.5
  %v381 = vmul.f32 %v358, 0.5
  %v382 = vmul.f32 %v359, 0.5
  %v383 = vmul.f32 %v360, 0.5
  %v384 = vmul.f32 %v361, 0.5
  %v385 = vmul.f32 %v362, 0.5
  %v386 = vmul.f32 %v363, 0.5
  %v387 = vmul.f32 %v364, 0.5
  %v388 = vtanh.pop %v365
  %v389 = vtanh.pop %v366
  %v390 = vtanh.pop %v367
  %v391 = vtanh.pop %v368
  %v392 = vtanh.pop %v369
  %v393 = vtanh.pop %v370
  %v394 = vtanh.pop %v371
  %v395 = vtanh.pop %v372
  %v396 = vtanh.pop %v373
  %v397 = vtanh.pop %v374
  %v398 = vtanh.pop %v375
  %v399 = vtanh.pop %v376
  %v400 = vtanh.pop %v377
  %v401 = vtanh.pop %v378
  %v402 = vtanh.pop %v379
  %v403 = vtanh.pop %v380
  %v404 = vtanh.pop %v381
  %v405 = vtanh.pop %v382
  %v406 = vtanh.pop %v383
  %v407 = vtanh.pop %v384
  %v408 = vtanh.pop %v385
  %v409 = vtanh.pop %v386
  %v410 = vtanh.pop %v387
  %v411 = vmul.f32 %v388, 0.5
  %v412 = vmul.f32 %v389, 0.5
  %v413 = vmul.f32 %v390, 0.5
  %v414 = vmul.f32 %v391, 0.5
  %v415 = vmul.f32 %v392, 0.5
  %v416 = vmul.f32 %v393, 0.5
  %v417 = vmul.f32 %v394, 0.5
  %v418 = vmul.f32 %v395, 0.5
  %v419 = vmul.f32 %v396, 0.5
  %v420 = vmul.f32 %v397, 0.5
  %v421 = vmul.f32 %v398, 0.5
  %v422 = vmul.f32 %v399, 0.5
  %v423 = vmul.f32 %v400, 0.5
  %v424 = vmul.f32 %v401, 0.5
  %v425 = vmul.f32 %v402, 0.5
  %v426 = vmul.f32 %v403, 0.5
  %v427 = vmul.f32 %v404, 0.5
  %v428 = vmul.f32 %v405, 0.5
  %v429 = vmul.f32 %v406, 0.5
  %v430 = vmul.f32 %v407, 0.5
  %v431 = vmul.f32 %v408, 0.5
  %v432 = vmul.f32 %v409, 0.5
  %v433 = vmul.f32 %v410, 0.5
  %v434 = vadd.f32 %v411, 0.5
  %v435 = vadd.f32 %v412, 0.5
  %v436 = vadd.f32 %v413, 0.5
  %v437 = vadd.f32 %v414, 0.5
  %v438 = vadd.f32 %v415, 0.5
  %v439 = vadd.f32 %v416, 0.5
  %v440 = vadd.f32 %v417, 0.5
  %v441 = vadd.f32 %v418, 0.5
  %v442 = vadd.f32 %v419, 0.5
  %v443 = vadd.f32 %v420, 0.5
  %v444 = vadd.f32 %v421, 0.5
  %v445 = vadd.f32 %v422, 0.5
  %v446 = vadd.f32 %v423, 0.5
  %v447 = vadd.f32 %v424, 0.5
  %v448 = vadd.f32 %v425, 0.5
  %v449 = vadd.f32 %v426, 0.5
  %v450 = vadd.f32 %v427, 0.5
  %v451 = vadd.f32 %v428, 0.5
  %v452 = vadd.f32 %v429, 0.5
  %v453 = vadd.f32 %v430, 0.5
  %v454 = vadd.f32 %v431, 0.5
  %v455 = vadd.f32 %v432, 0.5
  %v456 = vadd.f32 %v433, 0.5
  %v457 = vld [vmem:[%s3] sm:$0xff]
  %v458 = vld [vmem:[%s3 + $0x8] sm:$0xff]
  %v459 = vld [vmem:[%s3 + $0x10] sm:$0xff]
  %v460 = vld [vmem:[%s3 + $0x18] sm:$0xff]
  %v461 = vld [vmem:[%s4] sm:$0x1]
  %v463 = vlaneseq
  %v464 = vshrl.u32 %v463, 7
  %v465 = vsub.s32 0, %v464
  %v466 = vrot.slane %v461, %v465
  %vm468 = vcmask 261120
  %v470 = vsel %vm468, %v434, 0
  %v473 = vsel %vm468, %v435, 0
  %v476 = vsel %vm468, %v436, 0
  %v479 = vsel %vm468, %v437, 0
  %v482 = vsel %vm468, %v438, 0
  %v485 = vsel %vm468, %v439, 0
  %v488 = vsel %vm468, %v440, 0
  %v491 = vsel %vm468, %v441, 0
  %v494 = vsel %vm468, %v442, 0
  %v497 = vsel %vm468, %v443, 0
  %v500 = vsel %vm468, %v444, 0
  %v503 = vsel %vm468, %v445, 0
  %v506 = vsel %vm468, %v446, 0
  %v509 = vsel %vm468, %v447, 0
  %v512 = vsel %vm468, %v448, 0
  %v515 = vsel %vm468, %v449, 0
  %v518 = vsel %vm468, %v450, 0
  %v521 = vsel %vm468, %v451, 0
  %v524 = vsel %vm468, %v452, 0
  %v527 = vsel %vm468, %v453, 0
  %v530 = vsel %vm468, %v454, 0
  %v533 = vsel %vm468, %v455, 0
  %v536 = vsel %vm468, %v456, 0
  %538 = vmatprep.subr.mxu0 0.0
  %v539 = vand.u32 %v457, 4294901760
  %540 = vmatpush1.msra.mxu0 %v539
  %541 = vmatprep.subr.mxu0 0.0
  %v542 = vand.u32 %v458, 4294901760
  %543 = vmatpush1.msra.mxu0 %v542
  %544 = vmatprep.subr.mxu0 0.0
  %v545 = vand.u32 %v459, 4294901760
  %546 = vmatpush1.msra.mxu0 %v545
  %547 = vmatprep.subr.mxu0 0.0
  %v548 = vand.u32 %v460, 4294901760
  %549 = vmatpush1.msra.mxu0 %v548
  %550 = vmatprep.subr.mxu0 0.0
  %551 = vmatpush1.msra.mxu0 0.0
  %552 = vmatprep.subr.mxu0 0.0
  %553 = vmatpush1.msra.mxu0 0.0
  %554 = vmatprep.subr.mxu0 0.0
  %555 = vmatpush1.msra.mxu0 0.0
  %556 = vmatprep.subr.mxu0 0.0
  %557 = vmatpush1.msra.mxu0 0.0
  %558 = vmatprep.subr.mxu0 0.0
  %559 = vmatpush1.msra.mxu0 0.0
  %560 = vmatprep.subr.mxu0 0.0
  %561 = vmatpush1.msra.mxu0 0.0
  %562 = vmatprep.subr.mxu0 0.0
  %563 = vmatpush1.msra.mxu0 0.0
  %564 = vmatprep.subr.mxu0 0.0
  %565 = vmatpush1.msra.mxu0 0.0
  %566 = vmatprep.subr.mxu0 0.0
  %567 = vmatpush1.msra.mxu0 0.0
  %568 = vmatprep.subr.mxu0 0.0
  %569 = vmatpush1.msra.mxu0 0.0
  %570 = vmatprep.subr.mxu0 0.0
  %571 = vmatpush1.msra.mxu0 0.0
  %572 = vmatprep.subr.mxu0 0.0
  %573 = vmatpush1.msra.mxu0 0.0
  %574 = vmatprep.subr.mxu0 0.0
  %575 = vmatpush1.msra.mxu0 0.0
  %576 = vmatprep.subr.mxu0 0.0
  %577 = vmatpush1.msra.mxu0 0.0
  %578 = vmatprep.subr.mxu0 0.0
  %579 = vmatpush1.msra.mxu0 0.0
  %580 = vmatprep.subr.mxu0 0.0
  %581 = vmatpush1.msra.mxu0 0.0
  %582 = vmatprep.subr.mxu0 0.0
  %583 = vmatpush1.msra.mxu0 0.0
  %584 = vmatprep.subr.mxu0 0.0
  %585 = vmatpush1.msra.mxu0 0.0
  %586 = vmatprep.subr.mxu0 0.0
  %587 = vmatpush1.msra.mxu0 0.0
  %588 = vmatprep.subr.mxu0 0.0
  %589 = vmatpush1.msra.mxu0 0.0
  %590 = vmatprep.subr.mxu0 0.0
  %591 = vmatpush1.msra.mxu0 0.0
  %592 = vmatprep.subr.mxu0 0.0
  %593 = vmatpush1.msra.mxu0 0.0
  %594 = vmatprep.subr.mxu0 0.0
  %595 = vmatpush1.msra.mxu0 0.0
  %596 = vmatprep.subr.mxu0 0.0
  %597 = vmatpush1.msra.mxu0 0.0
  %598 = vmatprep.subr.mxu0 0.0
  %599 = vmatpush1.msra.mxu0 0.0
  %600 = vmatprep.subr.mxu0 0.0
  %601 = vmatpush1.msra.mxu0 0.0
  %602 = vmatprep.subr.mxu0 0.0
  %603 = vmatpush1.msra.mxu0 0.0
  %604 = vmatprep.subr.mxu0 0.0
  %605 = vmatpush1.msra.mxu0 0.0
  %606 = vmatprep.mubr.f32.mxu0 0.0
  %v607 = vand.u32 %v470, 4294901760
  %v608 = vsub.f32 %v470, %v607
  %v609 = vand.u32 %v608, 4294901760
  %v610 = vsub.f32 %v608, %v609
  %v611 = vand.u32 %v610, 4294901760
  %612 = vmatmul.mubr.f32.gmra.mrb[0].mxu0 %v611
  %v613 = vpop.f32.mrb[0].mxu0
  %v614 = vadd.f32 %v466, %v613
  %v615 = vpop.f32.mrb[0].mxu0
  %616 = vmatprep.mubr.f32.mxu0 0.0
  %v617 = vand.u32 %v473, 4294901760
  %v618 = vsub.f32 %v473, %v617
  %v619 = vand.u32 %v618, 4294901760
  %v620 = vsub.f32 %v618, %v619
  %v621 = vand.u32 %v620, 4294901760
  %622 = vmatmul.mubr.f32.gmra.mrb[0].mxu0 %v621
  %v623 = vpop.f32.mrb[0].mxu0
  %v624 = vadd.f32 %v466, %v623
  %v625 = vpop.f32.mrb[0].mxu0
  %626 = vmatprep.mubr.f32.mxu0 0.0
  %v627 = vand.u32 %v476, 4294901760
  %v628 = vsub.f32 %v476, %v627
  %v629 = vand.u32 %v628, 4294901760
  %v630 = vsub.f32 %v628, %v629
  %v631 = vand.u32 %v630, 4294901760
  %632 = vmatmul.mubr.f32.gmra.mrb[0].mxu0 %v631
  %v633 = vpop.f32.mrb[0].mxu0
  %v634 = vadd.f32 %v466, %v633
  %v635 = vpop.f32.mrb[0].mxu0
  %636 = vmatprep.mubr.f32.mxu0 0.0
  %v637 = vand.u32 %v479, 4294901760
  %v638 = vsub.f32 %v479, %v637
  %v639 = vand.u32 %v638, 4294901760
  %v640 = vsub.f32 %v638, %v639
  %v641 = vand.u32 %v640, 4294901760
  %642 = vmatmul.mubr.f32.gmra.mrb[0].mxu0 %v641
  %v643 = vpop.f32.mrb[0].mxu0
  %v644 = vadd.f32 %v466, %v643
  %v645 = vpop.f32.mrb[0].mxu0
  %646 = vmatprep.mubr.f32.mxu0 0.0
  %v647 = vand.u32 %v482, 4294901760
  %v648 = vsub.f32 %v482, %v647
  %v649 = vand.u32 %v648, 4294901760
  %v650 = vsub.f32 %v648, %v649
  %v651 = vand.u32 %v650, 4294901760
  %652 = vmatmul.mubr.f32.gmra.mrb[0].mxu0 %v651
  %v653 = vpop.f32.mrb[0].mxu0
  %v654 = vadd.f32 %v466, %v653
  %v655 = vpop.f32.mrb[0].mxu0
  %656 = vmatprep.mubr.f32.mxu0 0.0
  %v657 = vand.u32 %v485, 4294901760
  %v658 = vsub.f32 %v485, %v657
  %v659 = vand.u32 %v658, 4294901760
  %v660 = vsub.f32 %v658, %v659
  %v661 = vand.u32 %v660, 4294901760
  %662 = vmatmul.mubr.f32.gmra.mrb[0].mxu0 %v661
  %v663 = vpop.f32.mrb[0].mxu0
  %v664 = vadd.f32 %v466, %v663
  %v665 = vpop.f32.mrb[0].mxu0
  %666 = vmatprep.mubr.f32.mxu0 0.0
  %v667 = vand.u32 %v488, 4294901760
  %v668 = vsub.f32 %v488, %v667
  %v669 = vand.u32 %v668, 4294901760
  %v670 = vsub.f32 %v668, %v669
  %v671 = vand.u32 %v670, 4294901760
  %672 = vmatmul.mubr.f32.gmra.mrb[0].mxu0 %v671
  %v673 = vpop.f32.mrb[0].mxu0
  %v674 = vadd.f32 %v466, %v673
  %v675 = vpop.f32.mrb[0].mxu0
  %676 = vmatprep.mubr.f32.mxu0 0.0
  %v677 = vand.u32 %v491, 4294901760
  %v678 = vsub.f32 %v491, %v677
  %v679 = vand.u32 %v678, 4294901760
  %v680 = vsub.f32 %v678, %v679
  %v681 = vand.u32 %v680, 4294901760
  %682 = vmatmul.mubr.f32.gmra.mrb[0].mxu0 %v681
  %v683 = vpop.f32.mrb[0].mxu0
  %v684 = vadd.f32 %v466, %v683
  %v685 = vpop.f32.mrb[0].mxu0
  %686 = vmatprep.mubr.f32.mxu0 0.0
  %v687 = vand.u32 %v494, 4294901760
  %v688 = vsub.f32 %v494, %v687
  %v689 = vand.u32 %v688, 4294901760
  %v690 = vsub.f32 %v688, %v689
  %v691 = vand.u32 %v690, 4294901760
  %692 = vmatmul.mubr.f32.gmra.mrb[0].mxu0 %v691
  %v693 = vpop.f32.mrb[0].mxu0
  %v694 = vadd.f32 %v466, %v693
  %v695 = vpop.f32.mrb[0].mxu0
  %696 = vmatprep.mubr.f32.mxu0 0.0
  %v697 = vand.u32 %v497, 4294901760
  %v698 = vsub.f32 %v497, %v697
  %v699 = vand.u32 %v698, 4294901760
  %v700 = vsub.f32 %v698, %v699
  %v701 = vand.u32 %v700, 4294901760
  %702 = vmatmul.mubr.f32.gmra.mrb[0].mxu0 %v701
  %v703 = vpop.f32.mrb[0].mxu0
  %v704 = vadd.f32 %v466, %v703
  %v705 = vpop.f32.mrb[0].mxu0
  %706 = vmatprep.mubr.f32.mxu0 0.0
  %v707 = vand.u32 %v500, 4294901760
  %v708 = vsub.f32 %v500, %v707
  %v709 = vand.u32 %v708, 4294901760
  %v710 = vsub.f32 %v708, %v709
  %v711 = vand.u32 %v710, 4294901760
  %712 = vmatmul.mubr.f32.gmra.mrb[0].mxu0 %v711
  %v713 = vpop.f32.mrb[0].mxu0
  %v714 = vadd.f32 %v466, %v713
  %v715 = vpop.f32.mrb[0].mxu0
  %716 = vmatprep.mubr.f32.mxu0 0.0
  %v717 = vand.u32 %v503, 4294901760
  %v718 = vsub.f32 %v503, %v717
  %v719 = vand.u32 %v718, 4294901760
  %v720 = vsub.f32 %v718, %v719
  %v721 = vand.u32 %v720, 4294901760
  %722 = vmatmul.mubr.f32.gmra.mrb[0].mxu0 %v721
  %v723 = vpop.f32.mrb[0].mxu0
  %v724 = vadd.f32 %v466, %v723
  %v725 = vpop.f32.mrb[0].mxu0
  %726 = vmatprep.mubr.f32.mxu0 0.0
  %v727 = vand.u32 %v506, 4294901760
  %v728 = vsub.f32 %v506, %v727
  %v729 = vand.u32 %v728, 4294901760
  %v730 = vsub.f32 %v728, %v729
  %v731 = vand.u32 %v730, 4294901760
  %732 = vmatmul.mubr.f32.gmra.mrb[0].mxu0 %v731
  %v733 = vpop.f32.mrb[0].mxu0
  %v734 = vadd.f32 %v466, %v733
  %v735 = vpop.f32.mrb[0].mxu0
  %736 = vmatprep.mubr.f32.mxu0 0.0
  %v737 = vand.u32 %v509, 4294901760
  %v738 = vsub.f32 %v509, %v737
  %v739 = vand.u32 %v738, 4294901760
  %v740 = vsub.f32 %v738, %v739
  %v741 = vand.u32 %v740, 4294901760
  %742 = vmatmul.mubr.f32.gmra.mrb[0].mxu0 %v741
  %v743 = vpop.f32.mrb[0].mxu0
  %v744 = vadd.f32 %v466, %v743
  %v745 = vpop.f32.mrb[0].mxu0
  %746 = vmatprep.mubr.f32.mxu0 0.0
  %v747 = vand.u32 %v512, 4294901760
  %v748 = vsub.f32 %v512, %v747
  %v749 = vand.u32 %v748, 4294901760
  %v750 = vsub.f32 %v748, %v749
  %v751 = vand.u32 %v750, 4294901760
  %752 = vmatmul.mubr.f32.gmra.mrb[0].mxu0 %v751
  %v753 = vpop.f32.mrb[0].mxu0
  %v754 = vadd.f32 %v466, %v753
  %v755 = vpop.f32.mrb[0].mxu0
  %756 = vmatprep.mubr.f32.mxu0 0.0
  %v757 = vand.u32 %v515, 4294901760
  %v758 = vsub.f32 %v515, %v757
  %v759 = vand.u32 %v758, 4294901760
  %v760 = vsub.f32 %v758, %v759
  %v761 = vand.u32 %v760, 4294901760
  %762 = vmatmul.mubr.f32.gmra.mrb[0].mxu0 %v761
  %v763 = vpop.f32.mrb[0].mxu0
  %v764 = vadd.f32 %v466, %v763
  %v765 = vpop.f32.mrb[0].mxu0
  %766 = vmatprep.mubr.f32.mxu0 0.0
  %v767 = vand.u32 %v518, 4294901760
  %v768 = vsub.f32 %v518, %v767
  %v769 = vand.u32 %v768, 4294901760
  %v770 = vsub.f32 %v768, %v769
  %v771 = vand.u32 %v770, 4294901760
  %772 = vmatmul.mubr.f32.gmra.mrb[0].mxu0 %v771
  %v773 = vpop.f32.mrb[0].mxu0
  %v774 = vadd.f32 %v466, %v773
  %v775 = vpop.f32.mrb[0].mxu0
  %776 = vmatprep.mubr.f32.mxu0 0.0
  %v777 = vand.u32 %v521, 4294901760
  %v778 = vsub.f32 %v521, %v777
  %v779 = vand.u32 %v778, 4294901760
  %v780 = vsub.f32 %v778, %v779
  %v781 = vand.u32 %v780, 4294901760
  %782 = vmatmul.mubr.f32.gmra.mrb[0].mxu0 %v781
  %v783 = vpop.f32.mrb[0].mxu0
  %v784 = vadd.f32 %v466, %v783
  %v785 = vpop.f32.mrb[0].mxu0
  %786 = vmatprep.mubr.f32.mxu0 0.0
  %v787 = vand.u32 %v524, 4294901760
  %v788 = vsub.f32 %v524, %v787
  %v789 = vand.u32 %v788, 4294901760
  %v790 = vsub.f32 %v788, %v789
  %v791 = vand.u32 %v790, 4294901760
  %792 = vmatmul.mubr.f32.gmra.mrb[0].mxu0 %v791
  %v793 = vpop.f32.mrb[0].mxu0
  %v794 = vadd.f32 %v466, %v793
  %v795 = vpop.f32.mrb[0].mxu0
  %796 = vmatprep.mubr.f32.mxu0 0.0
  %v797 = vand.u32 %v527, 4294901760
  %v798 = vsub.f32 %v527, %v797
  %v799 = vand.u32 %v798, 4294901760
  %v800 = vsub.f32 %v798, %v799
  %v801 = vand.u32 %v800, 4294901760
  %802 = vmatmul.mubr.f32.gmra.mrb[0].mxu0 %v801
  %v803 = vpop.f32.mrb[0].mxu0
  %v804 = vadd.f32 %v466, %v803
  %v805 = vpop.f32.mrb[0].mxu0
  %806 = vmatprep.mubr.f32.mxu0 0.0
  %v807 = vand.u32 %v530, 4294901760
  %v808 = vsub.f32 %v530, %v807
  %v809 = vand.u32 %v808, 4294901760
  %v810 = vsub.f32 %v808, %v809
  %v811 = vand.u32 %v810, 4294901760
  %812 = vmatmul.mubr.f32.gmra.mrb[0].mxu0 %v811
  %v813 = vpop.f32.mrb[0].mxu0
  %v814 = vadd.f32 %v466, %v813
  %v815 = vpop.f32.mrb[0].mxu0
  %816 = vmatprep.mubr.f32.mxu0 0.0
  %v817 = vand.u32 %v533, 4294901760
  %v818 = vsub.f32 %v533, %v817
  %v819 = vand.u32 %v818, 4294901760
  %v820 = vsub.f32 %v818, %v819
  %v821 = vand.u32 %v820, 4294901760
  %822 = vmatmul.mubr.f32.gmra.mrb[0].mxu0 %v821
  %v823 = vpop.f32.mrb[0].mxu0
  %v824 = vadd.f32 %v466, %v823
  %v825 = vpop.f32.mrb[0].mxu0
  %826 = vmatprep.mubr.f32.mxu0 0.0
  %v827 = vand.u32 %v536, 4294901760
  %v828 = vsub.f32 %v536, %v827
  %v829 = vand.u32 %v828, 4294901760
  %v830 = vsub.f32 %v828, %v829
  %v831 = vand.u32 %v830, 4294901760
  %832 = vmatmul.mubr.f32.gmra.mrb[0].mxu0 %v831
  %v833 = vpop.f32.mrb[0].mxu0
  %v834 = vadd.f32 %v466, %v833
  %v835 = vpop.f32.mrb[0].mxu0
  %836 = vdwg.mxu0
  %837 = vmatprep.subr.mxu0 0.0
  %v838 = vand.u32 %v457, 4294901760
  %v839 = vsub.f32 %v457, %v838
  %v840 = vand.u32 %v839, 4294901760
  %v841 = vsub.f32 %v839, %v840
  %v842 = vand.u32 %v841, 4294901760
  %843 = vmatpush1.msra.mxu0 %v842
  %844 = vmatprep.subr.mxu0 0.0
  %v845 = vand.u32 %v458, 4294901760
  %v846 = vsub.f32 %v458, %v845
  %v847 = vand.u32 %v846, 4294901760
  %v848 = vsub.f32 %v846, %v847
  %v849 = vand.u32 %v848, 4294901760
  %850 = vmatpush1.msra.mxu0 %v849
  %851 = vmatprep.subr.mxu0 0.0
  %v852 = vand.u32 %v459, 4294901760
  %v853 = vsub.f32 %v459, %v852
  %v854 = vand.u32 %v853, 4294901760
  %v855 = vsub.f32 %v853, %v854
  %v856 = vand.u32 %v855, 4294901760
  %857 = vmatpush1.msra.mxu0 %v856
  %858 = vmatprep.subr.mxu0 0.0
  %v859 = vand.u32 %v460, 4294901760
  %v860 = vsub.f32 %v460, %v859
  %v861 = vand.u32 %v860, 4294901760
  %v862 = vsub.f32 %v860, %v861
  %v863 = vand.u32 %v862, 4294901760
  %864 = vmatpush1.msra.mxu0 %v863
  %865 = vmatprep.subr.mxu0 0.0
  %866 = vmatpush1.msra.mxu0 0.0
  %867 = vmatprep.subr.mxu0 0.0
  %868 = vmatpush1.msra.mxu0 0.0
  %869 = vmatprep.subr.mxu0 0.0
  %870 = vmatpush1.msra.mxu0 0.0
  %871 = vmatprep.subr.mxu0 0.0
  %872 = vmatpush1.msra.mxu0 0.0
  %873 = vmatprep.subr.mxu0 0.0
  %874 = vmatpush1.msra.mxu0 0.0
  %875 = vmatprep.subr.mxu0 0.0
  %876 = vmatpush1.msra.mxu0 0.0
  %877 = vmatprep.subr.mxu0 0.0
  %878 = vmatpush1.msra.mxu0 0.0
  %879 = vmatprep.subr.mxu0 0.0
  %880 = vmatpush1.msra.mxu0 0.0
  %881 = vmatprep.subr.mxu0 0.0
  %882 = vmatpush1.msra.mxu0 0.0
  %883 = vmatprep.subr.mxu0 0.0
  %884 = vmatpush1.msra.mxu0 0.0
  %885 = vmatprep.subr.mxu0 0.0
  %886 = vmatpush1.msra.mxu0 0.0
  %887 = vmatprep.subr.mxu0 0.0
  %888 = vmatpush1.msra.mxu0 0.0
  %889 = vmatprep.subr.mxu0 0.0
  %890 = vmatpush1.msra.mxu0 0.0
  %891 = vmatprep.subr.mxu0 0.0
  %892 = vmatpush1.msra.mxu0 0.0
  %893 = vmatprep.subr.mxu0 0.0
  %894 = vmatpush1.msra.mxu0 0.0
  %895 = vmatprep.subr.mxu0 0.0
  %896 = vmatpush1.msra.mxu0 0.0
  %897 = vmatprep.subr.mxu0 0.0
  %898 = vmatpush1.msra.mxu0 0.0
  %899 = vmatprep.subr.mxu0 0.0
  %900 = vmatpush1.msra.mxu0 0.0
  %901 = vmatprep.subr.mxu0 0.0
  %902 = vmatpush1.msra.mxu0 0.0
  %903 = vmatprep.subr.mxu0 0.0
  %904 = vmatpush1.msra.mxu0 0.0
  %905 = vmatprep.subr.mxu0 0.0
  %906 = vmatpush1.msra.mxu0 0.0
  %907 = vmatprep.subr.mxu0 0.0
  %908 = vmatpush1.msra.mxu0 0.0
  %909 = vmatprep.subr.mxu0 0.0
  %910 = vmatpush1.msra.mxu0 0.0
  %911 = vmatprep.subr.mxu0 0.0
  %912 = vmatpush1.msra.mxu0 0.0
  %913 = vmatprep.subr.mxu0 0.0
  %914 = vmatpush1.msra.mxu0 0.0
  %915 = vmatprep.subr.mxu0 0.0
  %916 = vmatpush1.msra.mxu0 0.0
  %917 = vmatprep.subr.mxu0 0.0
  %918 = vmatpush1.msra.mxu0 0.0
  %919 = vmatprep.subr.mxu0 0.0
  %920 = vmatpush1.msra.mxu0 0.0
  %921 = vmatprep.mubr.f32.mxu0 0.0
  %v922 = vand.u32 %v470, 4294901760
  %923 = vmatmul.mubr.f32.gmra.mrb[0].mxu0 %v922
  %v924 = vpop.f32.mrb[0].mxu0
  %v925 = vadd.f32 %v614, %v924
  %v926 = vpop.f32.mrb[0].mxu0
  %927 = vmatprep.mubr.f32.mxu0 0.0
  %v928 = vand.u32 %v473, 4294901760
  %929 = vmatmul.mubr.f32.gmra.mrb[0].mxu0 %v928
  %v930 = vpop.f32.mrb[0].mxu0
  %v931 = vadd.f32 %v624, %v930
  %v932 = vpop.f32.mrb[0].mxu0
  %933 = vmatprep.mubr.f32.mxu0 0.0
  %v934 = vand.u32 %v476, 4294901760
  %935 = vmatmul.mubr.f32.gmra.mrb[0].mxu0 %v934
  %v936 = vpop.f32.mrb[0].mxu0
  %v937 = vadd.f32 %v634, %v936
  %v938 = vpop.f32.mrb[0].mxu0
  %939 = vmatprep.mubr.f32.mxu0 0.0
  %v940 = vand.u32 %v479, 4294901760
  %941 = vmatmul.mubr.f32.gmra.mrb[0].mxu0 %v940
  %v942 = vpop.f32.mrb[0].mxu0
  %v943 = vadd.f32 %v644, %v942
  %v944 = vpop.f32.mrb[0].mxu0
  %945 = vmatprep.mubr.f32.mxu0 0.0
  %v946 = vand.u32 %v482, 4294901760
  %947 = vmatmul.mubr.f32.gmra.mrb[0].mxu0 %v946
  %v948 = vpop.f32.mrb[0].mxu0
  %v949 = vadd.f32 %v654, %v948
  %v950 = vpop.f32.mrb[0].mxu0
  %951 = vmatprep.mubr.f32.mxu0 0.0
  %v952 = vand.u32 %v485, 4294901760
  %953 = vmatmul.mubr.f32.gmra.mrb[0].mxu0 %v952
  %v954 = vpop.f32.mrb[0].mxu0
  %v955 = vadd.f32 %v664, %v954
  %v956 = vpop.f32.mrb[0].mxu0
  %957 = vmatprep.mubr.f32.mxu0 0.0
  %v958 = vand.u32 %v488, 4294901760
  %959 = vmatmul.mubr.f32.gmra.mrb[0].mxu0 %v958
  %v960 = vpop.f32.mrb[0].mxu0
  %v961 = vadd.f32 %v674, %v960
  %v962 = vpop.f32.mrb[0].mxu0
  %963 = vmatprep.mubr.f32.mxu0 0.0
  %v964 = vand.u32 %v491, 4294901760
  %965 = vmatmul.mubr.f32.gmra.mrb[0].mxu0 %v964
  %v966 = vpop.f32.mrb[0].mxu0
  %v967 = vadd.f32 %v684, %v966
  %v968 = vpop.f32.mrb[0].mxu0
  %969 = vmatprep.mubr.f32.mxu0 0.0
  %v970 = vand.u32 %v494, 4294901760
  %971 = vmatmul.mubr.f32.gmra.mrb[0].mxu0 %v970
  %v972 = vpop.f32.mrb[0].mxu0
  %v973 = vadd.f32 %v694, %v972
  %v974 = vpop.f32.mrb[0].mxu0
  %975 = vmatprep.mubr.f32.mxu0 0.0
  %v976 = vand.u32 %v497, 4294901760
  %977 = vmatmul.mubr.f32.gmra.mrb[0].mxu0 %v976
  %v978 = vpop.f32.mrb[0].mxu0
  %v979 = vadd.f32 %v704, %v978
  %v980 = vpop.f32.mrb[0].mxu0
  %981 = vmatprep.mubr.f32.mxu0 0.0
  %v982 = vand.u32 %v500, 4294901760
  %983 = vmatmul.mubr.f32.gmra.mrb[0].mxu0 %v982
  %v984 = vpop.f32.mrb[0].mxu0
  %v985 = vadd.f32 %v714, %v984
  %v986 = vpop.f32.mrb[0].mxu0
  %987 = vmatprep.mubr.f32.mxu0 0.0
  %v988 = vand.u32 %v503, 4294901760
  %989 = vmatmul.mubr.f32.gmra.mrb[0].mxu0 %v988
  %v990 = vpop.f32.mrb[0].mxu0
  %v991 = vadd.f32 %v724, %v990
  %v992 = vpop.f32.mrb[0].mxu0
  %993 = vmatprep.mubr.f32.mxu0 0.0
  %v994 = vand.u32 %v506, 4294901760
  %995 = vmatmul.mubr.f32.gmra.mrb[0].mxu0 %v994
  %v996 = vpop.f32.mrb[0].mxu0
  %v997 = vadd.f32 %v734, %v996
  %v998 = vpop.f32.mrb[0].mxu0
  %999 = vmatprep.mubr.f32.mxu0 0.0
  %v1000 = vand.u32 %v509, 4294901760
  %1001 = vmatmul.mubr.f32.gmra.mrb[0].mxu0 %v1000
  %v1002 = vpop.f32.mrb[0].mxu0
  %v1003 = vadd.f32 %v744, %v1002
  %v1004 = vpop.f32.mrb[0].mxu0
  %1005 = vmatprep.mubr.f32.mxu0 0.0
  %v1006 = vand.u32 %v512, 4294901760
  %1007 = vmatmul.mubr.f32.gmra.mrb[0].mxu0 %v1006
  %v1008 = vpop.f32.mrb[0].mxu0
  %v1009 = vadd.f32 %v754, %v1008
  %v1010 = vpop.f32.mrb[0].mxu0
  %1011 = vmatprep.mubr.f32.mxu0 0.0
  %v1012 = vand.u32 %v515, 4294901760
  %1013 = vmatmul.mubr.f32.gmra.mrb[0].mxu0 %v1012
  %v1014 = vpop.f32.mrb[0].mxu0
  %v1015 = vadd.f32 %v764, %v1014
  %v1016 = vpop.f32.mrb[0].mxu0
  %1017 = vmatprep.mubr.f32.mxu0 0.0
  %v1018 = vand.u32 %v518, 4294901760
  %1019 = vmatmul.mubr.f32.gmra.mrb[0].mxu0 %v1018
  %v1020 = vpop.f32.mrb[0].mxu0
  %v1021 = vadd.f32 %v774, %v1020
  %v1022 = vpop.f32.mrb[0].mxu0
  %1023 = vmatprep.mubr.f32.mxu0 0.0
  %v1024 = vand.u32 %v521, 4294901760
  %1025 = vmatmul.mubr.f32.gmra.mrb[0].mxu0 %v1024
  %v1026 = vpop.f32.mrb[0].mxu0
  %v1027 = vadd.f32 %v784, %v1026
  %v1028 = vpop.f32.mrb[0].mxu0
  %1029 = vmatprep.mubr.f32.mxu0 0.0
  %v1030 = vand.u32 %v524, 4294901760
  %1031 = vmatmul.mubr.f32.gmra.mrb[0].mxu0 %v1030
  %v1032 = vpop.f32.mrb[0].mxu0
  %v1033 = vadd.f32 %v794, %v1032
  %v1034 = vpop.f32.mrb[0].mxu0
  %1035 = vmatprep.mubr.f32.mxu0 0.0
  %v1036 = vand.u32 %v527, 4294901760
  %1037 = vmatmul.mubr.f32.gmra.mrb[0].mxu0 %v1036
  %v1038 = vpop.f32.mrb[0].mxu0
  %v1039 = vadd.f32 %v804, %v1038
  %v1040 = vpop.f32.mrb[0].mxu0
  %1041 = vmatprep.mubr.f32.mxu0 0.0
  %v1042 = vand.u32 %v530, 4294901760
  %1043 = vmatmul.mubr.f32.gmra.mrb[0].mxu0 %v1042
  %v1044 = vpop.f32.mrb[0].mxu0
  %v1045 = vadd.f32 %v814, %v1044
  %v1046 = vpop.f32.mrb[0].mxu0
  %1047 = vmatprep.mubr.f32.mxu0 0.0
  %v1048 = vand.u32 %v533, 4294901760
  %1049 = vmatmul.mubr.f32.gmra.mrb[0].mxu0 %v1048
  %v1050 = vpop.f32.mrb[0].mxu0
  %v1051 = vadd.f32 %v824, %v1050
  %v1052 = vpop.f32.mrb[0].mxu0
  %1053 = vmatprep.mubr.f32.mxu0 0.0
  %v1054 = vand.u32 %v536, 4294901760
  %1055 = vmatmul.mubr.f32.gmra.mrb[0].mxu0 %v1054
  %v1056 = vpop.f32.mrb[0].mxu0
  %v1057 = vadd.f32 %v834, %v1056
  %v1058 = vpop.f32.mrb[0].mxu0
  %1059 = vdwg.mxu0
  %1060 = vmatprep.subr.mxu0 0.0
  %v1061 = vand.u32 %v457, 4294901760
  %v1062 = vsub.f32 %v457, %v1061
  %1063 = vmatpush1.msra.mxu0 %v1062
  %1064 = vmatprep.subr.mxu0 0.0
  %v1065 = vand.u32 %v458, 4294901760
  %v1066 = vsub.f32 %v458, %v1065
  %1067 = vmatpush1.msra.mxu0 %v1066
  %1068 = vmatprep.subr.mxu0 0.0
  %v1069 = vand.u32 %v459, 4294901760
  %v1070 = vsub.f32 %v459, %v1069
  %1071 = vmatpush1.msra.mxu0 %v1070
  %1072 = vmatprep.subr.mxu0 0.0
  %v1073 = vand.u32 %v460, 4294901760
  %v1074 = vsub.f32 %v460, %v1073
  %1075 = vmatpush1.msra.mxu0 %v1074
  %1076 = vmatprep.subr.mxu0 0.0
  %1077 = vmatpush1.msra.mxu0 0.0
  %1078 = vmatprep.subr.mxu0 0.0
  %1079 = vmatpush1.msra.mxu0 0.0
  %1080 = vmatprep.subr.mxu0 0.0
  %1081 = vmatpush1.msra.mxu0 0.0
  %1082 = vmatprep.subr.mxu0 0.0
  %1083 = vmatpush1.msra.mxu0 0.0
  %1084 = vmatprep.subr.mxu0 0.0
  %1085 = vmatpush1.msra.mxu0 0.0
  %1086 = vmatprep.subr.mxu0 0.0
  %1087 = vmatpush1.msra.mxu0 0.0
  %1088 = vmatprep.subr.mxu0 0.0
  %1089 = vmatpush1.msra.mxu0 0.0
  %1090 = vmatprep.subr.mxu0 0.0
  %1091 = vmatpush1.msra.mxu0 0.0
  %1092 = vmatprep.subr.mxu0 0.0
  %1093 = vmatpush1.msra.mxu0 0.0
  %1094 = vmatprep.subr.mxu0 0.0
  %1095 = vmatpush1.msra.mxu0 0.0
  %1096 = vmatprep.subr.mxu0 0.0
  %1097 = vmatpush1.msra.mxu0 0.0
  %1098 = vmatprep.subr.mxu0 0.0
  %1099 = vmatpush1.msra.mxu0 0.0
  %1100 = vmatprep.subr.mxu0 0.0
  %1101 = vmatpush1.msra.mxu0 0.0
  %1102 = vmatprep.subr.mxu0 0.0
  %1103 = vmatpush1.msra.mxu0 0.0
  %1104 = vmatprep.subr.mxu0 0.0
  %1105 = vmatpush1.msra.mxu0 0.0
  %1106 = vmatprep.subr.mxu0 0.0
  %1107 = vmatpush1.msra.mxu0 0.0
  %1108 = vmatprep.subr.mxu0 0.0
  %1109 = vmatpush1.msra.mxu0 0.0
  %1110 = vmatprep.subr.mxu0 0.0
  %1111 = vmatpush1.msra.mxu0 0.0
  %1112 = vmatprep.subr.mxu0 0.0
  %1113 = vmatpush1.msra.mxu0 0.0
  %1114 = vmatprep.subr.mxu0 0.0
  %1115 = vmatpush1.msra.mxu0 0.0
  %1116 = vmatprep.subr.mxu0 0.0
  %1117 = vmatpush1.msra.mxu0 0.0
  %1118 = vmatprep.subr.mxu0 0.0
  %1119 = vmatpush1.msra.mxu0 0.0
  %1120 = vmatprep.subr.mxu0 0.0
  %1121 = vmatpush1.msra.mxu0 0.0
  %1122 = vmatprep.subr.mxu0 0.0
  %1123 = vmatpush1.msra.mxu0 0.0
  %1124 = vmatprep.subr.mxu0 0.0
  %1125 = vmatpush1.msra.mxu0 0.0
  %1126 = vmatprep.subr.mxu0 0.0
  %1127 = vmatpush1.msra.mxu0 0.0
  %1128 = vmatprep.subr.mxu0 0.0
  %1129 = vmatpush1.msra.mxu0 0.0
  %1130 = vmatprep.subr.mxu0 0.0
  %1131 = vmatpush1.msra.mxu0 0.0
  %1132 = vmatprep.mubr.f32.mxu0 0.0
  %v1133 = vand.u32 %v470, 4294901760
  %v1134 = vsub.f32 %v470, %v1133
  %1135 = vmatmul.mubr.f32.gmra.mrb[0].mxu0 %v1134
  %v1136 = vpop.f32.mrb[0].mxu0
  %v1137 = vadd.f32 %v925, %v1136
  %v1138 = vpop.f32.mrb[0].mxu0
  %1139 = vmatprep.mubr.f32.mxu0 0.0
  %v1140 = vand.u32 %v473, 4294901760
  %v1141 = vsub.f32 %v473, %v1140
  %1142 = vmatmul.mubr.f32.gmra.mrb[0].mxu0 %v1141
  %v1143 = vpop.f32.mrb[0].mxu0
  %v1144 = vadd.f32 %v931, %v1143
  %v1145 = vpop.f32.mrb[0].mxu0
  %1146 = vmatprep.mubr.f32.mxu0 0.0
  %v1147 = vand.u32 %v476, 4294901760
  %v1148 = vsub.f32 %v476, %v1147
  %1149 = vmatmul.mubr.f32.gmra.mrb[0].mxu0 %v1148
  %v1150 = vpop.f32.mrb[0].mxu0
  %v1151 = vadd.f32 %v937, %v1150
  %v1152 = vpop.f32.mrb[0].mxu0
  %1153 = vmatprep.mubr.f32.mxu0 0.0
  %v1154 = vand.u32 %v479, 4294901760
  %v1155 = vsub.f32 %v479, %v1154
  %1156 = vmatmul.mubr.f32.gmra.mrb[0].mxu0 %v1155
  %v1157 = vpop.f32.mrb[0].mxu0
  %v1158 = vadd.f32 %v943, %v1157
  %v1159 = vpop.f32.mrb[0].mxu0
  %1160 = vmatprep.mubr.f32.mxu0 0.0
  %v1161 = vand.u32 %v482, 4294901760
  %v1162 = vsub.f32 %v482, %v1161
  %1163 = vmatmul.mubr.f32.gmra.mrb[0].mxu0 %v1162
  %v1164 = vpop.f32.mrb[0].mxu0
  %v1165 = vadd.f32 %v949, %v1164
  %v1166 = vpop.f32.mrb[0].mxu0
  %1167 = vmatprep.mubr.f32.mxu0 0.0
  %v1168 = vand.u32 %v485, 4294901760
  %v1169 = vsub.f32 %v485, %v1168
  %1170 = vmatmul.mubr.f32.gmra.mrb[0].mxu0 %v1169
  %v1171 = vpop.f32.mrb[0].mxu0
  %v1172 = vadd.f32 %v955, %v1171
  %v1173 = vpop.f32.mrb[0].mxu0
  %1174 = vmatprep.mubr.f32.mxu0 0.0
  %v1175 = vand.u32 %v488, 4294901760
  %v1176 = vsub.f32 %v488, %v1175
  %1177 = vmatmul.mubr.f32.gmra.mrb[0].mxu0 %v1176
  %v1178 = vpop.f32.mrb[0].mxu0
  %v1179 = vadd.f32 %v961, %v1178
  %v1180 = vpop.f32.mrb[0].mxu0
  %1181 = vmatprep.mubr.f32.mxu0 0.0
  %v1182 = vand.u32 %v491, 4294901760
  %v1183 = vsub.f32 %v491, %v1182
  %1184 = vmatmul.mubr.f32.gmra.mrb[0].mxu0 %v1183
  %v1185 = vpop.f32.mrb[0].mxu0
  %v1186 = vadd.f32 %v967, %v1185
  %v1187 = vpop.f32.mrb[0].mxu0
  %1188 = vmatprep.mubr.f32.mxu0 0.0
  %v1189 = vand.u32 %v494, 4294901760
  %v1190 = vsub.f32 %v494, %v1189
  %1191 = vmatmul.mubr.f32.gmra.mrb[0].mxu0 %v1190
  %v1192 = vpop.f32.mrb[0].mxu0
  %v1193 = vadd.f32 %v973, %v1192
  %v1194 = vpop.f32.mrb[0].mxu0
  %1195 = vmatprep.mubr.f32.mxu0 0.0
  %v1196 = vand.u32 %v497, 4294901760
  %v1197 = vsub.f32 %v497, %v1196
  %1198 = vmatmul.mubr.f32.gmra.mrb[0].mxu0 %v1197
  %v1199 = vpop.f32.mrb[0].mxu0
  %v1200 = vadd.f32 %v979, %v1199
  %v1201 = vpop.f32.mrb[0].mxu0
  %1202 = vmatprep.mubr.f32.mxu0 0.0
  %v1203 = vand.u32 %v500, 4294901760
  %v1204 = vsub.f32 %v500, %v1203
  %1205 = vmatmul.mubr.f32.gmra.mrb[0].mxu0 %v1204
  %v1206 = vpop.f32.mrb[0].mxu0
  %v1207 = vadd.f32 %v985, %v1206
  %v1208 = vpop.f32.mrb[0].mxu0
  %1209 = vmatprep.mubr.f32.mxu0 0.0
  %v1210 = vand.u32 %v503, 4294901760
  %v1211 = vsub.f32 %v503, %v1210
  %1212 = vmatmul.mubr.f32.gmra.mrb[0].mxu0 %v1211
  %v1213 = vpop.f32.mrb[0].mxu0
  %v1214 = vadd.f32 %v991, %v1213
  %v1215 = vpop.f32.mrb[0].mxu0
  %1216 = vmatprep.mubr.f32.mxu0 0.0
  %v1217 = vand.u32 %v506, 4294901760
  %v1218 = vsub.f32 %v506, %v1217
  %1219 = vmatmul.mubr.f32.gmra.mrb[0].mxu0 %v1218
  %v1220 = vpop.f32.mrb[0].mxu0
  %v1221 = vadd.f32 %v997, %v1220
  %v1222 = vpop.f32.mrb[0].mxu0
  %1223 = vmatprep.mubr.f32.mxu0 0.0
  %v1224 = vand.u32 %v509, 4294901760
  %v1225 = vsub.f32 %v509, %v1224
  %1226 = vmatmul.mubr.f32.gmra.mrb[0].mxu0 %v1225
  %v1227 = vpop.f32.mrb[0].mxu0
  %v1228 = vadd.f32 %v1003, %v1227
  %v1229 = vpop.f32.mrb[0].mxu0
  %1230 = vmatprep.mubr.f32.mxu0 0.0
  %v1231 = vand.u32 %v512, 4294901760
  %v1232 = vsub.f32 %v512, %v1231
  %1233 = vmatmul.mubr.f32.gmra.mrb[0].mxu0 %v1232
  %v1234 = vpop.f32.mrb[0].mxu0
  %v1235 = vadd.f32 %v1009, %v1234
  %v1236 = vpop.f32.mrb[0].mxu0
  %1237 = vmatprep.mubr.f32.mxu0 0.0
  %v1238 = vand.u32 %v515, 4294901760
  %v1239 = vsub.f32 %v515, %v1238
  %1240 = vmatmul.mubr.f32.gmra.mrb[0].mxu0 %v1239
  %v1241 = vpop.f32.mrb[0].mxu0
  %v1242 = vadd.f32 %v1015, %v1241
  %v1243 = vpop.f32.mrb[0].mxu0
  %1244 = vmatprep.mubr.f32.mxu0 0.0
  %v1245 = vand.u32 %v518, 4294901760
  %v1246 = vsub.f32 %v518, %v1245
  %1247 = vmatmul.mubr.f32.gmra.mrb[0].mxu0 %v1246
  %v1248 = vpop.f32.mrb[0].mxu0
  %v1249 = vadd.f32 %v1021, %v1248
  %v1250 = vpop.f32.mrb[0].mxu0
  %1251 = vmatprep.mubr.f32.mxu0 0.0
  %v1252 = vand.u32 %v521, 4294901760
  %v1253 = vsub.f32 %v521, %v1252
  %1254 = vmatmul.mubr.f32.gmra.mrb[0].mxu0 %v1253
  %v1255 = vpop.f32.mrb[0].mxu0
  %v1256 = vadd.f32 %v1027, %v1255
  %v1257 = vpop.f32.mrb[0].mxu0
  %1258 = vmatprep.mubr.f32.mxu0 0.0
  %v1259 = vand.u32 %v524, 4294901760
  %v1260 = vsub.f32 %v524, %v1259
  %1261 = vmatmul.mubr.f32.gmra.mrb[0].mxu0 %v1260
  %v1262 = vpop.f32.mrb[0].mxu0
  %v1263 = vadd.f32 %v1033, %v1262
  %v1264 = vpop.f32.mrb[0].mxu0
  %1265 = vmatprep.mubr.f32.mxu0 0.0
  %v1266 = vand.u32 %v527, 4294901760
  %v1267 = vsub.f32 %v527, %v1266
  %1268 = vmatmul.mubr.f32.gmra.mrb[0].mxu0 %v1267
  %v1269 = vpop.f32.mrb[0].mxu0
  %v1270 = vadd.f32 %v1039, %v1269
  %v1271 = vpop.f32.mrb[0].mxu0
  %1272 = vmatprep.mubr.f32.mxu0 0.0
  %v1273 = vand.u32 %v530, 4294901760
  %v1274 = vsub.f32 %v530, %v1273
  %1275 = vmatmul.mubr.f32.gmra.mrb[0].mxu0 %v1274
  %v1276 = vpop.f32.mrb[0].mxu0
  %v1277 = vadd.f32 %v1045, %v1276
  %v1278 = vpop.f32.mrb[0].mxu0
  %1279 = vmatprep.mubr.f32.mxu0 0.0
  %v1280 = vand.u32 %v533, 4294901760
  %v1281 = vsub.f32 %v533, %v1280
  %1282 = vmatmul.mubr.f32.gmra.mrb[0].mxu0 %v1281
  %v1283 = vpop.f32.mrb[0].mxu0
  %v1284 = vadd.f32 %v1051, %v1283
  %v1285 = vpop.f32.mrb[0].mxu0
  %1286 = vmatprep.mubr.f32.mxu0 0.0
  %v1287 = vand.u32 %v536, 4294901760
  %v1288 = vsub.f32 %v536, %v1287
  %1289 = vmatmul.mubr.f32.gmra.mrb[0].mxu0 %v1288
  %v1290 = vpop.f32.mrb[0].mxu0
  %v1291 = vadd.f32 %v1057, %v1290
  %v1292 = vpop.f32.mrb[0].mxu0
  %1293 = vdwg.mxu0
  %1294 = vmatprep.subr.mxu0 0.0
  %v1295 = vand.u32 %v457, 4294901760
  %1296 = vmatpush1.msra.mxu0 %v1295
  %1297 = vmatprep.subr.mxu0 0.0
  %v1298 = vand.u32 %v458, 4294901760
  %1299 = vmatpush1.msra.mxu0 %v1298
  %1300 = vmatprep.subr.mxu0 0.0
  %v1301 = vand.u32 %v459, 4294901760
  %1302 = vmatpush1.msra.mxu0 %v1301
  %1303 = vmatprep.subr.mxu0 0.0
  %v1304 = vand.u32 %v460, 4294901760
  %1305 = vmatpush1.msra.mxu0 %v1304
  %1306 = vmatprep.subr.mxu0 0.0
  %1307 = vmatpush1.msra.mxu0 0.0
  %1308 = vmatprep.subr.mxu0 0.0
  %1309 = vmatpush1.msra.mxu0 0.0
  %1310 = vmatprep.subr.mxu0 0.0
  %1311 = vmatpush1.msra.mxu0 0.0
  %1312 = vmatprep.subr.mxu0 0.0
  %1313 = vmatpush1.msra.mxu0 0.0
  %1314 = vmatprep.subr.mxu0 0.0
  %1315 = vmatpush1.msra.mxu0 0.0
  %1316 = vmatprep.subr.mxu0 0.0
  %1317 = vmatpush1.msra.mxu0 0.0
  %1318 = vmatprep.subr.mxu0 0.0
  %1319 = vmatpush1.msra.mxu0 0.0
  %1320 = vmatprep.subr.mxu0 0.0
  %1321 = vmatpush1.msra.mxu0 0.0
  %1322 = vmatprep.subr.mxu0 0.0
  %1323 = vmatpush1.msra.mxu0 0.0
  %1324 = vmatprep.subr.mxu0 0.0
  %1325 = vmatpush1.msra.mxu0 0.0
  %1326 = vmatprep.subr.mxu0 0.0
  %1327 = vmatpush1.msra.mxu0 0.0
  %1328 = vmatprep.subr.mxu0 0.0
  %1329 = vmatpush1.msra.mxu0 0.0
  %1330 = vmatprep.subr.mxu0 0.0
  %1331 = vmatpush1.msra.mxu0 0.0
  %1332 = vmatprep.subr.mxu0 0.0
  %1333 = vmatpush1.msra.mxu0 0.0
  %1334 = vmatprep.subr.mxu0 0.0
  %1335 = vmatpush1.msra.mxu0 0.0
  %1336 = vmatprep.subr.mxu0 0.0
  %1337 = vmatpush1.msra.mxu0 0.0
  %1338 = vmatprep.subr.mxu0 0.0
  %1339 = vmatpush1.msra.mxu0 0.0
  %1340 = vmatprep.subr.mxu0 0.0
  %1341 = vmatpush1.msra.mxu0 0.0
  %1342 = vmatprep.subr.mxu0 0.0
  %1343 = vmatpush1.msra.mxu0 0.0
  %1344 = vmatprep.subr.mxu0 0.0
  %1345 = vmatpush1.msra.mxu0 0.0
  %1346 = vmatprep.subr.mxu0 0.0
  %1347 = vmatpush1.msra.mxu0 0.0
  %1348 = vmatprep.subr.mxu0 0.0
  %1349 = vmatpush1.msra.mxu0 0.0
  %1350 = vmatprep.subr.mxu0 0.0
  %1351 = vmatpush1.msra.mxu0 0.0
  %1352 = vmatprep.subr.mxu0 0.0
  %1353 = vmatpush1.msra.mxu0 0.0
  %1354 = vmatprep.subr.mxu0 0.0
  %1355 = vmatpush1.msra.mxu0 0.0
  %1356 = vmatprep.subr.mxu0 0.0
  %1357 = vmatpush1.msra.mxu0 0.0
  %1358 = vmatprep.subr.mxu0 0.0
  %1359 = vmatpush1.msra.mxu0 0.0
  %1360 = vmatprep.subr.mxu0 0.0
  %1361 = vmatpush1.msra.mxu0 0.0
  %1362 = vmatprep.mubr.f32.mxu0 0.0
  %v1363 = vand.u32 %v470, 4294901760
  %v1364 = vsub.f32 %v470, %v1363
  %v1365 = vand.u32 %v1364, 4294901760
  %1366 = vmatmul.mubr.f32.gmra.mrb[0].mxu0 %v1365
  %v1367 = vpop.f32.mrb[0].mxu0
  %v1368 = vadd.f32 %v1137, %v1367
  %v1369 = vpop.f32.mrb[0].mxu0
  %1370 = vmatprep.mubr.f32.mxu0 0.0
  %v1371 = vand.u32 %v473, 4294901760
  %v1372 = vsub.f32 %v473, %v1371
  %v1373 = vand.u32 %v1372, 4294901760
  %1374 = vmatmul.mubr.f32.gmra.mrb[0].mxu0 %v1373
  %v1375 = vpop.f32.mrb[0].mxu0
  %v1376 = vadd.f32 %v1144, %v1375
  %v1377 = vpop.f32.mrb[0].mxu0
  %1378 = vmatprep.mubr.f32.mxu0 0.0
  %v1379 = vand.u32 %v476, 4294901760
  %v1380 = vsub.f32 %v476, %v1379
  %v1381 = vand.u32 %v1380, 4294901760
  %1382 = vmatmul.mubr.f32.gmra.mrb[0].mxu0 %v1381
  %v1383 = vpop.f32.mrb[0].mxu0
  %v1384 = vadd.f32 %v1151, %v1383
  %v1385 = vpop.f32.mrb[0].mxu0
  %1386 = vmatprep.mubr.f32.mxu0 0.0
  %v1387 = vand.u32 %v479, 4294901760
  %v1388 = vsub.f32 %v479, %v1387
  %v1389 = vand.u32 %v1388, 4294901760
  %1390 = vmatmul.mubr.f32.gmra.mrb[0].mxu0 %v1389
  %v1391 = vpop.f32.mrb[0].mxu0
  %v1392 = vadd.f32 %v1158, %v1391
  %v1393 = vpop.f32.mrb[0].mxu0
  %1394 = vmatprep.mubr.f32.mxu0 0.0
  %v1395 = vand.u32 %v482, 4294901760
  %v1396 = vsub.f32 %v482, %v1395
  %v1397 = vand.u32 %v1396, 4294901760
  %1398 = vmatmul.mubr.f32.gmra.mrb[0].mxu0 %v1397
  %v1399 = vpop.f32.mrb[0].mxu0
  %v1400 = vadd.f32 %v1165, %v1399
  %v1401 = vpop.f32.mrb[0].mxu0
  %1402 = vmatprep.mubr.f32.mxu0 0.0
  %v1403 = vand.u32 %v485, 4294901760
  %v1404 = vsub.f32 %v485, %v1403
  %v1405 = vand.u32 %v1404, 4294901760
  %1406 = vmatmul.mubr.f32.gmra.mrb[0].mxu0 %v1405
  %v1407 = vpop.f32.mrb[0].mxu0
  %v1408 = vadd.f32 %v1172, %v1407
  %v1409 = vpop.f32.mrb[0].mxu0
  %1410 = vmatprep.mubr.f32.mxu0 0.0
  %v1411 = vand.u32 %v488, 4294901760
  %v1412 = vsub.f32 %v488, %v1411
  %v1413 = vand.u32 %v1412, 4294901760
  %1414 = vmatmul.mubr.f32.gmra.mrb[0].mxu0 %v1413
  %v1415 = vpop.f32.mrb[0].mxu0
  %v1416 = vadd.f32 %v1179, %v1415
  %v1417 = vpop.f32.mrb[0].mxu0
  %1418 = vmatprep.mubr.f32.mxu0 0.0
  %v1419 = vand.u32 %v491, 4294901760
  %v1420 = vsub.f32 %v491, %v1419
  %v1421 = vand.u32 %v1420, 4294901760
  %1422 = vmatmul.mubr.f32.gmra.mrb[0].mxu0 %v1421
  %v1423 = vpop.f32.mrb[0].mxu0
  %v1424 = vadd.f32 %v1186, %v1423
  %v1425 = vpop.f32.mrb[0].mxu0
  %1426 = vmatprep.mubr.f32.mxu0 0.0
  %v1427 = vand.u32 %v494, 4294901760
  %v1428 = vsub.f32 %v494, %v1427
  %v1429 = vand.u32 %v1428, 4294901760
  %1430 = vmatmul.mubr.f32.gmra.mrb[0].mxu0 %v1429
  %v1431 = vpop.f32.mrb[0].mxu0
  %v1432 = vadd.f32 %v1193, %v1431
  %v1433 = vpop.f32.mrb[0].mxu0
  %1434 = vmatprep.mubr.f32.mxu0 0.0
  %v1435 = vand.u32 %v497, 4294901760
  %v1436 = vsub.f32 %v497, %v1435
  %v1437 = vand.u32 %v1436, 4294901760
  %1438 = vmatmul.mubr.f32.gmra.mrb[0].mxu0 %v1437
  %v1439 = vpop.f32.mrb[0].mxu0
  %v1440 = vadd.f32 %v1200, %v1439
  %v1441 = vpop.f32.mrb[0].mxu0
  %1442 = vmatprep.mubr.f32.mxu0 0.0
  %v1443 = vand.u32 %v500, 4294901760
  %v1444 = vsub.f32 %v500, %v1443
  %v1445 = vand.u32 %v1444, 4294901760
  %1446 = vmatmul.mubr.f32.gmra.mrb[0].mxu0 %v1445
  %v1447 = vpop.f32.mrb[0].mxu0
  %v1448 = vadd.f32 %v1207, %v1447
  %v1449 = vpop.f32.mrb[0].mxu0
  %1450 = vmatprep.mubr.f32.mxu0 0.0
  %v1451 = vand.u32 %v503, 4294901760
  %v1452 = vsub.f32 %v503, %v1451
  %v1453 = vand.u32 %v1452, 4294901760
  %1454 = vmatmul.mubr.f32.gmra.mrb[0].mxu0 %v1453
  %v1455 = vpop.f32.mrb[0].mxu0
  %v1456 = vadd.f32 %v1214, %v1455
  %v1457 = vpop.f32.mrb[0].mxu0
  %1458 = vmatprep.mubr.f32.mxu0 0.0
  %v1459 = vand.u32 %v506, 4294901760
  %v1460 = vsub.f32 %v506, %v1459
  %v1461 = vand.u32 %v1460, 4294901760
  %1462 = vmatmul.mubr.f32.gmra.mrb[0].mxu0 %v1461
  %v1463 = vpop.f32.mrb[0].mxu0
  %v1464 = vadd.f32 %v1221, %v1463
  %v1465 = vpop.f32.mrb[0].mxu0
  %1466 = vmatprep.mubr.f32.mxu0 0.0
  %v1467 = vand.u32 %v509, 4294901760
  %v1468 = vsub.f32 %v509, %v1467
  %v1469 = vand.u32 %v1468, 4294901760
  %1470 = vmatmul.mubr.f32.gmra.mrb[0].mxu0 %v1469
  %v1471 = vpop.f32.mrb[0].mxu0
  %v1472 = vadd.f32 %v1228, %v1471
  %v1473 = vpop.f32.mrb[0].mxu0
  %1474 = vmatprep.mubr.f32.mxu0 0.0
  %v1475 = vand.u32 %v512, 4294901760
  %v1476 = vsub.f32 %v512, %v1475
  %v1477 = vand.u32 %v1476, 4294901760
  %1478 = vmatmul.mubr.f32.gmra.mrb[0].mxu0 %v1477
  %v1479 = vpop.f32.mrb[0].mxu0
  %v1480 = vadd.f32 %v1235, %v1479
  %v1481 = vpop.f32.mrb[0].mxu0
  %1482 = vmatprep.mubr.f32.mxu0 0.0
  %v1483 = vand.u32 %v515, 4294901760
  %v1484 = vsub.f32 %v515, %v1483
  %v1485 = vand.u32 %v1484, 4294901760
  %1486 = vmatmul.mubr.f32.gmra.mrb[0].mxu0 %v1485
  %v1487 = vpop.f32.mrb[0].mxu0
  %v1488 = vadd.f32 %v1242, %v1487
  %v1489 = vpop.f32.mrb[0].mxu0
  %1490 = vmatprep.mubr.f32.mxu0 0.0
  %v1491 = vand.u32 %v518, 4294901760
  %v1492 = vsub.f32 %v518, %v1491
  %v1493 = vand.u32 %v1492, 4294901760
  %1494 = vmatmul.mubr.f32.gmra.mrb[0].mxu0 %v1493
  %v1495 = vpop.f32.mrb[0].mxu0
  %v1496 = vadd.f32 %v1249, %v1495
  %v1497 = vpop.f32.mrb[0].mxu0
  %1498 = vmatprep.mubr.f32.mxu0 0.0
  %v1499 = vand.u32 %v521, 4294901760
  %v1500 = vsub.f32 %v521, %v1499
  %v1501 = vand.u32 %v1500, 4294901760
  %1502 = vmatmul.mubr.f32.gmra.mrb[0].mxu0 %v1501
  %v1503 = vpop.f32.mrb[0].mxu0
  %v1504 = vadd.f32 %v1256, %v1503
  %v1505 = vpop.f32.mrb[0].mxu0
  %1506 = vmatprep.mubr.f32.mxu0 0.0
  %v1507 = vand.u32 %v524, 4294901760
  %v1508 = vsub.f32 %v524, %v1507
  %v1509 = vand.u32 %v1508, 4294901760
  %1510 = vmatmul.mubr.f32.gmra.mrb[0].mxu0 %v1509
  %v1511 = vpop.f32.mrb[0].mxu0
  %v1512 = vadd.f32 %v1263, %v1511
  %v1513 = vpop.f32.mrb[0].mxu0
  %1514 = vmatprep.mubr.f32.mxu0 0.0
  %v1515 = vand.u32 %v527, 4294901760
  %v1516 = vsub.f32 %v527, %v1515
  %v1517 = vand.u32 %v1516, 4294901760
  %1518 = vmatmul.mubr.f32.gmra.mrb[0].mxu0 %v1517
  %v1519 = vpop.f32.mrb[0].mxu0
  %v1520 = vadd.f32 %v1270, %v1519
  %v1521 = vpop.f32.mrb[0].mxu0
  %1522 = vmatprep.mubr.f32.mxu0 0.0
  %v1523 = vand.u32 %v530, 4294901760
  %v1524 = vsub.f32 %v530, %v1523
  %v1525 = vand.u32 %v1524, 4294901760
  %1526 = vmatmul.mubr.f32.gmra.mrb[0].mxu0 %v1525
  %v1527 = vpop.f32.mrb[0].mxu0
  %v1528 = vadd.f32 %v1277, %v1527
  %v1529 = vpop.f32.mrb[0].mxu0
  %1530 = vmatprep.mubr.f32.mxu0 0.0
  %v1531 = vand.u32 %v533, 4294901760
  %v1532 = vsub.f32 %v533, %v1531
  %v1533 = vand.u32 %v1532, 4294901760
  %1534 = vmatmul.mubr.f32.gmra.mrb[0].mxu0 %v1533
  %v1535 = vpop.f32.mrb[0].mxu0
  %v1536 = vadd.f32 %v1284, %v1535
  %v1537 = vpop.f32.mrb[0].mxu0
  %1538 = vmatprep.mubr.f32.mxu0 0.0
  %v1539 = vand.u32 %v536, 4294901760
  %v1540 = vsub.f32 %v536, %v1539
  %v1541 = vand.u32 %v1540, 4294901760
  %1542 = vmatmul.mubr.f32.gmra.mrb[0].mxu0 %v1541
  %v1543 = vpop.f32.mrb[0].mxu0
  %v1544 = vadd.f32 %v1291, %v1543
  %v1545 = vpop.f32.mrb[0].mxu0
  %1546 = vdwg.mxu0
  %1547 = vmatprep.subr.mxu0 0.0
  %v1548 = vand.u32 %v457, 4294901760
  %v1549 = vsub.f32 %v457, %v1548
  %v1550 = vand.u32 %v1549, 4294901760
  %1551 = vmatpush1.msra.mxu0 %v1550
  %1552 = vmatprep.subr.mxu0 0.0
  %v1553 = vand.u32 %v458, 4294901760
  %v1554 = vsub.f32 %v458, %v1553
  %v1555 = vand.u32 %v1554, 4294901760
  %1556 = vmatpush1.msra.mxu0 %v1555
  %1557 = vmatprep.subr.mxu0 0.0
  %v1558 = vand.u32 %v459, 4294901760
  %v1559 = vsub.f32 %v459, %v1558
  %v1560 = vand.u32 %v1559, 4294901760
  %1561 = vmatpush1.msra.mxu0 %v1560
  %1562 = vmatprep.subr.mxu0 0.0
  %v1563 = vand.u32 %v460, 4294901760
  %v1564 = vsub.f32 %v460, %v1563
  %v1565 = vand.u32 %v1564, 4294901760
  %1566 = vmatpush1.msra.mxu0 %v1565
  %1567 = vmatprep.subr.mxu0 0.0
  %1568 = vmatpush1.msra.mxu0 0.0
  %1569 = vmatprep.subr.mxu0 0.0
  %1570 = vmatpush1.msra.mxu0 0.0
  %1571 = vmatprep.subr.mxu0 0.0
  %1572 = vmatpush1.msra.mxu0 0.0
  %1573 = vmatprep.subr.mxu0 0.0
  %1574 = vmatpush1.msra.mxu0 0.0
  %1575 = vmatprep.subr.mxu0 0.0
  %1576 = vmatpush1.msra.mxu0 0.0
  %1577 = vmatprep.subr.mxu0 0.0
  %1578 = vmatpush1.msra.mxu0 0.0
  %1579 = vmatprep.subr.mxu0 0.0
  %1580 = vmatpush1.msra.mxu0 0.0
  %1581 = vmatprep.subr.mxu0 0.0
  %1582 = vmatpush1.msra.mxu0 0.0
  %1583 = vmatprep.subr.mxu0 0.0
  %1584 = vmatpush1.msra.mxu0 0.0
  %1585 = vmatprep.subr.mxu0 0.0
  %1586 = vmatpush1.msra.mxu0 0.0
  %1587 = vmatprep.subr.mxu0 0.0
  %1588 = vmatpush1.msra.mxu0 0.0
  %1589 = vmatprep.subr.mxu0 0.0
  %1590 = vmatpush1.msra.mxu0 0.0
  %1591 = vmatprep.subr.mxu0 0.0
  %1592 = vmatpush1.msra.mxu0 0.0
  %1593 = vmatprep.subr.mxu0 0.0
  %1594 = vmatpush1.msra.mxu0 0.0
  %1595 = vmatprep.subr.mxu0 0.0
  %1596 = vmatpush1.msra.mxu0 0.0
  %1597 = vmatprep.subr.mxu0 0.0
  %1598 = vmatpush1.msra.mxu0 0.0
  %1599 = vmatprep.subr.mxu0 0.0
  %1600 = vmatpush1.msra.mxu0 0.0
  %1601 = vmatprep.subr.mxu0 0.0
  %1602 = vmatpush1.msra.mxu0 0.0
  %1603 = vmatprep.subr.mxu0 0.0
  %1604 = vmatpush1.msra.mxu0 0.0
  %1605 = vmatprep.subr.mxu0 0.0
  %1606 = vmatpush1.msra.mxu0 0.0
  %1607 = vmatprep.subr.mxu0 0.0
  %1608 = vmatpush1.msra.mxu0 0.0
  %1609 = vmatprep.subr.mxu0 0.0
  %1610 = vmatpush1.msra.mxu0 0.0
  %1611 = vmatprep.subr.mxu0 0.0
  %1612 = vmatpush1.msra.mxu0 0.0
  %1613 = vmatprep.subr.mxu0 0.0
  %1614 = vmatpush1.msra.mxu0 0.0
  %1615 = vmatprep.subr.mxu0 0.0
  %1616 = vmatpush1.msra.mxu0 0.0
  %1617 = vmatprep.subr.mxu0 0.0
  %1618 = vmatpush1.msra.mxu0 0.0
  %1619 = vmatprep.subr.mxu0 0.0
  %1620 = vmatpush1.msra.mxu0 0.0
  %1621 = vmatprep.subr.mxu0 0.0
  %1622 = vmatpush1.msra.mxu0 0.0
  %1623 = vmatprep.mubr.f32.mxu0 0.0
  %v1624 = vand.u32 %v470, 4294901760
  %1625 = vmatmul.mubr.f32.gmra.mrb[0].mxu0 %v1624
  %v1626 = vpop.f32.mrb[0].mxu0
  %v1627 = vadd.f32 %v1368, %v1626
  %v1628 = vpop.f32.mrb[0].mxu0
  %1629 = vmatprep.mubr.f32.mxu0 0.0
  %v1630 = vand.u32 %v473, 4294901760
  %1631 = vmatmul.mubr.f32.gmra.mrb[0].mxu0 %v1630
  %v1632 = vpop.f32.mrb[0].mxu0
  %v1633 = vadd.f32 %v1376, %v1632
  %v1634 = vpop.f32.mrb[0].mxu0
  %1635 = vmatprep.mubr.f32.mxu0 0.0
  %v1636 = vand.u32 %v476, 4294901760
  %1637 = vmatmul.mubr.f32.gmra.mrb[0].mxu0 %v1636
  %v1638 = vpop.f32.mrb[0].mxu0
  %v1639 = vadd.f32 %v1384, %v1638
  %v1640 = vpop.f32.mrb[0].mxu0
  %1641 = vmatprep.mubr.f32.mxu0 0.0
  %v1642 = vand.u32 %v479, 4294901760
  %1643 = vmatmul.mubr.f32.gmra.mrb[0].mxu0 %v1642
  %v1644 = vpop.f32.mrb[0].mxu0
  %v1645 = vadd.f32 %v1392, %v1644
  %v1646 = vpop.f32.mrb[0].mxu0
  %1647 = vmatprep.mubr.f32.mxu0 0.0
  %v1648 = vand.u32 %v482, 4294901760
  %1649 = vmatmul.mubr.f32.gmra.mrb[0].mxu0 %v1648
  %v1650 = vpop.f32.mrb[0].mxu0
  %v1651 = vadd.f32 %v1400, %v1650
  %v1652 = vpop.f32.mrb[0].mxu0
  %1653 = vmatprep.mubr.f32.mxu0 0.0
  %v1654 = vand.u32 %v485, 4294901760
  %1655 = vmatmul.mubr.f32.gmra.mrb[0].mxu0 %v1654
  %v1656 = vpop.f32.mrb[0].mxu0
  %v1657 = vadd.f32 %v1408, %v1656
  %v1658 = vpop.f32.mrb[0].mxu0
  %1659 = vmatprep.mubr.f32.mxu0 0.0
  %v1660 = vand.u32 %v488, 4294901760
  %1661 = vmatmul.mubr.f32.gmra.mrb[0].mxu0 %v1660
  %v1662 = vpop.f32.mrb[0].mxu0
  %v1663 = vadd.f32 %v1416, %v1662
  %v1664 = vpop.f32.mrb[0].mxu0
  %1665 = vmatprep.mubr.f32.mxu0 0.0
  %v1666 = vand.u32 %v491, 4294901760
  %1667 = vmatmul.mubr.f32.gmra.mrb[0].mxu0 %v1666
  %v1668 = vpop.f32.mrb[0].mxu0
  %v1669 = vadd.f32 %v1424, %v1668
  %v1670 = vpop.f32.mrb[0].mxu0
  %1671 = vmatprep.mubr.f32.mxu0 0.0
  %v1672 = vand.u32 %v494, 4294901760
  %1673 = vmatmul.mubr.f32.gmra.mrb[0].mxu0 %v1672
  %v1674 = vpop.f32.mrb[0].mxu0
  %v1675 = vadd.f32 %v1432, %v1674
  %v1676 = vpop.f32.mrb[0].mxu0
  %1677 = vmatprep.mubr.f32.mxu0 0.0
  %v1678 = vand.u32 %v497, 4294901760
  %1679 = vmatmul.mubr.f32.gmra.mrb[0].mxu0 %v1678
  %v1680 = vpop.f32.mrb[0].mxu0
  %v1681 = vadd.f32 %v1440, %v1680
  %v1682 = vpop.f32.mrb[0].mxu0
  %1683 = vmatprep.mubr.f32.mxu0 0.0
  %v1684 = vand.u32 %v500, 4294901760
  %1685 = vmatmul.mubr.f32.gmra.mrb[0].mxu0 %v1684
  %v1686 = vpop.f32.mrb[0].mxu0
  %v1687 = vadd.f32 %v1448, %v1686
  %v1688 = vpop.f32.mrb[0].mxu0
  %1689 = vmatprep.mubr.f32.mxu0 0.0
  %v1690 = vand.u32 %v503, 4294901760
  %1691 = vmatmul.mubr.f32.gmra.mrb[0].mxu0 %v1690
  %v1692 = vpop.f32.mrb[0].mxu0
  %v1693 = vadd.f32 %v1456, %v1692
  %v1694 = vpop.f32.mrb[0].mxu0
  %1695 = vmatprep.mubr.f32.mxu0 0.0
  %v1696 = vand.u32 %v506, 4294901760
  %1697 = vmatmul.mubr.f32.gmra.mrb[0].mxu0 %v1696
  %v1698 = vpop.f32.mrb[0].mxu0
  %v1699 = vadd.f32 %v1464, %v1698
  %v1700 = vpop.f32.mrb[0].mxu0
  %1701 = vmatprep.mubr.f32.mxu0 0.0
  %v1702 = vand.u32 %v509, 4294901760
  %1703 = vmatmul.mubr.f32.gmra.mrb[0].mxu0 %v1702
  %v1704 = vpop.f32.mrb[0].mxu0
  %v1705 = vadd.f32 %v1472, %v1704
  %v1706 = vpop.f32.mrb[0].mxu0
  %1707 = vmatprep.mubr.f32.mxu0 0.0
  %v1708 = vand.u32 %v512, 4294901760
  %1709 = vmatmul.mubr.f32.gmra.mrb[0].mxu0 %v1708
  %v1710 = vpop.f32.mrb[0].mxu0
  %v1711 = vadd.f32 %v1480, %v1710
  %v1712 = vpop.f32.mrb[0].mxu0
  %1713 = vmatprep.mubr.f32.mxu0 0.0
  %v1714 = vand.u32 %v515, 4294901760
  %1715 = vmatmul.mubr.f32.gmra.mrb[0].mxu0 %v1714
  %v1716 = vpop.f32.mrb[0].mxu0
  %v1717 = vadd.f32 %v1488, %v1716
  %v1718 = vpop.f32.mrb[0].mxu0
  %1719 = vmatprep.mubr.f32.mxu0 0.0
  %v1720 = vand.u32 %v518, 4294901760
  %1721 = vmatmul.mubr.f32.gmra.mrb[0].mxu0 %v1720
  %v1722 = vpop.f32.mrb[0].mxu0
  %v1723 = vadd.f32 %v1496, %v1722
  %v1724 = vpop.f32.mrb[0].mxu0
  %1725 = vmatprep.mubr.f32.mxu0 0.0
  %v1726 = vand.u32 %v521, 4294901760
  %1727 = vmatmul.mubr.f32.gmra.mrb[0].mxu0 %v1726
  %v1728 = vpop.f32.mrb[0].mxu0
  %v1729 = vadd.f32 %v1504, %v1728
  %v1730 = vpop.f32.mrb[0].mxu0
  %1731 = vmatprep.mubr.f32.mxu0 0.0
  %v1732 = vand.u32 %v524, 4294901760
  %1733 = vmatmul.mubr.f32.gmra.mrb[0].mxu0 %v1732
  %v1734 = vpop.f32.mrb[0].mxu0
  %v1735 = vadd.f32 %v1512, %v1734
  %v1736 = vpop.f32.mrb[0].mxu0
  %1737 = vmatprep.mubr.f32.mxu0 0.0
  %v1738 = vand.u32 %v527, 4294901760
  %1739 = vmatmul.mubr.f32.gmra.mrb[0].mxu0 %v1738
  %v1740 = vpop.f32.mrb[0].mxu0
  %v1741 = vadd.f32 %v1520, %v1740
  %v1742 = vpop.f32.mrb[0].mxu0
  %1743 = vmatprep.mubr.f32.mxu0 0.0
  %v1744 = vand.u32 %v530, 4294901760
  %1745 = vmatmul.mubr.f32.gmra.mrb[0].mxu0 %v1744
  %v1746 = vpop.f32.mrb[0].mxu0
  %v1747 = vadd.f32 %v1528, %v1746
  %v1748 = vpop.f32.mrb[0].mxu0
  %1749 = vmatprep.mubr.f32.mxu0 0.0
  %v1750 = vand.u32 %v533, 4294901760
  %1751 = vmatmul.mubr.f32.gmra.mrb[0].mxu0 %v1750
  %v1752 = vpop.f32.mrb[0].mxu0
  %v1753 = vadd.f32 %v1536, %v1752
  %v1754 = vpop.f32.mrb[0].mxu0
  %1755 = vmatprep.mubr.f32.mxu0 0.0
  %v1756 = vand.u32 %v536, 4294901760
  %1757 = vmatmul.mubr.f32.gmra.mrb[0].mxu0 %v1756
  %v1758 = vpop.f32.mrb[0].mxu0
  %v1759 = vadd.f32 %v1544, %v1758
  %v1760 = vpop.f32.mrb[0].mxu0
  %1761 = vdwg.mxu0
  %1762 = vmatprep.subr.mxu0 0.0
  %v1763 = vand.u32 %v457, 4294901760
  %1764 = vmatpush1.msra.mxu0 %v1763
  %1765 = vmatprep.subr.mxu0 0.0
  %v1766 = vand.u32 %v458, 4294901760
  %1767 = vmatpush1.msra.mxu0 %v1766
  %1768 = vmatprep.subr.mxu0 0.0
  %v1769 = vand.u32 %v459, 4294901760
  %1770 = vmatpush1.msra.mxu0 %v1769
  %1771 = vmatprep.subr.mxu0 0.0
  %v1772 = vand.u32 %v460, 4294901760
  %1773 = vmatpush1.msra.mxu0 %v1772
  %1774 = vmatprep.subr.mxu0 0.0
  %1775 = vmatpush1.msra.mxu0 0.0
  %1776 = vmatprep.subr.mxu0 0.0
  %1777 = vmatpush1.msra.mxu0 0.0
  %1778 = vmatprep.subr.mxu0 0.0
  %1779 = vmatpush1.msra.mxu0 0.0
  %1780 = vmatprep.subr.mxu0 0.0
  %1781 = vmatpush1.msra.mxu0 0.0
  %1782 = vmatprep.subr.mxu0 0.0
  %1783 = vmatpush1.msra.mxu0 0.0
  %1784 = vmatprep.subr.mxu0 0.0
  %1785 = vmatpush1.msra.mxu0 0.0
  %1786 = vmatprep.subr.mxu0 0.0
  %1787 = vmatpush1.msra.mxu0 0.0
  %1788 = vmatprep.subr.mxu0 0.0
  %1789 = vmatpush1.msra.mxu0 0.0
  %1790 = vmatprep.subr.mxu0 0.0
  %1791 = vmatpush1.msra.mxu0 0.0
  %1792 = vmatprep.subr.mxu0 0.0
  %1793 = vmatpush1.msra.mxu0 0.0
  %1794 = vmatprep.subr.mxu0 0.0
  %1795 = vmatpush1.msra.mxu0 0.0
  %1796 = vmatprep.subr.mxu0 0.0
  %1797 = vmatpush1.msra.mxu0 0.0
  %1798 = vmatprep.subr.mxu0 0.0
  %1799 = vmatpush1.msra.mxu0 0.0
  %1800 = vmatprep.subr.mxu0 0.0
  %1801 = vmatpush1.msra.mxu0 0.0
  %1802 = vmatprep.subr.mxu0 0.0
  %1803 = vmatpush1.msra.mxu0 0.0
  %1804 = vmatprep.subr.mxu0 0.0
  %1805 = vmatpush1.msra.mxu0 0.0
  %1806 = vmatprep.subr.mxu0 0.0
  %1807 = vmatpush1.msra.mxu0 0.0
  %1808 = vmatprep.subr.mxu0 0.0
  %1809 = vmatpush1.msra.mxu0 0.0
  %1810 = vmatprep.subr.mxu0 0.0
  %1811 = vmatpush1.msra.mxu0 0.0
  %1812 = vmatprep.subr.mxu0 0.0
  %1813 = vmatpush1.msra.mxu0 0.0
  %1814 = vmatprep.subr.mxu0 0.0
  %1815 = vmatpush1.msra.mxu0 0.0
  %1816 = vmatprep.subr.mxu0 0.0
  %1817 = vmatpush1.msra.mxu0 0.0
  %1818 = vmatprep.subr.mxu0 0.0
  %1819 = vmatpush1.msra.mxu0 0.0
  %1820 = vmatprep.subr.mxu0 0.0
  %1821 = vmatpush1.msra.mxu0 0.0
  %1822 = vmatprep.subr.mxu0 0.0
  %1823 = vmatpush1.msra.mxu0 0.0
  %1824 = vmatprep.subr.mxu0 0.0
  %1825 = vmatpush1.msra.mxu0 0.0
  %1826 = vmatprep.subr.mxu0 0.0
  %1827 = vmatpush1.msra.mxu0 0.0
  %1828 = vmatprep.subr.mxu0 0.0
  %1829 = vmatpush1.msra.mxu0 0.0
  %1830 = vmatprep.mubr.f32.mxu0 0.0
  %v1831 = vand.u32 %v470, 4294901760
  %1832 = vmatmul.mubr.f32.gmra.mrb[0].mxu0 %v1831
  %v1833 = vpop.f32.mrb[0].mxu0
  %v1834 = vadd.f32 %v1627, %v1833
  %v1835 = vpop.f32.mrb[0].mxu0
  %1836 = vmatprep.mubr.f32.mxu0 0.0
  %v1837 = vand.u32 %v473, 4294901760
  %1838 = vmatmul.mubr.f32.gmra.mrb[0].mxu0 %v1837
  %v1839 = vpop.f32.mrb[0].mxu0
  %v1840 = vadd.f32 %v1633, %v1839
  %v1841 = vpop.f32.mrb[0].mxu0
  %1842 = vmatprep.mubr.f32.mxu0 0.0
  %v1843 = vand.u32 %v476, 4294901760
  %1844 = vmatmul.mubr.f32.gmra.mrb[0].mxu0 %v1843
  %v1845 = vpop.f32.mrb[0].mxu0
  %v1846 = vadd.f32 %v1639, %v1845
  %v1847 = vpop.f32.mrb[0].mxu0
  %1848 = vmatprep.mubr.f32.mxu0 0.0
  %v1849 = vand.u32 %v479, 4294901760
  %1850 = vmatmul.mubr.f32.gmra.mrb[0].mxu0 %v1849
  %v1851 = vpop.f32.mrb[0].mxu0
  %v1852 = vadd.f32 %v1645, %v1851
  %v1853 = vpop.f32.mrb[0].mxu0
  %1854 = vmatprep.mubr.f32.mxu0 0.0
  %v1855 = vand.u32 %v482, 4294901760
  %1856 = vmatmul.mubr.f32.gmra.mrb[0].mxu0 %v1855
  %v1857 = vpop.f32.mrb[0].mxu0
  %v1858 = vadd.f32 %v1651, %v1857
  %v1859 = vpop.f32.mrb[0].mxu0
  %1860 = vmatprep.mubr.f32.mxu0 0.0
  %v1861 = vand.u32 %v485, 4294901760
  %1862 = vmatmul.mubr.f32.gmra.mrb[0].mxu0 %v1861
  %v1863 = vpop.f32.mrb[0].mxu0
  %v1864 = vadd.f32 %v1657, %v1863
  %v1865 = vpop.f32.mrb[0].mxu0
  %1866 = vmatprep.mubr.f32.mxu0 0.0
  %v1867 = vand.u32 %v488, 4294901760
  %1868 = vmatmul.mubr.f32.gmra.mrb[0].mxu0 %v1867
  %v1869 = vpop.f32.mrb[0].mxu0
  %v1870 = vadd.f32 %v1663, %v1869
  %v1871 = vpop.f32.mrb[0].mxu0
  %1872 = vmatprep.mubr.f32.mxu0 0.0
  %v1873 = vand.u32 %v491, 4294901760
  %1874 = vmatmul.mubr.f32.gmra.mrb[0].mxu0 %v1873
  %v1875 = vpop.f32.mrb[0].mxu0
  %v1876 = vadd.f32 %v1669, %v1875
  %v1877 = vpop.f32.mrb[0].mxu0
  %1878 = vmatprep.mubr.f32.mxu0 0.0
  %v1879 = vand.u32 %v494, 4294901760
  %1880 = vmatmul.mubr.f32.gmra.mrb[0].mxu0 %v1879
  %v1881 = vpop.f32.mrb[0].mxu0
  %v1882 = vadd.f32 %v1675, %v1881
  %v1883 = vpop.f32.mrb[0].mxu0
  %1884 = vmatprep.mubr.f32.mxu0 0.0
  %v1885 = vand.u32 %v497, 4294901760
  %1886 = vmatmul.mubr.f32.gmra.mrb[0].mxu0 %v1885
  %v1887 = vpop.f32.mrb[0].mxu0
  %v1888 = vadd.f32 %v1681, %v1887
  %v1889 = vpop.f32.mrb[0].mxu0
  %1890 = vmatprep.mubr.f32.mxu0 0.0
  %v1891 = vand.u32 %v500, 4294901760
  %1892 = vmatmul.mubr.f32.gmra.mrb[0].mxu0 %v1891
  %v1893 = vpop.f32.mrb[0].mxu0
  %v1894 = vadd.f32 %v1687, %v1893
  %v1895 = vpop.f32.mrb[0].mxu0
  %1896 = vmatprep.mubr.f32.mxu0 0.0
  %v1897 = vand.u32 %v503, 4294901760
  %1898 = vmatmul.mubr.f32.gmra.mrb[0].mxu0 %v1897
  %v1899 = vpop.f32.mrb[0].mxu0
  %v1900 = vadd.f32 %v1693, %v1899
  %v1901 = vpop.f32.mrb[0].mxu0
  %1902 = vmatprep.mubr.f32.mxu0 0.0
  %v1903 = vand.u32 %v506, 4294901760
  %1904 = vmatmul.mubr.f32.gmra.mrb[0].mxu0 %v1903
  %v1905 = vpop.f32.mrb[0].mxu0
  %v1906 = vadd.f32 %v1699, %v1905
  %v1907 = vpop.f32.mrb[0].mxu0
  %1908 = vmatprep.mubr.f32.mxu0 0.0
  %v1909 = vand.u32 %v509, 4294901760
  %1910 = vmatmul.mubr.f32.gmra.mrb[0].mxu0 %v1909
  %v1911 = vpop.f32.mrb[0].mxu0
  %v1912 = vadd.f32 %v1705, %v1911
  %v1913 = vpop.f32.mrb[0].mxu0
  %1914 = vmatprep.mubr.f32.mxu0 0.0
  %v1915 = vand.u32 %v512, 4294901760
  %1916 = vmatmul.mubr.f32.gmra.mrb[0].mxu0 %v1915
  %v1917 = vpop.f32.mrb[0].mxu0
  %v1918 = vadd.f32 %v1711, %v1917
  %v1919 = vpop.f32.mrb[0].mxu0
  %1920 = vmatprep.mubr.f32.mxu0 0.0
  %v1921 = vand.u32 %v515, 4294901760
  %1922 = vmatmul.mubr.f32.gmra.mrb[0].mxu0 %v1921
  %v1923 = vpop.f32.mrb[0].mxu0
  %v1924 = vadd.f32 %v1717, %v1923
  %v1925 = vpop.f32.mrb[0].mxu0
  %1926 = vmatprep.mubr.f32.mxu0 0.0
  %v1927 = vand.u32 %v518, 4294901760
  %1928 = vmatmul.mubr.f32.gmra.mrb[0].mxu0 %v1927
  %v1929 = vpop.f32.mrb[0].mxu0
  %v1930 = vadd.f32 %v1723, %v1929
  %v1931 = vpop.f32.mrb[0].mxu0
  %1932 = vmatprep.mubr.f32.mxu0 0.0
  %v1933 = vand.u32 %v521, 4294901760
  %1934 = vmatmul.mubr.f32.gmra.mrb[0].mxu0 %v1933
  %v1935 = vpop.f32.mrb[0].mxu0
  %v1936 = vadd.f32 %v1729, %v1935
  %v1937 = vpop.f32.mrb[0].mxu0
  %1938 = vmatprep.mubr.f32.mxu0 0.0
  %v1939 = vand.u32 %v524, 4294901760
  %1940 = vmatmul.mubr.f32.gmra.mrb[0].mxu0 %v1939
  %v1941 = vpop.f32.mrb[0].mxu0
  %v1942 = vadd.f32 %v1735, %v1941
  %v1943 = vpop.f32.mrb[0].mxu0
  %1944 = vmatprep.mubr.f32.mxu0 0.0
  %v1945 = vand.u32 %v527, 4294901760
  %1946 = vmatmul.mubr.f32.gmra.mrb[0].mxu0 %v1945
  %v1947 = vpop.f32.mrb[0].mxu0
  %v1948 = vadd.f32 %v1741, %v1947
  %v1949 = vpop.f32.mrb[0].mxu0
  %1950 = vmatprep.mubr.f32.mxu0 0.0
  %v1951 = vand.u32 %v530, 4294901760
  %1952 = vmatmul.mubr.f32.gmra.mrb[0].mxu0 %v1951
  %v1953 = vpop.f32.mrb[0].mxu0
  %v1954 = vadd.f32 %v1747, %v1953
  %v1955 = vpop.f32.mrb[0].mxu0
  %1956 = vmatprep.mubr.f32.mxu0 0.0
  %v1957 = vand.u32 %v533, 4294901760
  %1958 = vmatmul.mubr.f32.gmra.mrb[0].mxu0 %v1957
  %v1959 = vpop.f32.mrb[0].mxu0
  %v1960 = vadd.f32 %v1753, %v1959
  %v1961 = vpop.f32.mrb[0].mxu0
  %1962 = vmatprep.mubr.f32.mxu0 0.0
  %v1963 = vand.u32 %v536, 4294901760
  %1964 = vmatmul.mubr.f32.gmra.mrb[0].mxu0 %v1963
  %v1965 = vpop.f32.mrb[0].mxu0
  %v1966 = vadd.f32 %v1759, %v1965
  %v1967 = vpop.f32.mrb[0].mxu0
  %1968 = vdwg.mxu0
  %v1969 = vmul.f32 %v1834, 0.5
  %v1970 = vmul.f32 %v1840, 0.5
  %v1971 = vmul.f32 %v1846, 0.5
  %v1972 = vmul.f32 %v1852, 0.5
  %v1973 = vmul.f32 %v1858, 0.5
  %v1974 = vmul.f32 %v1864, 0.5
  %v1975 = vmul.f32 %v1870, 0.5
  %v1976 = vmul.f32 %v1876, 0.5
  %v1977 = vmul.f32 %v1882, 0.5
  %v1978 = vmul.f32 %v1888, 0.5
  %v1979 = vmul.f32 %v1894, 0.5
  %v1980 = vmul.f32 %v1900, 0.5
  %v1981 = vmul.f32 %v1906, 0.5
  %v1982 = vmul.f32 %v1912, 0.5
  %v1983 = vmul.f32 %v1918, 0.5
  %v1984 = vmul.f32 %v1924, 0.5
  %v1985 = vmul.f32 %v1930, 0.5
  %v1986 = vmul.f32 %v1936, 0.5
  %v1987 = vmul.f32 %v1942, 0.5
  %v1988 = vmul.f32 %v1948, 0.5
  %v1989 = vmul.f32 %v1954, 0.5
  %v1990 = vmul.f32 %v1960, 0.5
  %v1991 = vmul.f32 %v1966, 0.5
  %v1992 = vtanh.pop %v1969
  %v1993 = vtanh.pop %v1970
  %v1994 = vtanh.pop %v1971
  %v1995 = vtanh.pop %v1972
  %v1996 = vtanh.pop %v1973
  %v1997 = vtanh.pop %v1974
  %v1998 = vtanh.pop %v1975
  %v1999 = vtanh.pop %v1976
  %v2000 = vtanh.pop %v1977
  %v2001 = vtanh.pop %v1978
  %v2002 = vtanh.pop %v1979
  %v2003 = vtanh.pop %v1980
  %v2004 = vtanh.pop %v1981
  %v2005 = vtanh.pop %v1982
  %v2006 = vtanh.pop %v1983
  %v2007 = vtanh.pop %v1984
  %v2008 = vtanh.pop %v1985
  %v2009 = vtanh.pop %v1986
  %v2010 = vtanh.pop %v1987
  %v2011 = vtanh.pop %v1988
  %v2012 = vtanh.pop %v1989
  %v2013 = vtanh.pop %v1990
  %v2014 = vtanh.pop %v1991
  %v2015 = vmul.f32 %v1992, 0.5
  %v2016 = vmul.f32 %v1993, 0.5
  %v2017 = vmul.f32 %v1994, 0.5
  %v2018 = vmul.f32 %v1995, 0.5
  %v2019 = vmul.f32 %v1996, 0.5
  %v2020 = vmul.f32 %v1997, 0.5
  %v2021 = vmul.f32 %v1998, 0.5
  %v2022 = vmul.f32 %v1999, 0.5
  %v2023 = vmul.f32 %v2000, 0.5
  %v2024 = vmul.f32 %v2001, 0.5
  %v2025 = vmul.f32 %v2002, 0.5
  %v2026 = vmul.f32 %v2003, 0.5
  %v2027 = vmul.f32 %v2004, 0.5
  %v2028 = vmul.f32 %v2005, 0.5
  %v2029 = vmul.f32 %v2006, 0.5
  %v2030 = vmul.f32 %v2007, 0.5
  %v2031 = vmul.f32 %v2008, 0.5
  %v2032 = vmul.f32 %v2009, 0.5
  %v2033 = vmul.f32 %v2010, 0.5
  %v2034 = vmul.f32 %v2011, 0.5
  %v2035 = vmul.f32 %v2012, 0.5
  %v2036 = vmul.f32 %v2013, 0.5
  %v2037 = vmul.f32 %v2014, 0.5
  %v2038 = vadd.f32 %v2015, 0.5
  %v2039 = vadd.f32 %v2016, 0.5
  %v2040 = vadd.f32 %v2017, 0.5
  %v2041 = vadd.f32 %v2018, 0.5
  %v2042 = vadd.f32 %v2019, 0.5
  %v2043 = vadd.f32 %v2020, 0.5
  %v2044 = vadd.f32 %v2021, 0.5
  %v2045 = vadd.f32 %v2022, 0.5
  %v2046 = vadd.f32 %v2023, 0.5
  %v2047 = vadd.f32 %v2024, 0.5
  %v2048 = vadd.f32 %v2025, 0.5
  %v2049 = vadd.f32 %v2026, 0.5
  %v2050 = vadd.f32 %v2027, 0.5
  %v2051 = vadd.f32 %v2028, 0.5
  %v2052 = vadd.f32 %v2029, 0.5
  %v2053 = vadd.f32 %v2030, 0.5
  %v2054 = vadd.f32 %v2031, 0.5
  %v2055 = vadd.f32 %v2032, 0.5
  %v2056 = vadd.f32 %v2033, 0.5
  %v2057 = vadd.f32 %v2034, 0.5
  %v2058 = vadd.f32 %v2035, 0.5
  %v2059 = vadd.f32 %v2036, 0.5
  %v2060 = vadd.f32 %v2037, 0.5
  %v2061 = vld [vmem:[%s5] sm:$0xff]
  %v2062 = vld [vmem:[%s5 + $0x8] sm:$0xff]
  %v2063 = vld [vmem:[%s5 + $0x10] sm:$0xff]
  %v2064 = vld [vmem:[%s5 + $0x18] sm:$0xff]
  %v2065 = vld [vmem:[%s6] sm:$0x1]
  %v2067 = vlaneseq
  %v2068 = vshrl.u32 %v2067, 7
  %v2069 = vsub.s32 0, %v2068
  %v2070 = vrot.slane %v2065, %v2069
  %v2073 = vsel %vm468, %v2038, 0
  %v2076 = vsel %vm468, %v2039, 0
  %v2079 = vsel %vm468, %v2040, 0
  %v2082 = vsel %vm468, %v2041, 0
  %v2085 = vsel %vm468, %v2042, 0
  %v2088 = vsel %vm468, %v2043, 0
  %v2091 = vsel %vm468, %v2044, 0
  %v2094 = vsel %vm468, %v2045, 0
  %v2097 = vsel %vm468, %v2046, 0
  %v2100 = vsel %vm468, %v2047, 0
  %v2103 = vsel %vm468, %v2048, 0
  %v2106 = vsel %vm468, %v2049, 0
  %v2109 = vsel %vm468, %v2050, 0
  %v2112 = vsel %vm468, %v2051, 0
  %v2115 = vsel %vm468, %v2052, 0
  %v2118 = vsel %vm468, %v2053, 0
  %v2121 = vsel %vm468, %v2054, 0
  %v2124 = vsel %vm468, %v2055, 0
  %v2127 = vsel %vm468, %v2056, 0
  %v2130 = vsel %vm468, %v2057, 0
  %v2133 = vsel %vm468, %v2058, 0
  %v2136 = vsel %vm468, %v2059, 0
  %v2139 = vsel %vm468, %v2060, 0
  %2141 = vmatprep.subr.mxu0 0.0
  %v2142 = vand.u32 %v2061, 4294901760
  %2143 = vmatpush1.msra.mxu0 %v2142
  %2144 = vmatprep.subr.mxu0 0.0
  %v2145 = vand.u32 %v2062, 4294901760
  %2146 = vmatpush1.msra.mxu0 %v2145
  %2147 = vmatprep.subr.mxu0 0.0
  %v2148 = vand.u32 %v2063, 4294901760
  %2149 = vmatpush1.msra.mxu0 %v2148
  %2150 = vmatprep.subr.mxu0 0.0
  %v2151 = vand.u32 %v2064, 4294901760
  %2152 = vmatpush1.msra.mxu0 %v2151
  %2153 = vmatprep.subr.mxu0 0.0
  %2154 = vmatpush1.msra.mxu0 0.0
  %2155 = vmatprep.subr.mxu0 0.0
  %2156 = vmatpush1.msra.mxu0 0.0
  %2157 = vmatprep.subr.mxu0 0.0
  %2158 = vmatpush1.msra.mxu0 0.0
  %2159 = vmatprep.subr.mxu0 0.0
  %2160 = vmatpush1.msra.mxu0 0.0
  %2161 = vmatprep.subr.mxu0 0.0
  %2162 = vmatpush1.msra.mxu0 0.0
  %2163 = vmatprep.subr.mxu0 0.0
  %2164 = vmatpush1.msra.mxu0 0.0
  %2165 = vmatprep.subr.mxu0 0.0
  %2166 = vmatpush1.msra.mxu0 0.0
  %2167 = vmatprep.subr.mxu0 0.0
  %2168 = vmatpush1.msra.mxu0 0.0
  %2169 = vmatprep.subr.mxu0 0.0
  %2170 = vmatpush1.msra.mxu0 0.0
  %2171 = vmatprep.subr.mxu0 0.0
  %2172 = vmatpush1.msra.mxu0 0.0
  %2173 = vmatprep.subr.mxu0 0.0
  %2174 = vmatpush1.msra.mxu0 0.0
  %2175 = vmatprep.subr.mxu0 0.0
  %2176 = vmatpush1.msra.mxu0 0.0
  %2177 = vmatprep.subr.mxu0 0.0
  %2178 = vmatpush1.msra.mxu0 0.0
  %2179 = vmatprep.subr.mxu0 0.0
  %2180 = vmatpush1.msra.mxu0 0.0
  %2181 = vmatprep.subr.mxu0 0.0
  %2182 = vmatpush1.msra.mxu0 0.0
  %2183 = vmatprep.subr.mxu0 0.0
  %2184 = vmatpush1.msra.mxu0 0.0
  %2185 = vmatprep.subr.mxu0 0.0
  %2186 = vmatpush1.msra.mxu0 0.0
  %2187 = vmatprep.subr.mxu0 0.0
  %2188 = vmatpush1.msra.mxu0 0.0
  %2189 = vmatprep.subr.mxu0 0.0
  %2190 = vmatpush1.msra.mxu0 0.0
  %2191 = vmatprep.subr.mxu0 0.0
  %2192 = vmatpush1.msra.mxu0 0.0
  %2193 = vmatprep.subr.mxu0 0.0
  %2194 = vmatpush1.msra.mxu0 0.0
  %2195 = vmatprep.subr.mxu0 0.0
  %2196 = vmatpush1.msra.mxu0 0.0
  %2197 = vmatprep.subr.mxu0 0.0
  %2198 = vmatpush1.msra.mxu0 0.0
  %2199 = vmatprep.subr.mxu0 0.0
  %2200 = vmatpush1.msra.mxu0 0.0
  %2201 = vmatprep.subr.mxu0 0.0
  %2202 = vmatpush1.msra.mxu0 0.0
  %2203 = vmatprep.subr.mxu0 0.0
  %2204 = vmatpush1.msra.mxu0 0.0
  %2205 = vmatprep.subr.mxu0 0.0
  %2206 = vmatpush1.msra.mxu0 0.0
  %2207 = vmatprep.subr.mxu0 0.0
  %2208 = vmatpush1.msra.mxu0 0.0
  %2209 = vmatprep.mubr.f32.mxu0 0.0
  %v2210 = vand.u32 %v2073, 4294901760
  %v2211 = vsub.f32 %v2073, %v2210
  %v2212 = vand.u32 %v2211, 4294901760
  %v2213 = vsub.f32 %v2211, %v2212
  %v2214 = vand.u32 %v2213, 4294901760
  %2215 = vmatmul.mubr.f32.gmra.mrb[0].mxu0 %v2214
  %v2216 = vpop.f32.mrb[0].mxu0
  %v2217 = vadd.f32 %v2070, %v2216
  %v2218 = vpop.f32.mrb[0].mxu0
  %2219 = vmatprep.mubr.f32.mxu0 0.0
  %v2220 = vand.u32 %v2076, 4294901760
  %v2221 = vsub.f32 %v2076, %v2220
  %v2222 = vand.u32 %v2221, 4294901760
  %v2223 = vsub.f32 %v2221, %v2222
  %v2224 = vand.u32 %v2223, 4294901760
  %2225 = vmatmul.mubr.f32.gmra.mrb[0].mxu0 %v2224
  %v2226 = vpop.f32.mrb[0].mxu0
  %v2227 = vadd.f32 %v2070, %v2226
  %v2228 = vpop.f32.mrb[0].mxu0
  %2229 = vmatprep.mubr.f32.mxu0 0.0
  %v2230 = vand.u32 %v2079, 4294901760
  %v2231 = vsub.f32 %v2079, %v2230
  %v2232 = vand.u32 %v2231, 4294901760
  %v2233 = vsub.f32 %v2231, %v2232
  %v2234 = vand.u32 %v2233, 4294901760
  %2235 = vmatmul.mubr.f32.gmra.mrb[0].mxu0 %v2234
  %v2236 = vpop.f32.mrb[0].mxu0
  %v2237 = vadd.f32 %v2070, %v2236
  %v2238 = vpop.f32.mrb[0].mxu0
  %2239 = vmatprep.mubr.f32.mxu0 0.0
  %v2240 = vand.u32 %v2082, 4294901760
  %v2241 = vsub.f32 %v2082, %v2240
  %v2242 = vand.u32 %v2241, 4294901760
  %v2243 = vsub.f32 %v2241, %v2242
  %v2244 = vand.u32 %v2243, 4294901760
  %2245 = vmatmul.mubr.f32.gmra.mrb[0].mxu0 %v2244
  %v2246 = vpop.f32.mrb[0].mxu0
  %v2247 = vadd.f32 %v2070, %v2246
  %v2248 = vpop.f32.mrb[0].mxu0
  %2249 = vmatprep.mubr.f32.mxu0 0.0
  %v2250 = vand.u32 %v2085, 4294901760
  %v2251 = vsub.f32 %v2085, %v2250
  %v2252 = vand.u32 %v2251, 4294901760
  %v2253 = vsub.f32 %v2251, %v2252
  %v2254 = vand.u32 %v2253, 4294901760
  %2255 = vmatmul.mubr.f32.gmra.mrb[0].mxu0 %v2254
  %v2256 = vpop.f32.mrb[0].mxu0
  %v2257 = vadd.f32 %v2070, %v2256
  %v2258 = vpop.f32.mrb[0].mxu0
  %2259 = vmatprep.mubr.f32.mxu0 0.0
  %v2260 = vand.u32 %v2088, 4294901760
  %v2261 = vsub.f32 %v2088, %v2260
  %v2262 = vand.u32 %v2261, 4294901760
  %v2263 = vsub.f32 %v2261, %v2262
  %v2264 = vand.u32 %v2263, 4294901760
  %2265 = vmatmul.mubr.f32.gmra.mrb[0].mxu0 %v2264
  %v2266 = vpop.f32.mrb[0].mxu0
  %v2267 = vadd.f32 %v2070, %v2266
  %v2268 = vpop.f32.mrb[0].mxu0
  %2269 = vmatprep.mubr.f32.mxu0 0.0
  %v2270 = vand.u32 %v2091, 4294901760
  %v2271 = vsub.f32 %v2091, %v2270
  %v2272 = vand.u32 %v2271, 4294901760
  %v2273 = vsub.f32 %v2271, %v2272
  %v2274 = vand.u32 %v2273, 4294901760
  %2275 = vmatmul.mubr.f32.gmra.mrb[0].mxu0 %v2274
  %v2276 = vpop.f32.mrb[0].mxu0
  %v2277 = vadd.f32 %v2070, %v2276
  %v2278 = vpop.f32.mrb[0].mxu0
  %2279 = vmatprep.mubr.f32.mxu0 0.0
  %v2280 = vand.u32 %v2094, 4294901760
  %v2281 = vsub.f32 %v2094, %v2280
  %v2282 = vand.u32 %v2281, 4294901760
  %v2283 = vsub.f32 %v2281, %v2282
  %v2284 = vand.u32 %v2283, 4294901760
  %2285 = vmatmul.mubr.f32.gmra.mrb[0].mxu0 %v2284
  %v2286 = vpop.f32.mrb[0].mxu0
  %v2287 = vadd.f32 %v2070, %v2286
  %v2288 = vpop.f32.mrb[0].mxu0
  %2289 = vmatprep.mubr.f32.mxu0 0.0
  %v2290 = vand.u32 %v2097, 4294901760
  %v2291 = vsub.f32 %v2097, %v2290
  %v2292 = vand.u32 %v2291, 4294901760
  %v2293 = vsub.f32 %v2291, %v2292
  %v2294 = vand.u32 %v2293, 4294901760
  %2295 = vmatmul.mubr.f32.gmra.mrb[0].mxu0 %v2294
  %v2296 = vpop.f32.mrb[0].mxu0
  %v2297 = vadd.f32 %v2070, %v2296
  %v2298 = vpop.f32.mrb[0].mxu0
  %2299 = vmatprep.mubr.f32.mxu0 0.0
  %v2300 = vand.u32 %v2100, 4294901760
  %v2301 = vsub.f32 %v2100, %v2300
  %v2302 = vand.u32 %v2301, 4294901760
  %v2303 = vsub.f32 %v2301, %v2302
  %v2304 = vand.u32 %v2303, 4294901760
  %2305 = vmatmul.mubr.f32.gmra.mrb[0].mxu0 %v2304
  %v2306 = vpop.f32.mrb[0].mxu0
  %v2307 = vadd.f32 %v2070, %v2306
  %v2308 = vpop.f32.mrb[0].mxu0
  %2309 = vmatprep.mubr.f32.mxu0 0.0
  %v2310 = vand.u32 %v2103, 4294901760
  %v2311 = vsub.f32 %v2103, %v2310
  %v2312 = vand.u32 %v2311, 4294901760
  %v2313 = vsub.f32 %v2311, %v2312
  %v2314 = vand.u32 %v2313, 4294901760
  %2315 = vmatmul.mubr.f32.gmra.mrb[0].mxu0 %v2314
  %v2316 = vpop.f32.mrb[0].mxu0
  %v2317 = vadd.f32 %v2070, %v2316
  %v2318 = vpop.f32.mrb[0].mxu0
  %2319 = vmatprep.mubr.f32.mxu0 0.0
  %v2320 = vand.u32 %v2106, 4294901760
  %v2321 = vsub.f32 %v2106, %v2320
  %v2322 = vand.u32 %v2321, 4294901760
  %v2323 = vsub.f32 %v2321, %v2322
  %v2324 = vand.u32 %v2323, 4294901760
  %2325 = vmatmul.mubr.f32.gmra.mrb[0].mxu0 %v2324
  %v2326 = vpop.f32.mrb[0].mxu0
  %v2327 = vadd.f32 %v2070, %v2326
  %v2328 = vpop.f32.mrb[0].mxu0
  %2329 = vmatprep.mubr.f32.mxu0 0.0
  %v2330 = vand.u32 %v2109, 4294901760
  %v2331 = vsub.f32 %v2109, %v2330
  %v2332 = vand.u32 %v2331, 4294901760
  %v2333 = vsub.f32 %v2331, %v2332
  %v2334 = vand.u32 %v2333, 4294901760
  %2335 = vmatmul.mubr.f32.gmra.mrb[0].mxu0 %v2334
  %v2336 = vpop.f32.mrb[0].mxu0
  %v2337 = vadd.f32 %v2070, %v2336
  %v2338 = vpop.f32.mrb[0].mxu0
  %2339 = vmatprep.mubr.f32.mxu0 0.0
  %v2340 = vand.u32 %v2112, 4294901760
  %v2341 = vsub.f32 %v2112, %v2340
  %v2342 = vand.u32 %v2341, 4294901760
  %v2343 = vsub.f32 %v2341, %v2342
  %v2344 = vand.u32 %v2343, 4294901760
  %2345 = vmatmul.mubr.f32.gmra.mrb[0].mxu0 %v2344
  %v2346 = vpop.f32.mrb[0].mxu0
  %v2347 = vadd.f32 %v2070, %v2346
  %v2348 = vpop.f32.mrb[0].mxu0
  %2349 = vmatprep.mubr.f32.mxu0 0.0
  %v2350 = vand.u32 %v2115, 4294901760
  %v2351 = vsub.f32 %v2115, %v2350
  %v2352 = vand.u32 %v2351, 4294901760
  %v2353 = vsub.f32 %v2351, %v2352
  %v2354 = vand.u32 %v2353, 4294901760
  %2355 = vmatmul.mubr.f32.gmra.mrb[0].mxu0 %v2354
  %v2356 = vpop.f32.mrb[0].mxu0
  %v2357 = vadd.f32 %v2070, %v2356
  %v2358 = vpop.f32.mrb[0].mxu0
  %2359 = vmatprep.mubr.f32.mxu0 0.0
  %v2360 = vand.u32 %v2118, 4294901760
  %v2361 = vsub.f32 %v2118, %v2360
  %v2362 = vand.u32 %v2361, 4294901760
  %v2363 = vsub.f32 %v2361, %v2362
  %v2364 = vand.u32 %v2363, 4294901760
  %2365 = vmatmul.mubr.f32.gmra.mrb[0].mxu0 %v2364
  %v2366 = vpop.f32.mrb[0].mxu0
  %v2367 = vadd.f32 %v2070, %v2366
  %v2368 = vpop.f32.mrb[0].mxu0
  %2369 = vmatprep.mubr.f32.mxu0 0.0
  %v2370 = vand.u32 %v2121, 4294901760
  %v2371 = vsub.f32 %v2121, %v2370
  %v2372 = vand.u32 %v2371, 4294901760
  %v2373 = vsub.f32 %v2371, %v2372
  %v2374 = vand.u32 %v2373, 4294901760
  %2375 = vmatmul.mubr.f32.gmra.mrb[0].mxu0 %v2374
  %v2376 = vpop.f32.mrb[0].mxu0
  %v2377 = vadd.f32 %v2070, %v2376
  %v2378 = vpop.f32.mrb[0].mxu0
  %2379 = vmatprep.mubr.f32.mxu0 0.0
  %v2380 = vand.u32 %v2124, 4294901760
  %v2381 = vsub.f32 %v2124, %v2380
  %v2382 = vand.u32 %v2381, 4294901760
  %v2383 = vsub.f32 %v2381, %v2382
  %v2384 = vand.u32 %v2383, 4294901760
  %2385 = vmatmul.mubr.f32.gmra.mrb[0].mxu0 %v2384
  %v2386 = vpop.f32.mrb[0].mxu0
  %v2387 = vadd.f32 %v2070, %v2386
  %v2388 = vpop.f32.mrb[0].mxu0
  %2389 = vmatprep.mubr.f32.mxu0 0.0
  %v2390 = vand.u32 %v2127, 4294901760
  %v2391 = vsub.f32 %v2127, %v2390
  %v2392 = vand.u32 %v2391, 4294901760
  %v2393 = vsub.f32 %v2391, %v2392
  %v2394 = vand.u32 %v2393, 4294901760
  %2395 = vmatmul.mubr.f32.gmra.mrb[0].mxu0 %v2394
  %v2396 = vpop.f32.mrb[0].mxu0
  %v2397 = vadd.f32 %v2070, %v2396
  %v2398 = vpop.f32.mrb[0].mxu0
  %2399 = vmatprep.mubr.f32.mxu0 0.0
  %v2400 = vand.u32 %v2130, 4294901760
  %v2401 = vsub.f32 %v2130, %v2400
  %v2402 = vand.u32 %v2401, 4294901760
  %v2403 = vsub.f32 %v2401, %v2402
  %v2404 = vand.u32 %v2403, 4294901760
  %2405 = vmatmul.mubr.f32.gmra.mrb[0].mxu0 %v2404
  %v2406 = vpop.f32.mrb[0].mxu0
  %v2407 = vadd.f32 %v2070, %v2406
  %v2408 = vpop.f32.mrb[0].mxu0
  %2409 = vmatprep.mubr.f32.mxu0 0.0
  %v2410 = vand.u32 %v2133, 4294901760
  %v2411 = vsub.f32 %v2133, %v2410
  %v2412 = vand.u32 %v2411, 4294901760
  %v2413 = vsub.f32 %v2411, %v2412
  %v2414 = vand.u32 %v2413, 4294901760
  %2415 = vmatmul.mubr.f32.gmra.mrb[0].mxu0 %v2414
  %v2416 = vpop.f32.mrb[0].mxu0
  %v2417 = vadd.f32 %v2070, %v2416
  %v2418 = vpop.f32.mrb[0].mxu0
  %2419 = vmatprep.mubr.f32.mxu0 0.0
  %v2420 = vand.u32 %v2136, 4294901760
  %v2421 = vsub.f32 %v2136, %v2420
  %v2422 = vand.u32 %v2421, 4294901760
  %v2423 = vsub.f32 %v2421, %v2422
  %v2424 = vand.u32 %v2423, 4294901760
  %2425 = vmatmul.mubr.f32.gmra.mrb[0].mxu0 %v2424
  %v2426 = vpop.f32.mrb[0].mxu0
  %v2427 = vadd.f32 %v2070, %v2426
  %v2428 = vpop.f32.mrb[0].mxu0
  %2429 = vmatprep.mubr.f32.mxu0 0.0
  %v2430 = vand.u32 %v2139, 4294901760
  %v2431 = vsub.f32 %v2139, %v2430
  %v2432 = vand.u32 %v2431, 4294901760
  %v2433 = vsub.f32 %v2431, %v2432
  %v2434 = vand.u32 %v2433, 4294901760
  %2435 = vmatmul.mubr.f32.gmra.mrb[0].mxu0 %v2434
  %v2436 = vpop.f32.mrb[0].mxu0
  %v2437 = vadd.f32 %v2070, %v2436
  %v2438 = vpop.f32.mrb[0].mxu0
  %2439 = vdwg.mxu0
  %2440 = vmatprep.subr.mxu0 0.0
  %v2441 = vand.u32 %v2061, 4294901760
  %v2442 = vsub.f32 %v2061, %v2441
  %v2443 = vand.u32 %v2442, 4294901760
  %v2444 = vsub.f32 %v2442, %v2443
  %v2445 = vand.u32 %v2444, 4294901760
  %2446 = vmatpush1.msra.mxu0 %v2445
  %2447 = vmatprep.subr.mxu0 0.0
  %v2448 = vand.u32 %v2062, 4294901760
  %v2449 = vsub.f32 %v2062, %v2448
  %v2450 = vand.u32 %v2449, 4294901760
  %v2451 = vsub.f32 %v2449, %v2450
  %v2452 = vand.u32 %v2451, 4294901760
  %2453 = vmatpush1.msra.mxu0 %v2452
  %2454 = vmatprep.subr.mxu0 0.0
  %v2455 = vand.u32 %v2063, 4294901760
  %v2456 = vsub.f32 %v2063, %v2455
  %v2457 = vand.u32 %v2456, 4294901760
  %v2458 = vsub.f32 %v2456, %v2457
  %v2459 = vand.u32 %v2458, 4294901760
  %2460 = vmatpush1.msra.mxu0 %v2459
  %2461 = vmatprep.subr.mxu0 0.0
  %v2462 = vand.u32 %v2064, 4294901760
  %v2463 = vsub.f32 %v2064, %v2462
  %v2464 = vand.u32 %v2463, 4294901760
  %v2465 = vsub.f32 %v2463, %v2464
  %v2466 = vand.u32 %v2465, 4294901760
  %2467 = vmatpush1.msra.mxu0 %v2466
  %2468 = vmatprep.subr.mxu0 0.0
  %2469 = vmatpush1.msra.mxu0 0.0
  %2470 = vmatprep.subr.mxu0 0.0
  %2471 = vmatpush1.msra.mxu0 0.0
  %2472 = vmatprep.subr.mxu0 0.0
  %2473 = vmatpush1.msra.mxu0 0.0
  %2474 = vmatprep.subr.mxu0 0.0
  %2475 = vmatpush1.msra.mxu0 0.0
  %2476 = vmatprep.subr.mxu0 0.0
  %2477 = vmatpush1.msra.mxu0 0.0
  %2478 = vmatprep.subr.mxu0 0.0
  %2479 = vmatpush1.msra.mxu0 0.0
  %2480 = vmatprep.subr.mxu0 0.0
  %2481 = vmatpush1.msra.mxu0 0.0
  %2482 = vmatprep.subr.mxu0 0.0
  %2483 = vmatpush1.msra.mxu0 0.0
  %2484 = vmatprep.subr.mxu0 0.0
  %2485 = vmatpush1.msra.mxu0 0.0
  %2486 = vmatprep.subr.mxu0 0.0
  %2487 = vmatpush1.msra.mxu0 0.0
  %2488 = vmatprep.subr.mxu0 0.0
  %2489 = vmatpush1.msra.mxu0 0.0
  %2490 = vmatprep.subr.mxu0 0.0
  %2491 = vmatpush1.msra.mxu0 0.0
  %2492 = vmatprep.subr.mxu0 0.0
  %2493 = vmatpush1.msra.mxu0 0.0
  %2494 = vmatprep.subr.mxu0 0.0
  %2495 = vmatpush1.msra.mxu0 0.0
  %2496 = vmatprep.subr.mxu0 0.0
  %2497 = vmatpush1.msra.mxu0 0.0
  %2498 = vmatprep.subr.mxu0 0.0
  %2499 = vmatpush1.msra.mxu0 0.0
  %2500 = vmatprep.subr.mxu0 0.0
  %2501 = vmatpush1.msra.mxu0 0.0
  %2502 = vmatprep.subr.mxu0 0.0
  %2503 = vmatpush1.msra.mxu0 0.0
  %2504 = vmatprep.subr.mxu0 0.0
  %2505 = vmatpush1.msra.mxu0 0.0
  %2506 = vmatprep.subr.mxu0 0.0
  %2507 = vmatpush1.msra.mxu0 0.0
  %2508 = vmatprep.subr.mxu0 0.0
  %2509 = vmatpush1.msra.mxu0 0.0
  %2510 = vmatprep.subr.mxu0 0.0
  %2511 = vmatpush1.msra.mxu0 0.0
  %2512 = vmatprep.subr.mxu0 0.0
  %2513 = vmatpush1.msra.mxu0 0.0
  %2514 = vmatprep.subr.mxu0 0.0
  %2515 = vmatpush1.msra.mxu0 0.0
  %2516 = vmatprep.subr.mxu0 0.0
  %2517 = vmatpush1.msra.mxu0 0.0
  %2518 = vmatprep.subr.mxu0 0.0
  %2519 = vmatpush1.msra.mxu0 0.0
  %2520 = vmatprep.subr.mxu0 0.0
  %2521 = vmatpush1.msra.mxu0 0.0
  %2522 = vmatprep.subr.mxu0 0.0
  %2523 = vmatpush1.msra.mxu0 0.0
  %2524 = vmatprep.mubr.f32.mxu0 0.0
  %v2525 = vand.u32 %v2073, 4294901760
  %2526 = vmatmul.mubr.f32.gmra.mrb[0].mxu0 %v2525
  %v2527 = vpop.f32.mrb[0].mxu0
  %v2528 = vadd.f32 %v2217, %v2527
  %v2529 = vpop.f32.mrb[0].mxu0
  %2530 = vmatprep.mubr.f32.mxu0 0.0
  %v2531 = vand.u32 %v2076, 4294901760
  %2532 = vmatmul.mubr.f32.gmra.mrb[0].mxu0 %v2531
  %v2533 = vpop.f32.mrb[0].mxu0
  %v2534 = vadd.f32 %v2227, %v2533
  %v2535 = vpop.f32.mrb[0].mxu0
  %2536 = vmatprep.mubr.f32.mxu0 0.0
  %v2537 = vand.u32 %v2079, 4294901760
  %2538 = vmatmul.mubr.f32.gmra.mrb[0].mxu0 %v2537
  %v2539 = vpop.f32.mrb[0].mxu0
  %v2540 = vadd.f32 %v2237, %v2539
  %v2541 = vpop.f32.mrb[0].mxu0
  %2542 = vmatprep.mubr.f32.mxu0 0.0
  %v2543 = vand.u32 %v2082, 4294901760
  %2544 = vmatmul.mubr.f32.gmra.mrb[0].mxu0 %v2543
  %v2545 = vpop.f32.mrb[0].mxu0
  %v2546 = vadd.f32 %v2247, %v2545
  %v2547 = vpop.f32.mrb[0].mxu0
  %2548 = vmatprep.mubr.f32.mxu0 0.0
  %v2549 = vand.u32 %v2085, 4294901760
  %2550 = vmatmul.mubr.f32.gmra.mrb[0].mxu0 %v2549
  %v2551 = vpop.f32.mrb[0].mxu0
  %v2552 = vadd.f32 %v2257, %v2551
  %v2553 = vpop.f32.mrb[0].mxu0
  %2554 = vmatprep.mubr.f32.mxu0 0.0
  %v2555 = vand.u32 %v2088, 4294901760
  %2556 = vmatmul.mubr.f32.gmra.mrb[0].mxu0 %v2555
  %v2557 = vpop.f32.mrb[0].mxu0
  %v2558 = vadd.f32 %v2267, %v2557
  %v2559 = vpop.f32.mrb[0].mxu0
  %2560 = vmatprep.mubr.f32.mxu0 0.0
  %v2561 = vand.u32 %v2091, 4294901760
  %2562 = vmatmul.mubr.f32.gmra.mrb[0].mxu0 %v2561
  %v2563 = vpop.f32.mrb[0].mxu0
  %v2564 = vadd.f32 %v2277, %v2563
  %v2565 = vpop.f32.mrb[0].mxu0
  %2566 = vmatprep.mubr.f32.mxu0 0.0
  %v2567 = vand.u32 %v2094, 4294901760
  %2568 = vmatmul.mubr.f32.gmra.mrb[0].mxu0 %v2567
  %v2569 = vpop.f32.mrb[0].mxu0
  %v2570 = vadd.f32 %v2287, %v2569
  %v2571 = vpop.f32.mrb[0].mxu0
  %2572 = vmatprep.mubr.f32.mxu0 0.0
  %v2573 = vand.u32 %v2097, 4294901760
  %2574 = vmatmul.mubr.f32.gmra.mrb[0].mxu0 %v2573
  %v2575 = vpop.f32.mrb[0].mxu0
  %v2576 = vadd.f32 %v2297, %v2575
  %v2577 = vpop.f32.mrb[0].mxu0
  %2578 = vmatprep.mubr.f32.mxu0 0.0
  %v2579 = vand.u32 %v2100, 4294901760
  %2580 = vmatmul.mubr.f32.gmra.mrb[0].mxu0 %v2579
  %v2581 = vpop.f32.mrb[0].mxu0
  %v2582 = vadd.f32 %v2307, %v2581
  %v2583 = vpop.f32.mrb[0].mxu0
  %2584 = vmatprep.mubr.f32.mxu0 0.0
  %v2585 = vand.u32 %v2103, 4294901760
  %2586 = vmatmul.mubr.f32.gmra.mrb[0].mxu0 %v2585
  %v2587 = vpop.f32.mrb[0].mxu0
  %v2588 = vadd.f32 %v2317, %v2587
  %v2589 = vpop.f32.mrb[0].mxu0
  %2590 = vmatprep.mubr.f32.mxu0 0.0
  %v2591 = vand.u32 %v2106, 4294901760
  %2592 = vmatmul.mubr.f32.gmra.mrb[0].mxu0 %v2591
  %v2593 = vpop.f32.mrb[0].mxu0
  %v2594 = vadd.f32 %v2327, %v2593
  %v2595 = vpop.f32.mrb[0].mxu0
  %2596 = vmatprep.mubr.f32.mxu0 0.0
  %v2597 = vand.u32 %v2109, 4294901760
  %2598 = vmatmul.mubr.f32.gmra.mrb[0].mxu0 %v2597
  %v2599 = vpop.f32.mrb[0].mxu0
  %v2600 = vadd.f32 %v2337, %v2599
  %v2601 = vpop.f32.mrb[0].mxu0
  %2602 = vmatprep.mubr.f32.mxu0 0.0
  %v2603 = vand.u32 %v2112, 4294901760
  %2604 = vmatmul.mubr.f32.gmra.mrb[0].mxu0 %v2603
  %v2605 = vpop.f32.mrb[0].mxu0
  %v2606 = vadd.f32 %v2347, %v2605
  %v2607 = vpop.f32.mrb[0].mxu0
  %2608 = vmatprep.mubr.f32.mxu0 0.0
  %v2609 = vand.u32 %v2115, 4294901760
  %2610 = vmatmul.mubr.f32.gmra.mrb[0].mxu0 %v2609
  %v2611 = vpop.f32.mrb[0].mxu0
  %v2612 = vadd.f32 %v2357, %v2611
  %v2613 = vpop.f32.mrb[0].mxu0
  %2614 = vmatprep.mubr.f32.mxu0 0.0
  %v2615 = vand.u32 %v2118, 4294901760
  %2616 = vmatmul.mubr.f32.gmra.mrb[0].mxu0 %v2615
  %v2617 = vpop.f32.mrb[0].mxu0
  %v2618 = vadd.f32 %v2367, %v2617
  %v2619 = vpop.f32.mrb[0].mxu0
  %2620 = vmatprep.mubr.f32.mxu0 0.0
  %v2621 = vand.u32 %v2121, 4294901760
  %2622 = vmatmul.mubr.f32.gmra.mrb[0].mxu0 %v2621
  %v2623 = vpop.f32.mrb[0].mxu0
  %v2624 = vadd.f32 %v2377, %v2623
  %v2625 = vpop.f32.mrb[0].mxu0
  %2626 = vmatprep.mubr.f32.mxu0 0.0
  %v2627 = vand.u32 %v2124, 4294901760
  %2628 = vmatmul.mubr.f32.gmra.mrb[0].mxu0 %v2627
  %v2629 = vpop.f32.mrb[0].mxu0
  %v2630 = vadd.f32 %v2387, %v2629
  %v2631 = vpop.f32.mrb[0].mxu0
  %2632 = vmatprep.mubr.f32.mxu0 0.0
  %v2633 = vand.u32 %v2127, 4294901760
  %2634 = vmatmul.mubr.f32.gmra.mrb[0].mxu0 %v2633
  %v2635 = vpop.f32.mrb[0].mxu0
  %v2636 = vadd.f32 %v2397, %v2635
  %v2637 = vpop.f32.mrb[0].mxu0
  %2638 = vmatprep.mubr.f32.mxu0 0.0
  %v2639 = vand.u32 %v2130, 4294901760
  %2640 = vmatmul.mubr.f32.gmra.mrb[0].mxu0 %v2639
  %v2641 = vpop.f32.mrb[0].mxu0
  %v2642 = vadd.f32 %v2407, %v2641
  %v2643 = vpop.f32.mrb[0].mxu0
  %2644 = vmatprep.mubr.f32.mxu0 0.0
  %v2645 = vand.u32 %v2133, 4294901760
  %2646 = vmatmul.mubr.f32.gmra.mrb[0].mxu0 %v2645
  %v2647 = vpop.f32.mrb[0].mxu0
  %v2648 = vadd.f32 %v2417, %v2647
  %v2649 = vpop.f32.mrb[0].mxu0
  %2650 = vmatprep.mubr.f32.mxu0 0.0
  %v2651 = vand.u32 %v2136, 4294901760
  %2652 = vmatmul.mubr.f32.gmra.mrb[0].mxu0 %v2651
  %v2653 = vpop.f32.mrb[0].mxu0
  %v2654 = vadd.f32 %v2427, %v2653
  %v2655 = vpop.f32.mrb[0].mxu0
  %2656 = vmatprep.mubr.f32.mxu0 0.0
  %v2657 = vand.u32 %v2139, 4294901760
  %2658 = vmatmul.mubr.f32.gmra.mrb[0].mxu0 %v2657
  %v2659 = vpop.f32.mrb[0].mxu0
  %v2660 = vadd.f32 %v2437, %v2659
  %v2661 = vpop.f32.mrb[0].mxu0
  %2662 = vdwg.mxu0
  %2663 = vmatprep.subr.mxu0 0.0
  %v2664 = vand.u32 %v2061, 4294901760
  %v2665 = vsub.f32 %v2061, %v2664
  %2666 = vmatpush1.msra.mxu0 %v2665
  %2667 = vmatprep.subr.mxu0 0.0
  %v2668 = vand.u32 %v2062, 4294901760
  %v2669 = vsub.f32 %v2062, %v2668
  %2670 = vmatpush1.msra.mxu0 %v2669
  %2671 = vmatprep.subr.mxu0 0.0
  %v2672 = vand.u32 %v2063, 4294901760
  %v2673 = vsub.f32 %v2063, %v2672
  %2674 = vmatpush1.msra.mxu0 %v2673
  %2675 = vmatprep.subr.mxu0 0.0
  %v2676 = vand.u32 %v2064, 4294901760
  %v2677 = vsub.f32 %v2064, %v2676
  %2678 = vmatpush1.msra.mxu0 %v2677
  %2679 = vmatprep.subr.mxu0 0.0
  %2680 = vmatpush1.msra.mxu0 0.0
  %2681 = vmatprep.subr.mxu0 0.0
  %2682 = vmatpush1.msra.mxu0 0.0
  %2683 = vmatprep.subr.mxu0 0.0
  %2684 = vmatpush1.msra.mxu0 0.0
  %2685 = vmatprep.subr.mxu0 0.0
  %2686 = vmatpush1.msra.mxu0 0.0
  %2687 = vmatprep.subr.mxu0 0.0
  %2688 = vmatpush1.msra.mxu0 0.0
  %2689 = vmatprep.subr.mxu0 0.0
  %2690 = vmatpush1.msra.mxu0 0.0
  %2691 = vmatprep.subr.mxu0 0.0
  %2692 = vmatpush1.msra.mxu0 0.0
  %2693 = vmatprep.subr.mxu0 0.0
  %2694 = vmatpush1.msra.mxu0 0.0
  %2695 = vmatprep.subr.mxu0 0.0
  %2696 = vmatpush1.msra.mxu0 0.0
  %2697 = vmatprep.subr.mxu0 0.0
  %2698 = vmatpush1.msra.mxu0 0.0
  %2699 = vmatprep.subr.mxu0 0.0
  %2700 = vmatpush1.msra.mxu0 0.0
  %2701 = vmatprep.subr.mxu0 0.0
  %2702 = vmatpush1.msra.mxu0 0.0
  %2703 = vmatprep.subr.mxu0 0.0
  %2704 = vmatpush1.msra.mxu0 0.0
  %2705 = vmatprep.subr.mxu0 0.0
  %2706 = vmatpush1.msra.mxu0 0.0
  %2707 = vmatprep.subr.mxu0 0.0
  %2708 = vmatpush1.msra.mxu0 0.0
  %2709 = vmatprep.subr.mxu0 0.0
  %2710 = vmatpush1.msra.mxu0 0.0
  %2711 = vmatprep.subr.mxu0 0.0
  %2712 = vmatpush1.msra.mxu0 0.0
  %2713 = vmatprep.subr.mxu0 0.0
  %2714 = vmatpush1.msra.mxu0 0.0
  %2715 = vmatprep.subr.mxu0 0.0
  %2716 = vmatpush1.msra.mxu0 0.0
  %2717 = vmatprep.subr.mxu0 0.0
  %2718 = vmatpush1.msra.mxu0 0.0
  %2719 = vmatprep.subr.mxu0 0.0
  %2720 = vmatpush1.msra.mxu0 0.0
  %2721 = vmatprep.subr.mxu0 0.0
  %2722 = vmatpush1.msra.mxu0 0.0
  %2723 = vmatprep.subr.mxu0 0.0
  %2724 = vmatpush1.msra.mxu0 0.0
  %2725 = vmatprep.subr.mxu0 0.0
  %2726 = vmatpush1.msra.mxu0 0.0
  %2727 = vmatprep.subr.mxu0 0.0
  %2728 = vmatpush1.msra.mxu0 0.0
  %2729 = vmatprep.subr.mxu0 0.0
  %2730 = vmatpush1.msra.mxu0 0.0
  %2731 = vmatprep.subr.mxu0 0.0
  %2732 = vmatpush1.msra.mxu0 0.0
  %2733 = vmatprep.subr.mxu0 0.0
  %2734 = vmatpush1.msra.mxu0 0.0
  %2735 = vmatprep.mubr.f32.mxu0 0.0
  %v2736 = vand.u32 %v2073, 4294901760
  %v2737 = vsub.f32 %v2073, %v2736
  %2738 = vmatmul.mubr.f32.gmra.mrb[0].mxu0 %v2737
  %v2739 = vpop.f32.mrb[0].mxu0
  %v2740 = vadd.f32 %v2528, %v2739
  %v2741 = vpop.f32.mrb[0].mxu0
  %2742 = vmatprep.mubr.f32.mxu0 0.0
  %v2743 = vand.u32 %v2076, 4294901760
  %v2744 = vsub.f32 %v2076, %v2743
  %2745 = vmatmul.mubr.f32.gmra.mrb[0].mxu0 %v2744
  %v2746 = vpop.f32.mrb[0].mxu0
  %v2747 = vadd.f32 %v2534, %v2746
  %v2748 = vpop.f32.mrb[0].mxu0
  %2749 = vmatprep.mubr.f32.mxu0 0.0
  %v2750 = vand.u32 %v2079, 4294901760
  %v2751 = vsub.f32 %v2079, %v2750
  %2752 = vmatmul.mubr.f32.gmra.mrb[0].mxu0 %v2751
  %v2753 = vpop.f32.mrb[0].mxu0
  %v2754 = vadd.f32 %v2540, %v2753
  %v2755 = vpop.f32.mrb[0].mxu0
  %2756 = vmatprep.mubr.f32.mxu0 0.0
  %v2757 = vand.u32 %v2082, 4294901760
  %v2758 = vsub.f32 %v2082, %v2757
  %2759 = vmatmul.mubr.f32.gmra.mrb[0].mxu0 %v2758
  %v2760 = vpop.f32.mrb[0].mxu0
  %v2761 = vadd.f32 %v2546, %v2760
  %v2762 = vpop.f32.mrb[0].mxu0
  %2763 = vmatprep.mubr.f32.mxu0 0.0
  %v2764 = vand.u32 %v2085, 4294901760
  %v2765 = vsub.f32 %v2085, %v2764
  %2766 = vmatmul.mubr.f32.gmra.mrb[0].mxu0 %v2765
  %v2767 = vpop.f32.mrb[0].mxu0
  %v2768 = vadd.f32 %v2552, %v2767
  %v2769 = vpop.f32.mrb[0].mxu0
  %2770 = vmatprep.mubr.f32.mxu0 0.0
  %v2771 = vand.u32 %v2088, 4294901760
  %v2772 = vsub.f32 %v2088, %v2771
  %2773 = vmatmul.mubr.f32.gmra.mrb[0].mxu0 %v2772
  %v2774 = vpop.f32.mrb[0].mxu0
  %v2775 = vadd.f32 %v2558, %v2774
  %v2776 = vpop.f32.mrb[0].mxu0
  %2777 = vmatprep.mubr.f32.mxu0 0.0
  %v2778 = vand.u32 %v2091, 4294901760
  %v2779 = vsub.f32 %v2091, %v2778
  %2780 = vmatmul.mubr.f32.gmra.mrb[0].mxu0 %v2779
  %v2781 = vpop.f32.mrb[0].mxu0
  %v2782 = vadd.f32 %v2564, %v2781
  %v2783 = vpop.f32.mrb[0].mxu0
  %2784 = vmatprep.mubr.f32.mxu0 0.0
  %v2785 = vand.u32 %v2094, 4294901760
  %v2786 = vsub.f32 %v2094, %v2785
  %2787 = vmatmul.mubr.f32.gmra.mrb[0].mxu0 %v2786
  %v2788 = vpop.f32.mrb[0].mxu0
  %v2789 = vadd.f32 %v2570, %v2788
  %v2790 = vpop.f32.mrb[0].mxu0
  %2791 = vmatprep.mubr.f32.mxu0 0.0
  %v2792 = vand.u32 %v2097, 4294901760
  %v2793 = vsub.f32 %v2097, %v2792
  %2794 = vmatmul.mubr.f32.gmra.mrb[0].mxu0 %v2793
  %v2795 = vpop.f32.mrb[0].mxu0
  %v2796 = vadd.f32 %v2576, %v2795
  %v2797 = vpop.f32.mrb[0].mxu0
  %2798 = vmatprep.mubr.f32.mxu0 0.0
  %v2799 = vand.u32 %v2100, 4294901760
  %v2800 = vsub.f32 %v2100, %v2799
  %2801 = vmatmul.mubr.f32.gmra.mrb[0].mxu0 %v2800
  %v2802 = vpop.f32.mrb[0].mxu0
  %v2803 = vadd.f32 %v2582, %v2802
  %v2804 = vpop.f32.mrb[0].mxu0
  %2805 = vmatprep.mubr.f32.mxu0 0.0
  %v2806 = vand.u32 %v2103, 4294901760
  %v2807 = vsub.f32 %v2103, %v2806
  %2808 = vmatmul.mubr.f32.gmra.mrb[0].mxu0 %v2807
  %v2809 = vpop.f32.mrb[0].mxu0
  %v2810 = vadd.f32 %v2588, %v2809
  %v2811 = vpop.f32.mrb[0].mxu0
  %2812 = vmatprep.mubr.f32.mxu0 0.0
  %v2813 = vand.u32 %v2106, 4294901760
  %v2814 = vsub.f32 %v2106, %v2813
  %2815 = vmatmul.mubr.f32.gmra.mrb[0].mxu0 %v2814
  %v2816 = vpop.f32.mrb[0].mxu0
  %v2817 = vadd.f32 %v2594, %v2816
  %v2818 = vpop.f32.mrb[0].mxu0
  %2819 = vmatprep.mubr.f32.mxu0 0.0
  %v2820 = vand.u32 %v2109, 4294901760
  %v2821 = vsub.f32 %v2109, %v2820
  %2822 = vmatmul.mubr.f32.gmra.mrb[0].mxu0 %v2821
  %v2823 = vpop.f32.mrb[0].mxu0
  %v2824 = vadd.f32 %v2600, %v2823
  %v2825 = vpop.f32.mrb[0].mxu0
  %2826 = vmatprep.mubr.f32.mxu0 0.0
  %v2827 = vand.u32 %v2112, 4294901760
  %v2828 = vsub.f32 %v2112, %v2827
  %2829 = vmatmul.mubr.f32.gmra.mrb[0].mxu0 %v2828
  %v2830 = vpop.f32.mrb[0].mxu0
  %v2831 = vadd.f32 %v2606, %v2830
  %v2832 = vpop.f32.mrb[0].mxu0
  %2833 = vmatprep.mubr.f32.mxu0 0.0
  %v2834 = vand.u32 %v2115, 4294901760
  %v2835 = vsub.f32 %v2115, %v2834
  %2836 = vmatmul.mubr.f32.gmra.mrb[0].mxu0 %v2835
  %v2837 = vpop.f32.mrb[0].mxu0
  %v2838 = vadd.f32 %v2612, %v2837
  %v2839 = vpop.f32.mrb[0].mxu0
  %2840 = vmatprep.mubr.f32.mxu0 0.0
  %v2841 = vand.u32 %v2118, 4294901760
  %v2842 = vsub.f32 %v2118, %v2841
  %2843 = vmatmul.mubr.f32.gmra.mrb[0].mxu0 %v2842
  %v2844 = vpop.f32.mrb[0].mxu0
  %v2845 = vadd.f32 %v2618, %v2844
  %v2846 = vpop.f32.mrb[0].mxu0
  %2847 = vmatprep.mubr.f32.mxu0 0.0
  %v2848 = vand.u32 %v2121, 4294901760
  %v2849 = vsub.f32 %v2121, %v2848
  %2850 = vmatmul.mubr.f32.gmra.mrb[0].mxu0 %v2849
  %v2851 = vpop.f32.mrb[0].mxu0
  %v2852 = vadd.f32 %v2624, %v2851
  %v2853 = vpop.f32.mrb[0].mxu0
  %2854 = vmatprep.mubr.f32.mxu0 0.0
  %v2855 = vand.u32 %v2124, 4294901760
  %v2856 = vsub.f32 %v2124, %v2855
  %2857 = vmatmul.mubr.f32.gmra.mrb[0].mxu0 %v2856
  %v2858 = vpop.f32.mrb[0].mxu0
  %v2859 = vadd.f32 %v2630, %v2858
  %v2860 = vpop.f32.mrb[0].mxu0
  %2861 = vmatprep.mubr.f32.mxu0 0.0
  %v2862 = vand.u32 %v2127, 4294901760
  %v2863 = vsub.f32 %v2127, %v2862
  %2864 = vmatmul.mubr.f32.gmra.mrb[0].mxu0 %v2863
  %v2865 = vpop.f32.mrb[0].mxu0
  %v2866 = vadd.f32 %v2636, %v2865
  %v2867 = vpop.f32.mrb[0].mxu0
  %2868 = vmatprep.mubr.f32.mxu0 0.0
  %v2869 = vand.u32 %v2130, 4294901760
  %v2870 = vsub.f32 %v2130, %v2869
  %2871 = vmatmul.mubr.f32.gmra.mrb[0].mxu0 %v2870
  %v2872 = vpop.f32.mrb[0].mxu0
  %v2873 = vadd.f32 %v2642, %v2872
  %v2874 = vpop.f32.mrb[0].mxu0
  %2875 = vmatprep.mubr.f32.mxu0 0.0
  %v2876 = vand.u32 %v2133, 4294901760
  %v2877 = vsub.f32 %v2133, %v2876
  %2878 = vmatmul.mubr.f32.gmra.mrb[0].mxu0 %v2877
  %v2879 = vpop.f32.mrb[0].mxu0
  %v2880 = vadd.f32 %v2648, %v2879
  %v2881 = vpop.f32.mrb[0].mxu0
  %2882 = vmatprep.mubr.f32.mxu0 0.0
  %v2883 = vand.u32 %v2136, 4294901760
  %v2884 = vsub.f32 %v2136, %v2883
  %2885 = vmatmul.mubr.f32.gmra.mrb[0].mxu0 %v2884
  %v2886 = vpop.f32.mrb[0].mxu0
  %v2887 = vadd.f32 %v2654, %v2886
  %v2888 = vpop.f32.mrb[0].mxu0
  %2889 = vmatprep.mubr.f32.mxu0 0.0
  %v2890 = vand.u32 %v2139, 4294901760
  %v2891 = vsub.f32 %v2139, %v2890
  %2892 = vmatmul.mubr.f32.gmra.mrb[0].mxu0 %v2891
  %v2893 = vpop.f32.mrb[0].mxu0
  %v2894 = vadd.f32 %v2660, %v2893
  %v2895 = vpop.f32.mrb[0].mxu0
  %2896 = vdwg.mxu0
  %2897 = vmatprep.subr.mxu0 0.0
  %v2898 = vand.u32 %v2061, 4294901760
  %2899 = vmatpush1.msra.mxu0 %v2898
  %2900 = vmatprep.subr.mxu0 0.0
  %v2901 = vand.u32 %v2062, 4294901760
  %2902 = vmatpush1.msra.mxu0 %v2901
  %2903 = vmatprep.subr.mxu0 0.0
  %v2904 = vand.u32 %v2063, 4294901760
  %2905 = vmatpush1.msra.mxu0 %v2904
  %2906 = vmatprep.subr.mxu0 0.0
  %v2907 = vand.u32 %v2064, 4294901760
  %2908 = vmatpush1.msra.mxu0 %v2907
  %2909 = vmatprep.subr.mxu0 0.0
  %2910 = vmatpush1.msra.mxu0 0.0
  %2911 = vmatprep.subr.mxu0 0.0
  %2912 = vmatpush1.msra.mxu0 0.0
  %2913 = vmatprep.subr.mxu0 0.0
  %2914 = vmatpush1.msra.mxu0 0.0
  %2915 = vmatprep.subr.mxu0 0.0
  %2916 = vmatpush1.msra.mxu0 0.0
  %2917 = vmatprep.subr.mxu0 0.0
  %2918 = vmatpush1.msra.mxu0 0.0
  %2919 = vmatprep.subr.mxu0 0.0
  %2920 = vmatpush1.msra.mxu0 0.0
  %2921 = vmatprep.subr.mxu0 0.0
  %2922 = vmatpush1.msra.mxu0 0.0
  %2923 = vmatprep.subr.mxu0 0.0
  %2924 = vmatpush1.msra.mxu0 0.0
  %2925 = vmatprep.subr.mxu0 0.0
  %2926 = vmatpush1.msra.mxu0 0.0
  %2927 = vmatprep.subr.mxu0 0.0
  %2928 = vmatpush1.msra.mxu0 0.0
  %2929 = vmatprep.subr.mxu0 0.0
  %2930 = vmatpush1.msra.mxu0 0.0
  %2931 = vmatprep.subr.mxu0 0.0
  %2932 = vmatpush1.msra.mxu0 0.0
  %2933 = vmatprep.subr.mxu0 0.0
  %2934 = vmatpush1.msra.mxu0 0.0
  %2935 = vmatprep.subr.mxu0 0.0
  %2936 = vmatpush1.msra.mxu0 0.0
  %2937 = vmatprep.subr.mxu0 0.0
  %2938 = vmatpush1.msra.mxu0 0.0
  %2939 = vmatprep.subr.mxu0 0.0
  %2940 = vmatpush1.msra.mxu0 0.0
  %2941 = vmatprep.subr.mxu0 0.0
  %2942 = vmatpush1.msra.mxu0 0.0
  %2943 = vmatprep.subr.mxu0 0.0
  %2944 = vmatpush1.msra.mxu0 0.0
  %2945 = vmatprep.subr.mxu0 0.0
  %2946 = vmatpush1.msra.mxu0 0.0
  %2947 = vmatprep.subr.mxu0 0.0
  %2948 = vmatpush1.msra.mxu0 0.0
  %2949 = vmatprep.subr.mxu0 0.0
  %2950 = vmatpush1.msra.mxu0 0.0
  %2951 = vmatprep.subr.mxu0 0.0
  %2952 = vmatpush1.msra.mxu0 0.0
  %2953 = vmatprep.subr.mxu0 0.0
  %2954 = vmatpush1.msra.mxu0 0.0
  %2955 = vmatprep.subr.mxu0 0.0
  %2956 = vmatpush1.msra.mxu0 0.0
  %2957 = vmatprep.subr.mxu0 0.0
  %2958 = vmatpush1.msra.mxu0 0.0
  %2959 = vmatprep.subr.mxu0 0.0
  %2960 = vmatpush1.msra.mxu0 0.0
  %2961 = vmatprep.subr.mxu0 0.0
  %2962 = vmatpush1.msra.mxu0 0.0
  %2963 = vmatprep.subr.mxu0 0.0
  %2964 = vmatpush1.msra.mxu0 0.0
  %2965 = vmatprep.mubr.f32.mxu0 0.0
  %v2966 = vand.u32 %v2073, 4294901760
  %v2967 = vsub.f32 %v2073, %v2966
  %v2968 = vand.u32 %v2967, 4294901760
  %2969 = vmatmul.mubr.f32.gmra.mrb[0].mxu0 %v2968
  %v2970 = vpop.f32.mrb[0].mxu0
  %v2971 = vadd.f32 %v2740, %v2970
  %v2972 = vpop.f32.mrb[0].mxu0
  %2973 = vmatprep.mubr.f32.mxu0 0.0
  %v2974 = vand.u32 %v2076, 4294901760
  %v2975 = vsub.f32 %v2076, %v2974
  %v2976 = vand.u32 %v2975, 4294901760
  %2977 = vmatmul.mubr.f32.gmra.mrb[0].mxu0 %v2976
  %v2978 = vpop.f32.mrb[0].mxu0
  %v2979 = vadd.f32 %v2747, %v2978
  %v2980 = vpop.f32.mrb[0].mxu0
  %2981 = vmatprep.mubr.f32.mxu0 0.0
  %v2982 = vand.u32 %v2079, 4294901760
  %v2983 = vsub.f32 %v2079, %v2982
  %v2984 = vand.u32 %v2983, 4294901760
  %2985 = vmatmul.mubr.f32.gmra.mrb[0].mxu0 %v2984
  %v2986 = vpop.f32.mrb[0].mxu0
  %v2987 = vadd.f32 %v2754, %v2986
  %v2988 = vpop.f32.mrb[0].mxu0
  %2989 = vmatprep.mubr.f32.mxu0 0.0
  %v2990 = vand.u32 %v2082, 4294901760
  %v2991 = vsub.f32 %v2082, %v2990
  %v2992 = vand.u32 %v2991, 4294901760
  %2993 = vmatmul.mubr.f32.gmra.mrb[0].mxu0 %v2992
  %v2994 = vpop.f32.mrb[0].mxu0
  %v2995 = vadd.f32 %v2761, %v2994
  %v2996 = vpop.f32.mrb[0].mxu0
  %2997 = vmatprep.mubr.f32.mxu0 0.0
  %v2998 = vand.u32 %v2085, 4294901760
  %v2999 = vsub.f32 %v2085, %v2998
  %v3000 = vand.u32 %v2999, 4294901760
  %3001 = vmatmul.mubr.f32.gmra.mrb[0].mxu0 %v3000
  %v3002 = vpop.f32.mrb[0].mxu0
  %v3003 = vadd.f32 %v2768, %v3002
  %v3004 = vpop.f32.mrb[0].mxu0
  %3005 = vmatprep.mubr.f32.mxu0 0.0
  %v3006 = vand.u32 %v2088, 4294901760
  %v3007 = vsub.f32 %v2088, %v3006
  %v3008 = vand.u32 %v3007, 4294901760
  %3009 = vmatmul.mubr.f32.gmra.mrb[0].mxu0 %v3008
  %v3010 = vpop.f32.mrb[0].mxu0
  %v3011 = vadd.f32 %v2775, %v3010
  %v3012 = vpop.f32.mrb[0].mxu0
  %3013 = vmatprep.mubr.f32.mxu0 0.0
  %v3014 = vand.u32 %v2091, 4294901760
  %v3015 = vsub.f32 %v2091, %v3014
  %v3016 = vand.u32 %v3015, 4294901760
  %3017 = vmatmul.mubr.f32.gmra.mrb[0].mxu0 %v3016
  %v3018 = vpop.f32.mrb[0].mxu0
  %v3019 = vadd.f32 %v2782, %v3018
  %v3020 = vpop.f32.mrb[0].mxu0
  %3021 = vmatprep.mubr.f32.mxu0 0.0
  %v3022 = vand.u32 %v2094, 4294901760
  %v3023 = vsub.f32 %v2094, %v3022
  %v3024 = vand.u32 %v3023, 4294901760
  %3025 = vmatmul.mubr.f32.gmra.mrb[0].mxu0 %v3024
  %v3026 = vpop.f32.mrb[0].mxu0
  %v3027 = vadd.f32 %v2789, %v3026
  %v3028 = vpop.f32.mrb[0].mxu0
  %3029 = vmatprep.mubr.f32.mxu0 0.0
  %v3030 = vand.u32 %v2097, 4294901760
  %v3031 = vsub.f32 %v2097, %v3030
  %v3032 = vand.u32 %v3031, 4294901760
  %3033 = vmatmul.mubr.f32.gmra.mrb[0].mxu0 %v3032
  %v3034 = vpop.f32.mrb[0].mxu0
  %v3035 = vadd.f32 %v2796, %v3034
  %v3036 = vpop.f32.mrb[0].mxu0
  %3037 = vmatprep.mubr.f32.mxu0 0.0
  %v3038 = vand.u32 %v2100, 4294901760
  %v3039 = vsub.f32 %v2100, %v3038
  %v3040 = vand.u32 %v3039, 4294901760
  %3041 = vmatmul.mubr.f32.gmra.mrb[0].mxu0 %v3040
  %v3042 = vpop.f32.mrb[0].mxu0
  %v3043 = vadd.f32 %v2803, %v3042
  %v3044 = vpop.f32.mrb[0].mxu0
  %3045 = vmatprep.mubr.f32.mxu0 0.0
  %v3046 = vand.u32 %v2103, 4294901760
  %v3047 = vsub.f32 %v2103, %v3046
  %v3048 = vand.u32 %v3047, 4294901760
  %3049 = vmatmul.mubr.f32.gmra.mrb[0].mxu0 %v3048
  %v3050 = vpop.f32.mrb[0].mxu0
  %v3051 = vadd.f32 %v2810, %v3050
  %v3052 = vpop.f32.mrb[0].mxu0
  %3053 = vmatprep.mubr.f32.mxu0 0.0
  %v3054 = vand.u32 %v2106, 4294901760
  %v3055 = vsub.f32 %v2106, %v3054
  %v3056 = vand.u32 %v3055, 4294901760
  %3057 = vmatmul.mubr.f32.gmra.mrb[0].mxu0 %v3056
  %v3058 = vpop.f32.mrb[0].mxu0
  %v3059 = vadd.f32 %v2817, %v3058
  %v3060 = vpop.f32.mrb[0].mxu0
  %3061 = vmatprep.mubr.f32.mxu0 0.0
  %v3062 = vand.u32 %v2109, 4294901760
  %v3063 = vsub.f32 %v2109, %v3062
  %v3064 = vand.u32 %v3063, 4294901760
  %3065 = vmatmul.mubr.f32.gmra.mrb[0].mxu0 %v3064
  %v3066 = vpop.f32.mrb[0].mxu0
  %v3067 = vadd.f32 %v2824, %v3066
  %v3068 = vpop.f32.mrb[0].mxu0
  %3069 = vmatprep.mubr.f32.mxu0 0.0
  %v3070 = vand.u32 %v2112, 4294901760
  %v3071 = vsub.f32 %v2112, %v3070
  %v3072 = vand.u32 %v3071, 4294901760
  %3073 = vmatmul.mubr.f32.gmra.mrb[0].mxu0 %v3072
  %v3074 = vpop.f32.mrb[0].mxu0
  %v3075 = vadd.f32 %v2831, %v3074
  %v3076 = vpop.f32.mrb[0].mxu0
  %3077 = vmatprep.mubr.f32.mxu0 0.0
  %v3078 = vand.u32 %v2115, 4294901760
  %v3079 = vsub.f32 %v2115, %v3078
  %v3080 = vand.u32 %v3079, 4294901760
  %3081 = vmatmul.mubr.f32.gmra.mrb[0].mxu0 %v3080
  %v3082 = vpop.f32.mrb[0].mxu0
  %v3083 = vadd.f32 %v2838, %v3082
  %v3084 = vpop.f32.mrb[0].mxu0
  %3085 = vmatprep.mubr.f32.mxu0 0.0
  %v3086 = vand.u32 %v2118, 4294901760
  %v3087 = vsub.f32 %v2118, %v3086
  %v3088 = vand.u32 %v3087, 4294901760
  %3089 = vmatmul.mubr.f32.gmra.mrb[0].mxu0 %v3088
  %v3090 = vpop.f32.mrb[0].mxu0
  %v3091 = vadd.f32 %v2845, %v3090
  %v3092 = vpop.f32.mrb[0].mxu0
  %3093 = vmatprep.mubr.f32.mxu0 0.0
  %v3094 = vand.u32 %v2121, 4294901760
  %v3095 = vsub.f32 %v2121, %v3094
  %v3096 = vand.u32 %v3095, 4294901760
  %3097 = vmatmul.mubr.f32.gmra.mrb[0].mxu0 %v3096
  %v3098 = vpop.f32.mrb[0].mxu0
  %v3099 = vadd.f32 %v2852, %v3098
  %v3100 = vpop.f32.mrb[0].mxu0
  %3101 = vmatprep.mubr.f32.mxu0 0.0
  %v3102 = vand.u32 %v2124, 4294901760
  %v3103 = vsub.f32 %v2124, %v3102
  %v3104 = vand.u32 %v3103, 4294901760
  %3105 = vmatmul.mubr.f32.gmra.mrb[0].mxu0 %v3104
  %v3106 = vpop.f32.mrb[0].mxu0
  %v3107 = vadd.f32 %v2859, %v3106
  %v3108 = vpop.f32.mrb[0].mxu0
  %3109 = vmatprep.mubr.f32.mxu0 0.0
  %v3110 = vand.u32 %v2127, 4294901760
  %v3111 = vsub.f32 %v2127, %v3110
  %v3112 = vand.u32 %v3111, 4294901760
  %3113 = vmatmul.mubr.f32.gmra.mrb[0].mxu0 %v3112
  %v3114 = vpop.f32.mrb[0].mxu0
  %v3115 = vadd.f32 %v2866, %v3114
  %v3116 = vpop.f32.mrb[0].mxu0
  %3117 = vmatprep.mubr.f32.mxu0 0.0
  %v3118 = vand.u32 %v2130, 4294901760
  %v3119 = vsub.f32 %v2130, %v3118
  %v3120 = vand.u32 %v3119, 4294901760
  %3121 = vmatmul.mubr.f32.gmra.mrb[0].mxu0 %v3120
  %v3122 = vpop.f32.mrb[0].mxu0
  %v3123 = vadd.f32 %v2873, %v3122
  %v3124 = vpop.f32.mrb[0].mxu0
  %3125 = vmatprep.mubr.f32.mxu0 0.0
  %v3126 = vand.u32 %v2133, 4294901760
  %v3127 = vsub.f32 %v2133, %v3126
  %v3128 = vand.u32 %v3127, 4294901760
  %3129 = vmatmul.mubr.f32.gmra.mrb[0].mxu0 %v3128
  %v3130 = vpop.f32.mrb[0].mxu0
  %v3131 = vadd.f32 %v2880, %v3130
  %v3132 = vpop.f32.mrb[0].mxu0
  %3133 = vmatprep.mubr.f32.mxu0 0.0
  %v3134 = vand.u32 %v2136, 4294901760
  %v3135 = vsub.f32 %v2136, %v3134
  %v3136 = vand.u32 %v3135, 4294901760
  %3137 = vmatmul.mubr.f32.gmra.mrb[0].mxu0 %v3136
  %v3138 = vpop.f32.mrb[0].mxu0
  %v3139 = vadd.f32 %v2887, %v3138
  %v3140 = vpop.f32.mrb[0].mxu0
  %3141 = vmatprep.mubr.f32.mxu0 0.0
  %v3142 = vand.u32 %v2139, 4294901760
  %v3143 = vsub.f32 %v2139, %v3142
  %v3144 = vand.u32 %v3143, 4294901760
  %3145 = vmatmul.mubr.f32.gmra.mrb[0].mxu0 %v3144
  %v3146 = vpop.f32.mrb[0].mxu0
  %v3147 = vadd.f32 %v2894, %v3146
  %v3148 = vpop.f32.mrb[0].mxu0
  %3149 = vdwg.mxu0
  %3150 = vmatprep.subr.mxu0 0.0
  %v3151 = vand.u32 %v2061, 4294901760
  %v3152 = vsub.f32 %v2061, %v3151
  %v3153 = vand.u32 %v3152, 4294901760
  %3154 = vmatpush1.msra.mxu0 %v3153
  %3155 = vmatprep.subr.mxu0 0.0
  %v3156 = vand.u32 %v2062, 4294901760
  %v3157 = vsub.f32 %v2062, %v3156
  %v3158 = vand.u32 %v3157, 4294901760
  %3159 = vmatpush1.msra.mxu0 %v3158
  %3160 = vmatprep.subr.mxu0 0.0
  %v3161 = vand.u32 %v2063, 4294901760
  %v3162 = vsub.f32 %v2063, %v3161
  %v3163 = vand.u32 %v3162, 4294901760
  %3164 = vmatpush1.msra.mxu0 %v3163
  %3165 = vmatprep.subr.mxu0 0.0
  %v3166 = vand.u32 %v2064, 4294901760
  %v3167 = vsub.f32 %v2064, %v3166
  %v3168 = vand.u32 %v3167, 4294901760
  %3169 = vmatpush1.msra.mxu0 %v3168
  %3170 = vmatprep.subr.mxu0 0.0
  %3171 = vmatpush1.msra.mxu0 0.0
  %3172 = vmatprep.subr.mxu0 0.0
  %3173 = vmatpush1.msra.mxu0 0.0
  %3174 = vmatprep.subr.mxu0 0.0
  %3175 = vmatpush1.msra.mxu0 0.0
  %3176 = vmatprep.subr.mxu0 0.0
  %3177 = vmatpush1.msra.mxu0 0.0
  %3178 = vmatprep.subr.mxu0 0.0
  %3179 = vmatpush1.msra.mxu0 0.0
  %3180 = vmatprep.subr.mxu0 0.0
  %3181 = vmatpush1.msra.mxu0 0.0
  %3182 = vmatprep.subr.mxu0 0.0
  %3183 = vmatpush1.msra.mxu0 0.0
  %3184 = vmatprep.subr.mxu0 0.0
  %3185 = vmatpush1.msra.mxu0 0.0
  %3186 = vmatprep.subr.mxu0 0.0
  %3187 = vmatpush1.msra.mxu0 0.0
  %3188 = vmatprep.subr.mxu0 0.0
  %3189 = vmatpush1.msra.mxu0 0.0
  %3190 = vmatprep.subr.mxu0 0.0
  %3191 = vmatpush1.msra.mxu0 0.0
  %3192 = vmatprep.subr.mxu0 0.0
  %3193 = vmatpush1.msra.mxu0 0.0
  %3194 = vmatprep.subr.mxu0 0.0
  %3195 = vmatpush1.msra.mxu0 0.0
  %3196 = vmatprep.subr.mxu0 0.0
  %3197 = vmatpush1.msra.mxu0 0.0
  %3198 = vmatprep.subr.mxu0 0.0
  %3199 = vmatpush1.msra.mxu0 0.0
  %3200 = vmatprep.subr.mxu0 0.0
  %3201 = vmatpush1.msra.mxu0 0.0
  %3202 = vmatprep.subr.mxu0 0.0
  %3203 = vmatpush1.msra.mxu0 0.0
  %3204 = vmatprep.subr.mxu0 0.0
  %3205 = vmatpush1.msra.mxu0 0.0
  %3206 = vmatprep.subr.mxu0 0.0
  %3207 = vmatpush1.msra.mxu0 0.0
  %3208 = vmatprep.subr.mxu0 0.0
  %3209 = vmatpush1.msra.mxu0 0.0
  %3210 = vmatprep.subr.mxu0 0.0
  %3211 = vmatpush1.msra.mxu0 0.0
  %3212 = vmatprep.subr.mxu0 0.0
  %3213 = vmatpush1.msra.mxu0 0.0
  %3214 = vmatprep.subr.mxu0 0.0
  %3215 = vmatpush1.msra.mxu0 0.0
  %3216 = vmatprep.subr.mxu0 0.0
  %3217 = vmatpush1.msra.mxu0 0.0
  %3218 = vmatprep.subr.mxu0 0.0
  %3219 = vmatpush1.msra.mxu0 0.0
  %3220 = vmatprep.subr.mxu0 0.0
  %3221 = vmatpush1.msra.mxu0 0.0
  %3222 = vmatprep.subr.mxu0 0.0
  %3223 = vmatpush1.msra.mxu0 0.0
  %3224 = vmatprep.subr.mxu0 0.0
  %3225 = vmatpush1.msra.mxu0 0.0
  %3226 = vmatprep.mubr.f32.mxu0 0.0
  %v3227 = vand.u32 %v2073, 4294901760
  %3228 = vmatmul.mubr.f32.gmra.mrb[0].mxu0 %v3227
  %v3229 = vpop.f32.mrb[0].mxu0
  %v3230 = vadd.f32 %v2971, %v3229
  %v3231 = vpop.f32.mrb[0].mxu0
  %3232 = vmatprep.mubr.f32.mxu0 0.0
  %v3233 = vand.u32 %v2076, 4294901760
  %3234 = vmatmul.mubr.f32.gmra.mrb[0].mxu0 %v3233
  %v3235 = vpop.f32.mrb[0].mxu0
  %v3236 = vadd.f32 %v2979, %v3235
  %v3237 = vpop.f32.mrb[0].mxu0
  %3238 = vmatprep.mubr.f32.mxu0 0.0
  %v3239 = vand.u32 %v2079, 4294901760
  %3240 = vmatmul.mubr.f32.gmra.mrb[0].mxu0 %v3239
  %v3241 = vpop.f32.mrb[0].mxu0
  %v3242 = vadd.f32 %v2987, %v3241
  %v3243 = vpop.f32.mrb[0].mxu0
  %3244 = vmatprep.mubr.f32.mxu0 0.0
  %v3245 = vand.u32 %v2082, 4294901760
  %3246 = vmatmul.mubr.f32.gmra.mrb[0].mxu0 %v3245
  %v3247 = vpop.f32.mrb[0].mxu0
  %v3248 = vadd.f32 %v2995, %v3247
  %v3249 = vpop.f32.mrb[0].mxu0
  %3250 = vmatprep.mubr.f32.mxu0 0.0
  %v3251 = vand.u32 %v2085, 4294901760
  %3252 = vmatmul.mubr.f32.gmra.mrb[0].mxu0 %v3251
  %v3253 = vpop.f32.mrb[0].mxu0
  %v3254 = vadd.f32 %v3003, %v3253
  %v3255 = vpop.f32.mrb[0].mxu0
  %3256 = vmatprep.mubr.f32.mxu0 0.0
  %v3257 = vand.u32 %v2088, 4294901760
  %3258 = vmatmul.mubr.f32.gmra.mrb[0].mxu0 %v3257
  %v3259 = vpop.f32.mrb[0].mxu0
  %v3260 = vadd.f32 %v3011, %v3259
  %v3261 = vpop.f32.mrb[0].mxu0
  %3262 = vmatprep.mubr.f32.mxu0 0.0
  %v3263 = vand.u32 %v2091, 4294901760
  %3264 = vmatmul.mubr.f32.gmra.mrb[0].mxu0 %v3263
  %v3265 = vpop.f32.mrb[0].mxu0
  %v3266 = vadd.f32 %v3019, %v3265
  %v3267 = vpop.f32.mrb[0].mxu0
  %3268 = vmatprep.mubr.f32.mxu0 0.0
  %v3269 = vand.u32 %v2094, 4294901760
  %3270 = vmatmul.mubr.f32.gmra.mrb[0].mxu0 %v3269
  %v3271 = vpop.f32.mrb[0].mxu0
  %v3272 = vadd.f32 %v3027, %v3271
  %v3273 = vpop.f32.mrb[0].mxu0
  %3274 = vmatprep.mubr.f32.mxu0 0.0
  %v3275 = vand.u32 %v2097, 4294901760
  %3276 = vmatmul.mubr.f32.gmra.mrb[0].mxu0 %v3275
  %v3277 = vpop.f32.mrb[0].mxu0
  %v3278 = vadd.f32 %v3035, %v3277
  %v3279 = vpop.f32.mrb[0].mxu0
  %3280 = vmatprep.mubr.f32.mxu0 0.0
  %v3281 = vand.u32 %v2100, 4294901760
  %3282 = vmatmul.mubr.f32.gmra.mrb[0].mxu0 %v3281
  %v3283 = vpop.f32.mrb[0].mxu0
  %v3284 = vadd.f32 %v3043, %v3283
  %v3285 = vpop.f32.mrb[0].mxu0
  %3286 = vmatprep.mubr.f32.mxu0 0.0
  %v3287 = vand.u32 %v2103, 4294901760
  %3288 = vmatmul.mubr.f32.gmra.mrb[0].mxu0 %v3287
  %v3289 = vpop.f32.mrb[0].mxu0
  %v3290 = vadd.f32 %v3051, %v3289
  %v3291 = vpop.f32.mrb[0].mxu0
  %3292 = vmatprep.mubr.f32.mxu0 0.0
  %v3293 = vand.u32 %v2106, 4294901760
  %3294 = vmatmul.mubr.f32.gmra.mrb[0].mxu0 %v3293
  %v3295 = vpop.f32.mrb[0].mxu0
  %v3296 = vadd.f32 %v3059, %v3295
  %v3297 = vpop.f32.mrb[0].mxu0
  %3298 = vmatprep.mubr.f32.mxu0 0.0
  %v3299 = vand.u32 %v2109, 4294901760
  %3300 = vmatmul.mubr.f32.gmra.mrb[0].mxu0 %v3299
  %v3301 = vpop.f32.mrb[0].mxu0
  %v3302 = vadd.f32 %v3067, %v3301
  %v3303 = vpop.f32.mrb[0].mxu0
  %3304 = vmatprep.mubr.f32.mxu0 0.0
  %v3305 = vand.u32 %v2112, 4294901760
  %3306 = vmatmul.mubr.f32.gmra.mrb[0].mxu0 %v3305
  %v3307 = vpop.f32.mrb[0].mxu0
  %v3308 = vadd.f32 %v3075, %v3307
  %v3309 = vpop.f32.mrb[0].mxu0
  %3310 = vmatprep.mubr.f32.mxu0 0.0
  %v3311 = vand.u32 %v2115, 4294901760
  %3312 = vmatmul.mubr.f32.gmra.mrb[0].mxu0 %v3311
  %v3313 = vpop.f32.mrb[0].mxu0
  %v3314 = vadd.f32 %v3083, %v3313
  %v3315 = vpop.f32.mrb[0].mxu0
  %3316 = vmatprep.mubr.f32.mxu0 0.0
  %v3317 = vand.u32 %v2118, 4294901760
  %3318 = vmatmul.mubr.f32.gmra.mrb[0].mxu0 %v3317
  %v3319 = vpop.f32.mrb[0].mxu0
  %v3320 = vadd.f32 %v3091, %v3319
  %v3321 = vpop.f32.mrb[0].mxu0
  %3322 = vmatprep.mubr.f32.mxu0 0.0
  %v3323 = vand.u32 %v2121, 4294901760
  %3324 = vmatmul.mubr.f32.gmra.mrb[0].mxu0 %v3323
  %v3325 = vpop.f32.mrb[0].mxu0
  %v3326 = vadd.f32 %v3099, %v3325
  %v3327 = vpop.f32.mrb[0].mxu0
  %3328 = vmatprep.mubr.f32.mxu0 0.0
  %v3329 = vand.u32 %v2124, 4294901760
  %3330 = vmatmul.mubr.f32.gmra.mrb[0].mxu0 %v3329
  %v3331 = vpop.f32.mrb[0].mxu0
  %v3332 = vadd.f32 %v3107, %v3331
  %v3333 = vpop.f32.mrb[0].mxu0
  %3334 = vmatprep.mubr.f32.mxu0 0.0
  %v3335 = vand.u32 %v2127, 4294901760
  %3336 = vmatmul.mubr.f32.gmra.mrb[0].mxu0 %v3335
  %v3337 = vpop.f32.mrb[0].mxu0
  %v3338 = vadd.f32 %v3115, %v3337
  %v3339 = vpop.f32.mrb[0].mxu0
  %3340 = vmatprep.mubr.f32.mxu0 0.0
  %v3341 = vand.u32 %v2130, 4294901760
  %3342 = vmatmul.mubr.f32.gmra.mrb[0].mxu0 %v3341
  %v3343 = vpop.f32.mrb[0].mxu0
  %v3344 = vadd.f32 %v3123, %v3343
  %v3345 = vpop.f32.mrb[0].mxu0
  %3346 = vmatprep.mubr.f32.mxu0 0.0
  %v3347 = vand.u32 %v2133, 4294901760
  %3348 = vmatmul.mubr.f32.gmra.mrb[0].mxu0 %v3347
  %v3349 = vpop.f32.mrb[0].mxu0
  %v3350 = vadd.f32 %v3131, %v3349
  %v3351 = vpop.f32.mrb[0].mxu0
  %3352 = vmatprep.mubr.f32.mxu0 0.0
  %v3353 = vand.u32 %v2136, 4294901760
  %3354 = vmatmul.mubr.f32.gmra.mrb[0].mxu0 %v3353
  %v3355 = vpop.f32.mrb[0].mxu0
  %v3356 = vadd.f32 %v3139, %v3355
  %v3357 = vpop.f32.mrb[0].mxu0
  %3358 = vmatprep.mubr.f32.mxu0 0.0
  %v3359 = vand.u32 %v2139, 4294901760
  %3360 = vmatmul.mubr.f32.gmra.mrb[0].mxu0 %v3359
  %v3361 = vpop.f32.mrb[0].mxu0
  %v3362 = vadd.f32 %v3147, %v3361
  %v3363 = vpop.f32.mrb[0].mxu0
  %3364 = vdwg.mxu0
  %3365 = vmatprep.subr.mxu0 0.0
  %v3366 = vand.u32 %v2061, 4294901760
  %3367 = vmatpush1.msra.mxu0 %v3366
  %3368 = vmatprep.subr.mxu0 0.0
  %v3369 = vand.u32 %v2062, 4294901760
  %3370 = vmatpush1.msra.mxu0 %v3369
  %3371 = vmatprep.subr.mxu0 0.0
  %v3372 = vand.u32 %v2063, 4294901760
  %3373 = vmatpush1.msra.mxu0 %v3372
  %3374 = vmatprep.subr.mxu0 0.0
  %v3375 = vand.u32 %v2064, 4294901760
  %3376 = vmatpush1.msra.mxu0 %v3375
  %3377 = vmatprep.subr.mxu0 0.0
  %3378 = vmatpush1.msra.mxu0 0.0
  %3379 = vmatprep.subr.mxu0 0.0
  %3380 = vmatpush1.msra.mxu0 0.0
  %3381 = vmatprep.subr.mxu0 0.0
  %3382 = vmatpush1.msra.mxu0 0.0
  %3383 = vmatprep.subr.mxu0 0.0
  %3384 = vmatpush1.msra.mxu0 0.0
  %3385 = vmatprep.subr.mxu0 0.0
  %3386 = vmatpush1.msra.mxu0 0.0
  %3387 = vmatprep.subr.mxu0 0.0
  %3388 = vmatpush1.msra.mxu0 0.0
  %3389 = vmatprep.subr.mxu0 0.0
  %3390 = vmatpush1.msra.mxu0 0.0
  %3391 = vmatprep.subr.mxu0 0.0
  %3392 = vmatpush1.msra.mxu0 0.0
  %3393 = vmatprep.subr.mxu0 0.0
  %3394 = vmatpush1.msra.mxu0 0.0
  %3395 = vmatprep.subr.mxu0 0.0
  %3396 = vmatpush1.msra.mxu0 0.0
  %3397 = vmatprep.subr.mxu0 0.0
  %3398 = vmatpush1.msra.mxu0 0.0
  %3399 = vmatprep.subr.mxu0 0.0
  %3400 = vmatpush1.msra.mxu0 0.0
  %3401 = vmatprep.subr.mxu0 0.0
  %3402 = vmatpush1.msra.mxu0 0.0
  %3403 = vmatprep.subr.mxu0 0.0
  %3404 = vmatpush1.msra.mxu0 0.0
  %3405 = vmatprep.subr.mxu0 0.0
  %3406 = vmatpush1.msra.mxu0 0.0
  %3407 = vmatprep.subr.mxu0 0.0
  %3408 = vmatpush1.msra.mxu0 0.0
  %3409 = vmatprep.subr.mxu0 0.0
  %3410 = vmatpush1.msra.mxu0 0.0
  %3411 = vmatprep.subr.mxu0 0.0
  %3412 = vmatpush1.msra.mxu0 0.0
  %3413 = vmatprep.subr.mxu0 0.0
  %3414 = vmatpush1.msra.mxu0 0.0
  %3415 = vmatprep.subr.mxu0 0.0
  %3416 = vmatpush1.msra.mxu0 0.0
  %3417 = vmatprep.subr.mxu0 0.0
  %3418 = vmatpush1.msra.mxu0 0.0
  %3419 = vmatprep.subr.mxu0 0.0
  %3420 = vmatpush1.msra.mxu0 0.0
  %3421 = vmatprep.subr.mxu0 0.0
  %3422 = vmatpush1.msra.mxu0 0.0
  %3423 = vmatprep.subr.mxu0 0.0
  %3424 = vmatpush1.msra.mxu0 0.0
  %3425 = vmatprep.subr.mxu0 0.0
  %3426 = vmatpush1.msra.mxu0 0.0
  %3427 = vmatprep.subr.mxu0 0.0
  %3428 = vmatpush1.msra.mxu0 0.0
  %3429 = vmatprep.subr.mxu0 0.0
  %3430 = vmatpush1.msra.mxu0 0.0
  %3431 = vmatprep.subr.mxu0 0.0
  %3432 = vmatpush1.msra.mxu0 0.0
  %3433 = vmatprep.mubr.f32.mxu0 0.0
  %v3434 = vand.u32 %v2073, 4294901760
  %3435 = vmatmul.mubr.f32.gmra.mrb[0].mxu0 %v3434
  %v3436 = vpop.f32.mrb[0].mxu0
  %v3437 = vadd.f32 %v3230, %v3436
  %v3438 = vpop.f32.mrb[0].mxu0
  %3439 = vmatprep.mubr.f32.mxu0 0.0
  %v3440 = vand.u32 %v2076, 4294901760
  %3441 = vmatmul.mubr.f32.gmra.mrb[0].mxu0 %v3440
  %v3442 = vpop.f32.mrb[0].mxu0
  %v3443 = vadd.f32 %v3236, %v3442
  %v3444 = vpop.f32.mrb[0].mxu0
  %3445 = vmatprep.mubr.f32.mxu0 0.0
  %v3446 = vand.u32 %v2079, 4294901760
  %3447 = vmatmul.mubr.f32.gmra.mrb[0].mxu0 %v3446
  %v3448 = vpop.f32.mrb[0].mxu0
  %v3449 = vadd.f32 %v3242, %v3448
  %v3450 = vpop.f32.mrb[0].mxu0
  %3451 = vmatprep.mubr.f32.mxu0 0.0
  %v3452 = vand.u32 %v2082, 4294901760
  %3453 = vmatmul.mubr.f32.gmra.mrb[0].mxu0 %v3452
  %v3454 = vpop.f32.mrb[0].mxu0
  %v3455 = vadd.f32 %v3248, %v3454
  %v3456 = vpop.f32.mrb[0].mxu0
  %3457 = vmatprep.mubr.f32.mxu0 0.0
  %v3458 = vand.u32 %v2085, 4294901760
  %3459 = vmatmul.mubr.f32.gmra.mrb[0].mxu0 %v3458
  %v3460 = vpop.f32.mrb[0].mxu0
  %v3461 = vadd.f32 %v3254, %v3460
  %v3462 = vpop.f32.mrb[0].mxu0
  %3463 = vmatprep.mubr.f32.mxu0 0.0
  %v3464 = vand.u32 %v2088, 4294901760
  %3465 = vmatmul.mubr.f32.gmra.mrb[0].mxu0 %v3464
  %v3466 = vpop.f32.mrb[0].mxu0
  %v3467 = vadd.f32 %v3260, %v3466
  %v3468 = vpop.f32.mrb[0].mxu0
  %3469 = vmatprep.mubr.f32.mxu0 0.0
  %v3470 = vand.u32 %v2091, 4294901760
  %3471 = vmatmul.mubr.f32.gmra.mrb[0].mxu0 %v3470
  %v3472 = vpop.f32.mrb[0].mxu0
  %v3473 = vadd.f32 %v3266, %v3472
  %v3474 = vpop.f32.mrb[0].mxu0
  %3475 = vmatprep.mubr.f32.mxu0 0.0
  %v3476 = vand.u32 %v2094, 4294901760
  %3477 = vmatmul.mubr.f32.gmra.mrb[0].mxu0 %v3476
  %v3478 = vpop.f32.mrb[0].mxu0
  %v3479 = vadd.f32 %v3272, %v3478
  %v3480 = vpop.f32.mrb[0].mxu0
  %3481 = vmatprep.mubr.f32.mxu0 0.0
  %v3482 = vand.u32 %v2097, 4294901760
  %3483 = vmatmul.mubr.f32.gmra.mrb[0].mxu0 %v3482
  %v3484 = vpop.f32.mrb[0].mxu0
  %v3485 = vadd.f32 %v3278, %v3484
  %v3486 = vpop.f32.mrb[0].mxu0
  %3487 = vmatprep.mubr.f32.mxu0 0.0
  %v3488 = vand.u32 %v2100, 4294901760
  %3489 = vmatmul.mubr.f32.gmra.mrb[0].mxu0 %v3488
  %v3490 = vpop.f32.mrb[0].mxu0
  %v3491 = vadd.f32 %v3284, %v3490
  %v3492 = vpop.f32.mrb[0].mxu0
  %3493 = vmatprep.mubr.f32.mxu0 0.0
  %v3494 = vand.u32 %v2103, 4294901760
  %3495 = vmatmul.mubr.f32.gmra.mrb[0].mxu0 %v3494
  %v3496 = vpop.f32.mrb[0].mxu0
  %v3497 = vadd.f32 %v3290, %v3496
  %v3498 = vpop.f32.mrb[0].mxu0
  %3499 = vmatprep.mubr.f32.mxu0 0.0
  %v3500 = vand.u32 %v2106, 4294901760
  %3501 = vmatmul.mubr.f32.gmra.mrb[0].mxu0 %v3500
  %v3502 = vpop.f32.mrb[0].mxu0
  %v3503 = vadd.f32 %v3296, %v3502
  %v3504 = vpop.f32.mrb[0].mxu0
  %3505 = vmatprep.mubr.f32.mxu0 0.0
  %v3506 = vand.u32 %v2109, 4294901760
  %3507 = vmatmul.mubr.f32.gmra.mrb[0].mxu0 %v3506
  %v3508 = vpop.f32.mrb[0].mxu0
  %v3509 = vadd.f32 %v3302, %v3508
  %v3510 = vpop.f32.mrb[0].mxu0
  %3511 = vmatprep.mubr.f32.mxu0 0.0
  %v3512 = vand.u32 %v2112, 4294901760
  %3513 = vmatmul.mubr.f32.gmra.mrb[0].mxu0 %v3512
  %v3514 = vpop.f32.mrb[0].mxu0
  %v3515 = vadd.f32 %v3308, %v3514
  %v3516 = vpop.f32.mrb[0].mxu0
  %3517 = vmatprep.mubr.f32.mxu0 0.0
  %v3518 = vand.u32 %v2115, 4294901760
  %3519 = vmatmul.mubr.f32.gmra.mrb[0].mxu0 %v3518
  %v3520 = vpop.f32.mrb[0].mxu0
  %v3521 = vadd.f32 %v3314, %v3520
  %v3522 = vpop.f32.mrb[0].mxu0
  %3523 = vmatprep.mubr.f32.mxu0 0.0
  %v3524 = vand.u32 %v2118, 4294901760
  %3525 = vmatmul.mubr.f32.gmra.mrb[0].mxu0 %v3524
  %v3526 = vpop.f32.mrb[0].mxu0
  %v3527 = vadd.f32 %v3320, %v3526
  %v3528 = vpop.f32.mrb[0].mxu0
  %3529 = vmatprep.mubr.f32.mxu0 0.0
  %v3530 = vand.u32 %v2121, 4294901760
  %3531 = vmatmul.mubr.f32.gmra.mrb[0].mxu0 %v3530
  %v3532 = vpop.f32.mrb[0].mxu0
  %v3533 = vadd.f32 %v3326, %v3532
  %v3534 = vpop.f32.mrb[0].mxu0
  %3535 = vmatprep.mubr.f32.mxu0 0.0
  %v3536 = vand.u32 %v2124, 4294901760
  %3537 = vmatmul.mubr.f32.gmra.mrb[0].mxu0 %v3536
  %v3538 = vpop.f32.mrb[0].mxu0
  %v3539 = vadd.f32 %v3332, %v3538
  %v3540 = vpop.f32.mrb[0].mxu0
  %3541 = vmatprep.mubr.f32.mxu0 0.0
  %v3542 = vand.u32 %v2127, 4294901760
  %3543 = vmatmul.mubr.f32.gmra.mrb[0].mxu0 %v3542
  %v3544 = vpop.f32.mrb[0].mxu0
  %v3545 = vadd.f32 %v3338, %v3544
  %v3546 = vpop.f32.mrb[0].mxu0
  %3547 = vmatprep.mubr.f32.mxu0 0.0
  %v3548 = vand.u32 %v2130, 4294901760
  %3549 = vmatmul.mubr.f32.gmra.mrb[0].mxu0 %v3548
  %v3550 = vpop.f32.mrb[0].mxu0
  %v3551 = vadd.f32 %v3344, %v3550
  %v3552 = vpop.f32.mrb[0].mxu0
  %3553 = vmatprep.mubr.f32.mxu0 0.0
  %v3554 = vand.u32 %v2133, 4294901760
  %3555 = vmatmul.mubr.f32.gmra.mrb[0].mxu0 %v3554
  %v3556 = vpop.f32.mrb[0].mxu0
  %v3557 = vadd.f32 %v3350, %v3556
  %v3558 = vpop.f32.mrb[0].mxu0
  %3559 = vmatprep.mubr.f32.mxu0 0.0
  %v3560 = vand.u32 %v2136, 4294901760
  %3561 = vmatmul.mubr.f32.gmra.mrb[0].mxu0 %v3560
  %v3562 = vpop.f32.mrb[0].mxu0
  %v3563 = vadd.f32 %v3356, %v3562
  %v3564 = vpop.f32.mrb[0].mxu0
  %3565 = vmatprep.mubr.f32.mxu0 0.0
  %v3566 = vand.u32 %v2139, 4294901760
  %3567 = vmatmul.mubr.f32.gmra.mrb[0].mxu0 %v3566
  %v3568 = vpop.f32.mrb[0].mxu0
  %v3569 = vadd.f32 %v3362, %v3568
  %v3570 = vpop.f32.mrb[0].mxu0
  %3571 = vdwg.mxu0
  %3572 = vst [vmem:[%s7] sm:$0xff] %v3437
  %3573 = vst [vmem:[%s7 + $0x8] sm:$0xff] %v3443
  %3574 = vst [vmem:[%s7 + $0x10] sm:$0xff] %v3449
  %3575 = vst [vmem:[%s7 + $0x18] sm:$0xff] %v3455
  %3576 = vst [vmem:[%s7 + $0x20] sm:$0xff] %v3461
  %3577 = vst [vmem:[%s7 + $0x28] sm:$0xff] %v3467
  %3578 = vst [vmem:[%s7 + $0x30] sm:$0xff] %v3473
  %3579 = vst [vmem:[%s7 + $0x38] sm:$0xff] %v3479
  %3580 = vst [vmem:[%s7 + $0x40] sm:$0xff] %v3485
  %3581 = vst [vmem:[%s7 + $0x48] sm:$0xff] %v3491
  %3582 = vst [vmem:[%s7 + $0x50] sm:$0xff] %v3497
  %3583 = vst [vmem:[%s7 + $0x58] sm:$0xff] %v3503
  %3584 = vst [vmem:[%s7 + $0x60] sm:$0xff] %v3509
  %3585 = vst [vmem:[%s7 + $0x68] sm:$0xff] %v3515
  %3586 = vst [vmem:[%s7 + $0x70] sm:$0xff] %v3521
  %3587 = vst [vmem:[%s7 + $0x78] sm:$0xff] %v3527
  %3588 = vst [vmem:[%s7 + $0x80] sm:$0xff] %v3533
  %3589 = vst [vmem:[%s7 + $0x88] sm:$0xff] %v3539
  %3590 = vst [vmem:[%s7 + $0x90] sm:$0xff] %v3545
  %3591 = vst [vmem:[%s7 + $0x98] sm:$0xff] %v3551
  %3592 = vst [vmem:[%s7 + $0xa0] sm:$0xff] %v3557
  %3593 = vst [vmem:[%s7 + $0xa8] sm:$0xff] %v3563
  %3594 = vst [vmem:[%s7 + $0xb0] sm:$0xff] %v3569
  // Predicated region
  $region30: #{winenet_forward.1} parent=0 // pred_check
    _
  $region31: #{winenet_forward.1} parent=0 // pred_check_branch
    %3596 = sbr.rel (0) target = $region33
  $region32: #{winenet_forward.1} parent=0 // pred_region
    _
  $region33: #{winenet_forward.1} parent=0 // pred_fallthru
    _
  // Predicated region
  $region34: #{winenet_forward.1} parent=0 // pred_check
    _
  $region35: #{winenet_forward.1} parent=0 // pred_check_branch
    %3598 = sbr.rel (0) target = $region37
  $region36: #{winenet_forward.1} parent=0 // pred_region
    _
  $region37: #{winenet_forward.1} parent=0 // pred_fallthru
    _

</llo_original>
